<compile_context>
chip_gen: v5e
topology: v5e:2x2
jax: 0.10.0
libtpu: 0.0.40
codegen_flags: <defaults>
</compile_context>

<pallas_src>
import math
from functools import partial

import jax
import jax.numpy as jnp
from jax.experimental import pallas as pl
from jax.experimental.pallas import tpu as pltpu  # noqa: F401  (no TPU-specific params needed at these sizes)


# ----------------------------- Pallas kernels -----------------------------

def _bilstm_unrolled(xproj, whh, out_ref):
    """Fused fwd+bwd LSTM recurrence, fully unrolled; h/c live in vregs.

    xproj   : (T*N, 4*H2) combined gate projections.  Row t*N+n holds the
              forward-direction gates for time t and the backward-direction
              gates for time T-1-t.  Gate layout is gate-major / direction-
              minor: [i_f i_b | f_f f_b | g_f g_b | o_f o_b], each block H2=2H.
    whh     : (H2, 4*H2) recurrent weights in the same layout
              (rows [0:H] -> forward, rows [H:2H] -> backward).
    out_ref : (T, N, H2) output; row t = [h_fwd(t) | h_bwd(t)] (PyTorch conv.).
    """
    T, N, H2 = out_ref.shape
    H = H2 // 2

    h = jnp.zeros((N, H2), jnp.float32)
    c = jnp.zeros((N, H2), jnp.float32)
    hs = []
    for s in range(T):
        g = xproj[s * N:(s + 1) * N] + jnp.dot(h, whh, preferred_element_type=jnp.float32)
        i = jax.nn.sigmoid(g[:, 0 * H2:1 * H2])
        f = jax.nn.sigmoid(g[:, 1 * H2:2 * H2])
        gg = jnp.tanh(g[:, 2 * H2:3 * H2])
        o = jax.nn.sigmoid(g[:, 3 * H2:4 * H2])
        c = f * c + i * gg
        h = o * jnp.tanh(c)
        hs.append(h)                       # [:, :H] = fwd @ time s, [:, H:] = bwd @ time T-1-s

    # lane-dense full-row stores (no half-width masked stores, no wrapper concat)
    for t in range(T):
        out_ref[t] = jnp.concatenate([hs[t][:, :H], hs[T - 1 - t][:, H:]], axis=-1)


def _enc_level1_kernel(x_ref, wih_ref, whh_ref, b_ref, out_q_ref, out_c_ref):
    """Level-1 encoder: question + column streams, SHARED weights, one launch.

    x_ref : (Tq*Nq + Tc*Nc, 2*In) rows [x[t,n] | x[T-1-t,n]]; question rows first.
    """
    Tq, Nq, _ = out_q_ref.shape
    nq = Tq * Nq
    xproj = (jnp.dot(x_ref[...], wih_ref[...], preferred_element_type=jnp.float32)
             + b_ref[...])                                            # one MXU push for everything
    whh = whh_ref[...]
    _bilstm_unrolled(xproj[:nq], whh, out_q_ref)
    _bilstm_unrolled(xproj[nq:], whh, out_c_ref)


def _enc_level2_kernel(xq_ref, xc_ref, wih_q_ref, whh_q_ref, b_q_ref,
                       wih_c_ref, whh_c_ref, b_c_ref, out_q_ref, out_c_ref):
    """Level-2 (attended) encoders: two weight sets, two matmuls, one launch."""
    xpq = (jnp.dot(xq_ref[...], wih_q_ref[...], preferred_element_type=jnp.float32)
           + b_q_ref[...])
    xpc = (jnp.dot(xc_ref[...], wih_c_ref[...], preferred_element_type=jnp.float32)
           + b_c_ref[...])
    _bilstm_unrolled(xpq, whh_q_ref[...], out_q_ref)
    _bilstm_unrolled(xpc, whh_c_ref[...], out_c_ref)


def _decoder_kernel(qe_ref, am_ref, a0_ref, wih_pa_ref, wih_qe_ref, whh_ref,
                    b_ref, wbil_ref, bbil_ref, out_ref):
    """Whole greedy decoder, fully unrolled; state in vregs; one lane-dense store.

    Gate dims are zero-padded so 4*Hp = 128 (padded h/c lanes stay exactly 0).
    out_ref : (B, op_seq_len * n_act) -- row-major [start | step1 | ... ].
    """
    B, n_act, _ = am_ref.shape
    L = out_ref.shape[1] // n_act                  # op_seq_len
    S = L - 1
    Hp = whh_ref.shape[0]                          # padded hidden (4*Hp == 128)
    A = a0_ref.shape[1]

    am = am_ref[...]                               # (B, n_act, F)
    am_a = am[:, :, :A]                            # action-embedding part (gather target)
    wih_pa = wih_pa_ref[...]
    whh = whh_ref[...]
    wbil = wbil_ref[...]
    bbil = bbil_ref[0, 0]

    # questions_encoded input projection is step-invariant -> hoist out of the loop
    qe_proj = (jnp.dot(qe_ref[...], wih_qe_ref[...], preferred_element_type=jnp.float32)
               + b_ref[...])                                           # (B, 4*Hp)

    h = jnp.zeros((B, Hp), jnp.float32)
    c = jnp.zeros((B, Hp), jnp.float32)
    pa = jnp.broadcast_to(a0_ref[...], (B, A))
    iota = jax.lax.broadcasted_iota(jnp.int32, (B, n_act), 1)
    rows = [(iota == 0).astype(jnp.float32)]       # start-token one-hot row

    for s in range(S):
        # LSTM cell: cat(prev_action, q_encoded) expressed as split-W_ih matmuls
        gates = (qe_proj
                 + jnp.dot(pa, wih_pa, preferred_element_type=jnp.float32)
                 + jnp.dot(h, whh, preferred_element_type=jnp.float32))     # (B, 128)
        i = jax.nn.sigmoid(gates[:, 0 * Hp:1 * Hp])
        f = jax.nn.sigmoid(gates[:, 1 * Hp:2 * Hp])
        g = jnp.tanh(gates[:, 2 * Hp:3 * Hp])
        o = jax.nn.sigmoid(gates[:, 3 * Hp:4 * Hp])
        c = f * c + i * g
        h = o * jnp.tanh(c)

        # bilinear(last_output, action_matrix): scores[b, n] = (h[b] @ W) . am[b, n] + bias
        hw = jnp.dot(h, wbil, preferred_element_type=jnp.float32)           # (B, F)
        scores = jax.lax.dot_general(
            hw[:, None, :], am,
            dimension_numbers=(((2,), (2,)), ((0,), (0,))),
            preferred_element_type=jnp.float32)[:, 0, :] + bbil             # (B, n_act)
        rows.append(scores)

        if s + 1 < S:
            # greedy argmax (first max index) + gather of next action embedding (MXU)
            m = jnp.max(scores, axis=1, keepdims=True)
            idx = jnp.min(jnp.where(scores >= m, iota, n_act), axis=1, keepdims=True)
            onehot = (iota == idx).astype(jnp.float32)                      # (B, n_act)
            pa = jax.lax.dot_general(
                onehot[:, None, :], am_a,
                dimension_numbers=(((2,), (1,)), ((0,), (0,))),
                preferred_element_type=jnp.float32)[:, 0, :]                # (B, A)

    out_ref[...] = jnp.concatenate(rows, axis=-1)                           # (B, L*n_act)


# ----------------------------- parameter prep (hoisted out of jit) -----------------------------

def _interleave_gates(wf, wb, H):
    """(..., 4H) x2 -> (..., 8H) gate-major / direction-minor: [i_f i_b f_f f_b g_f g_b o_f o_b]."""
    parts = []
    for k in range(4):
        parts.append(wf[..., k * H:(k + 1) * H])
        parts.append(wb[..., k * H:(k + 1) * H])
    return jnp.concatenate(parts, axis=-1)


def prep_bilstm(p):
    """Raw per-direction LSTM weights -> fused kernel layout.

    Returns wih (2*In, 8H), whh (2H, 8H), b (1, 8H).  The input rows are split
    [x(t) | x(T-1-t)]: rows [0:In] carry forward weights (zeros in backward
    columns) and rows [In:2In] carry backward weights, so one matmul produces
    both directions' gates with the backward time-reversal already applied.
    """
    In, H4 = p['wih_f'].shape
    H = H4 // 4
    z_i = jnp.zeros_like(p['wih_f'])
    z_h = jnp.zeros_like(p['whh_f'])
    wih = jnp.concatenate([_interleave_gates(p['wih_f'], z_i, H),
                           _interleave_gates(z_i, p['wih_b'], H)], axis=0)   # (2In, 8H)
    whh = jnp.concatenate([_interleave_gates(p['whh_f'], z_h, H),
                           _interleave_gates(z_h, p['whh_b'], H)], axis=0)   # (2H, 8H)
    b = _interleave_gates(p['b_f'], p['b_b'], H)                             # (1, 8H)
    return {'wih': wih, 'whh': whh, 'b': b}


def prep_decoder_params(dec, action_embedding, bilinear_w, bilinear_b, A):
    """Pad decoder gate dim so 4*Hp = 128 lanes; split W_ih by input part."""
    wih = dec['wih_f']            # (A + R, 4Hd), input order [prev_action | q_encoded]
    whh = dec['whh_f']            # (Hd, 4Hd)
    b = dec['b_f']                # (1, 4Hd)
    Hd = whh.shape[0]
    Hp = ((Hd + 31) // 32) * 32   # 4*Hp multiple of 128

    def pad_gates(w):
        out = jnp.zeros((w.shape[0], 4 * Hp), jnp.float32)
        for k in range(4):
            out = out.at[:, k * Hp:k * Hp + Hd].set(w[:, k * Hd:(k + 1) * Hd])
        return out

    wih_p = pad_gates(wih)
    whh_p = jnp.zeros((Hp, 4 * Hp), jnp.float32).at[:Hd].set(pad_gates(whh))
    b_p = pad_gates(b)
    wbil_p = jnp.zeros((Hp, bilinear_w.shape[1]), jnp.float32).at[:Hd].set(bilinear_w)
    return {
        'a0': action_embedding[0:1],     # initial previous action embedding
        'wih_pa': wih_p[:A],
        'wih_qe': wih_p[A:],
        'whh': whh_p,
        'b': b_p,
        'wbil': wbil_p,
        'bbil': bilinear_b,
    }


def prepare_kernel_params(params):
    A = params['action_embedding'].shape[1]
    return {
        'embedding': params['embedding'],
        'action_embedding': params['action_embedding'],
        'enc1': prep_bilstm(params['enc_shared']),
        'enc2q': prep_bilstm(params['enc_attn_q']),
        'enc2c': prep_bilstm(params['enc_attn_c']),
        'dec': prep_decoder_params(params['dec'], params['action_embedding'],
                                   params['bilinear_w'], params['bilinear_b'], A),
    }


# ----------------------------- model glue -----------------------------

def _cat_rev(x):
    """(T, N, In) time-major -> (T*N, 2*In); row t*N+n = [x[t,n] | x[T-1-t,n]]."""
    T, N, In = x.shape
    return jnp.concatenate([x, x[::-1]], axis=-1).reshape(T * N, 2 * In)


def build_action_matrix(action_emb, columns_output, questions_output, R, n_agg, n_cond):
    B, C, _ = columns_output.shape
    Q = questions_output.shape[1]
    A = action_emb.shape[1]
    pad1 = jnp.zeros((1, R), jnp.float32)

    def tile(v):                       # (k, A+R) -> (B, k, A+R)
        return jnp.broadcast_to(v[None], (B,) + v.shape)

    start = tile(jnp.concatenate([action_emb[0:1], pad1], axis=1))
    agg = tile(jnp.concatenate([action_emb[1:1 + n_agg],
                                jnp.zeros((n_agg, R), jnp.float32)], axis=1))
    selcol = jnp.concatenate(
        [jnp.broadcast_to(action_emb[n_agg + 1:n_agg + 2][None], (B, C, A)),
         columns_output], axis=2)
    condcol = jnp.concatenate(
        [jnp.broadcast_to(action_emb[n_agg + 2:n_agg + 3][None], (B, C, A)),
         columns_output], axis=2)
    condop = tile(jnp.concatenate([action_emb[n_agg + 3:n_agg + 3 + n_cond],
                                   jnp.zeros((n_cond, R), jnp.float32)], axis=1))
    condval = jnp.concatenate(
        [jnp.broadcast_to(action_emb[n_agg + 3 + n_cond:n_agg + 4 + n_cond][None], (B, Q, A)),
         questions_output], axis=2)
    end = tile(jnp.concatenate([action_emb[n_agg + 4 + n_cond:n_agg + 5 + n_cond], pad1], axis=1))
    return jnp.concatenate([start, agg, selcol, condcol, condop, condval, end], axis=1)


@partial(jax.jit, static_argnames=("op_seq_len", "n_agg", "n_cond"))
def nl2sql_forward(kp, questions, columns, *, op_seq_len, n_agg, n_cond):
    # ---------------- Encoder ----------------
    emb = kp['embedding']
    # TODO(synk): nn.Dropout randomness not reproducible; evaluated in inference mode (identity).
    q_emb = emb[questions]                                    # (B, Q, E)
    c_emb = emb[columns]                                      # (B, C, Wc, E)
    B, Q, E = q_emb.shape
    C, Wc = c_emb.shape[1], c_emb.shape[2]
    H2 = kp['enc1']['whh'].shape[0]                           # 2H (bi-LSTM repr dim)

    # level-1: question + column bi-LSTMs share weights -> one fused kernel
    xq = jnp.transpose(q_emb, (1, 0, 2))                                # (Q, B, E)
    xc = jnp.transpose(c_emb.reshape(B * C, Wc, E), (1, 0, 2))          # (Wc, B*C, E)
    x_all = jnp.concatenate([_cat_rev(xq), _cat_rev(xc)], axis=0)       # (Q*B + Wc*B*C, 2E)
    out_q1, out_c1 = pl.pallas_call(
        _enc_level1_kernel,
        out_shape=(jax.ShapeDtypeStruct((Q, B, H2), jnp.float32),
                   jax.ShapeDtypeStruct((Wc, B * C, H2), jnp.float32)),
    )(x_all, kp['enc1']['wih'], kp['enc1']['whh'], kp['enc1']['b'])
    questions_output = jnp.transpose(out_q1, (1, 0, 2))                 # (B, Q, 2H)
    columns_output = out_c1[-1].reshape(B, C, H2)                       # (B, C, 2H)

    # cross attention: tiny bmm, left to XLA so it fuses with the concats below.
    qc = jnp.einsum('bqh,bch->bqc', questions_output, columns_output)   # (B, Q, C)
    cq = jnp.transpose(qc, (0, 2, 1))                                   # (B, C, Q)
    q_cat = jnp.concatenate([questions_output, qc], axis=2)             # (B, Q, 2H+C)
    c_cat = jnp.concatenate([columns_output, cq], axis=2)               # (B, C, 2H+Q)

    # level-2: attended question + attended column encoders -> one fused kernel
    out_q2, out_c2 = pl.pallas_call(
        _enc_level2_kernel,
        out_shape=(jax.ShapeDtypeStruct((Q, B, H2), jnp.float32),
                   jax.ShapeDtypeStruct((C, B, H2), jnp.float32)),
    )(_cat_rev(jnp.transpose(q_cat, (1, 0, 2))),
      _cat_rev(jnp.transpose(c_cat, (1, 0, 2))),
      kp['enc2q']['wih'], kp['enc2q']['whh'], kp['enc2q']['b'],
      kp['enc2c']['wih'], kp['enc2c']['whh'], kp['enc2c']['b'])
    questions_encoded = out_q2[-1]                                      # (B, 2H)
    questions_output2 = jnp.transpose(out_q2, (1, 0, 2))                # (B, Q, 2H)
    columns_output2 = jnp.transpose(out_c2, (1, 0, 2))                  # (B, C, 2H)

    # ---------------- Decoder ----------------
    am = build_action_matrix(kp['action_embedding'], columns_output2,
                             questions_output2, H2, n_agg, n_cond)      # (B, n_act, A+2H)
    n_act = am.shape[1]

    # TODO(synk): teacher-forcing coin flip (random.random) resolved host-side; ratio=0 -> greedy path.
    out2d = pl.pallas_call(
        _decoder_kernel,
        out_shape=jax.ShapeDtypeStruct((B, op_seq_len * n_act), jnp.float32),
    )(questions_encoded, am, kp['dec']['a0'],
      kp['dec']['wih_pa'], kp['dec']['wih_qe'], kp['dec']['whh'],
      kp['dec']['b'], kp['dec']['wbil'], kp['dec']['bbil'])
    # row-major split of the last dim: free (no data movement)
    return out2d.reshape(B, op_seq_len, n_act)                          # (B, op_seq_len, n_act)


# ----------------------------- parameter init -----------------------------

def make_lstm_params(key, in_dim, H, bidirectional=True):
    k = 1.0 / math.sqrt(H)
    ks = jax.random.split(key, 8)

    def u(kk, shape):
        return jax.random.uniform(kk, shape, jnp.float32, -k, k)

    p = {
        'wih_f': u(ks[0], (in_dim, 4 * H)),
        'whh_f': u(ks[1], (H, 4 * H)),
        'b_f': u(ks[2], (1, 4 * H)) + u(ks[3], (1, 4 * H)),   # b_ih + b_hh
    }
    if bidirectional:
        p.update({
            'wih_b': u(ks[4], (in_dim, 4 * H)),
            'whh_b': u(ks[5], (H, 4 * H)),
            'b_b': u(ks[6], (1, 4 * H)) + u(ks[7], (1, 4 * H)),
        })
    return p


if __name__ == "__main__":
    # ---- config (small, consistent with the module) ----
    B = 2                 # batch
    VOCAB, E = 50, 16     # word embedding
    Q = 8                 # max_words_per_question
    C = 6                 # max_columns_per_table
    Wc = 4                # words per column
    He = 16               # encoder n_lstm_cells (bidirectional -> repr_dim = 32)
    Hd = 24               # decoder n_lstm_cells (unidirectional, 1 layer)
    A = 8                 # action_embedding_dim
    n_agg, n_cond, n_states_list = 5, 3, 7
    OP_SEQ_LEN = 5
    R = 2 * He
    n_states = n_states_list + n_cond + n_agg - 2            # 13
    F = R + A                                                # decoder feature_dim = 40

    key = jax.random.PRNGKey(0)
    keys = jax.random.split(key, 12)

    params = {
        'embedding': jax.random.normal(keys[0], (VOCAB, E), jnp.float32) * 0.1,
        'enc_shared': make_lstm_params(keys[1], E, He, bidirectional=True),
        'enc_attn_q': make_lstm_params(keys[2], 2 * He + C, He, bidirectional=True),
        'enc_attn_c': make_lstm_params(keys[3], 2 * He + Q, He, bidirectional=True),
        'action_embedding': jax.random.normal(keys[4], (n_states, A), jnp.float32) * 0.1,
        'dec': make_lstm_params(keys[5], F, Hd, bidirectional=False),
        'bilinear_w': jax.random.uniform(keys[6], (Hd, F), jnp.float32,
                                         -1.0 / math.sqrt(Hd), 1.0 / math.sqrt(Hd)),
        'bilinear_b': jax.random.uniform(keys[7], (1, 1), jnp.float32,
                                         -1.0 / math.sqrt(Hd), 1.0 / math.sqrt(Hd)),
    }

    # one-time weight layout prep (fused/interleaved/padded layouts), outside jit
    kp = prepare_kernel_params(params)

    questions = jax.random.randint(keys[8], (B, Q), 0, VOCAB)
    columns = jax.random.randint(keys[9], (B, C, Wc), 0, VOCAB)

    out = nl2sql_forward(kp, questions, columns,
                         op_seq_len=OP_SEQ_LEN, n_agg=n_agg, n_cond=n_cond)
    out = jax.block_until_ready(out)

    n_actions = 1 + n_agg + C + C + n_cond + Q + 1            # 30
    assert out.shape == (B, OP_SEQ_LEN, n_actions), out.shape
    assert bool(jnp.all(jnp.isfinite(out)))
    print("KERNEL_OK")
</pallas_src>

<mosaic_0001>
module attributes {stable_mosaic.version = 11 : i64} {
  func.func @_enc_level1_kernel(%arg0: memref<64x32xf32, #tpu.memory_space<vmem>>, %arg1: memref<32x128xf32, #tpu.memory_space<vmem>>, %arg2: memref<32x128xf32, #tpu.memory_space<vmem>>, %arg3: memref<1x128xf32, #tpu.memory_space<vmem>>, %arg4: memref<8x2x32xf32, #tpu.memory_space<vmem>>, %arg5: memref<4x12x32xf32, #tpu.memory_space<vmem>>) attributes {dimension_semantics = [], scalar_prefetch = 0 : i64, scratch_operands = 0 : i64, tpu.core_type = #tpu.core_type<tc>} {
    %c0 = arith.constant 0 : index
    %c0_0 = arith.constant 0 : index
    %0 = vector.load %arg0[%c0, %c0_0] : memref<64x32xf32, #tpu.memory_space<vmem>>, vector<64x32xf32>
    %c0_1 = arith.constant 0 : index
    %c0_2 = arith.constant 0 : index
    %1 = vector.load %arg1[%c0_1, %c0_2] : memref<32x128xf32, #tpu.memory_space<vmem>>, vector<32x128xf32>
    %cst = arith.constant dense<0.000000e+00> : vector<64x128xf32>
    %2 = tpu.matmul %0, %1, %cst {dimension_numbers = #tpu.dot_dimension_numbers<[1], [0], [0], [1], [0, 0, 1, 1], [], []>} : vector<64x32xf32>, vector<32x128xf32>, vector<64x128xf32> -> vector<64x128xf32>
    %c0_3 = arith.constant 0 : index
    %c0_4 = arith.constant 0 : index
    %3 = vector.load %arg3[%c0_3, %c0_4] : memref<1x128xf32, #tpu.memory_space<vmem>>, vector<1x128xf32>
    %4 = vector.broadcast %3 : vector<1x128xf32> to vector<64x128xf32>
    %5 = arith.addf %2, %4 : vector<64x128xf32>
    %c0_5 = arith.constant 0 : index
    %c0_6 = arith.constant 0 : index
    %6 = vector.load %arg2[%c0_5, %c0_6] : memref<32x128xf32, #tpu.memory_space<vmem>>, vector<32x128xf32>
    %7 = vector.extract_strided_slice %5 {offsets = [0, 0], sizes = [16, 128], strides = [1, 1]} : vector<64x128xf32> to vector<16x128xf32>
    %cst_7 = arith.constant 0.000000e+00 : f32
    %8 = vector.broadcast %cst_7 : f32 to vector<2x32xf32>
    %cst_8 = arith.constant 0.000000e+00 : f32
    %9 = vector.broadcast %cst_8 : f32 to vector<2x32xf32>
    %10 = vector.extract_strided_slice %7 {offsets = [0, 0], sizes = [2, 128], strides = [1, 1]} : vector<16x128xf32> to vector<2x128xf32>
    %cst_9 = arith.constant dense<0.000000e+00> : vector<2x128xf32>
    %11 = tpu.matmul %8, %6, %cst_9 {dimension_numbers = #tpu.dot_dimension_numbers<[1], [0], [0], [1], [0, 0, 1, 1], [], []>} : vector<2x32xf32>, vector<32x128xf32>, vector<2x128xf32> -> vector<2x128xf32>
    %12 = arith.addf %10, %11 : vector<2x128xf32>
    %13 = vector.extract_strided_slice %12 {offsets = [0, 0], sizes = [2, 32], strides = [1, 1]} : vector<2x128xf32> to vector<2x32xf32>
    %14 = arith.negf %13 : vector<2x32xf32>
    %15 = math.exp %14 : vector<2x32xf32>
    %cst_10 = arith.constant 1.000000e+00 : f32
    %16 = vector.broadcast %cst_10 : f32 to vector<2x32xf32>
    %17 = arith.addf %16, %15 : vector<2x32xf32>
    %18 = arith.divf %16, %17 : vector<2x32xf32>
    %19 = vector.extract_strided_slice %12 {offsets = [0, 32], sizes = [2, 32], strides = [1, 1]} : vector<2x128xf32> to vector<2x32xf32>
    %20 = arith.negf %19 : vector<2x32xf32>
    %21 = math.exp %20 : vector<2x32xf32>
    %cst_11 = arith.constant 1.000000e+00 : f32
    %22 = vector.broadcast %cst_11 : f32 to vector<2x32xf32>
    %23 = arith.addf %22, %21 : vector<2x32xf32>
    %24 = arith.divf %22, %23 : vector<2x32xf32>
    %25 = vector.extract_strided_slice %12 {offsets = [0, 64], sizes = [2, 32], strides = [1, 1]} : vector<2x128xf32> to vector<2x32xf32>
    %26 = math.tanh %25 : vector<2x32xf32>
    %27 = vector.extract_strided_slice %12 {offsets = [0, 96], sizes = [2, 32], strides = [1, 1]} : vector<2x128xf32> to vector<2x32xf32>
    %28 = arith.negf %27 : vector<2x32xf32>
    %29 = math.exp %28 : vector<2x32xf32>
    %cst_12 = arith.constant 1.000000e+00 : f32
    %30 = vector.broadcast %cst_12 : f32 to vector<2x32xf32>
    %31 = arith.addf %30, %29 : vector<2x32xf32>
    %32 = arith.divf %30, %31 : vector<2x32xf32>
    %33 = arith.mulf %24, %9 : vector<2x32xf32>
    %34 = arith.mulf %18, %26 : vector<2x32xf32>
    %35 = arith.addf %33, %34 : vector<2x32xf32>
    %36 = math.tanh %35 : vector<2x32xf32>
    %37 = arith.mulf %32, %36 : vector<2x32xf32>
    %38 = vector.extract_strided_slice %7 {offsets = [2, 0], sizes = [2, 128], strides = [1, 1]} : vector<16x128xf32> to vector<2x128xf32>
    %cst_13 = arith.constant dense<0.000000e+00> : vector<2x128xf32>
    %39 = tpu.matmul %37, %6, %cst_13 {dimension_numbers = #tpu.dot_dimension_numbers<[1], [0], [0], [1], [0, 0, 1, 1], [], []>} : vector<2x32xf32>, vector<32x128xf32>, vector<2x128xf32> -> vector<2x128xf32>
    %40 = arith.addf %38, %39 : vector<2x128xf32>
    %41 = vector.extract_strided_slice %40 {offsets = [0, 0], sizes = [2, 32], strides = [1, 1]} : vector<2x128xf32> to vector<2x32xf32>
    %42 = arith.negf %41 : vector<2x32xf32>
    %43 = math.exp %42 : vector<2x32xf32>
    %cst_14 = arith.constant 1.000000e+00 : f32
    %44 = vector.broadcast %cst_14 : f32 to vector<2x32xf32>
    %45 = arith.addf %44, %43 : vector<2x32xf32>
    %46 = arith.divf %44, %45 : vector<2x32xf32>
    %47 = vector.extract_strided_slice %40 {offsets = [0, 32], sizes = [2, 32], strides = [1, 1]} : vector<2x128xf32> to vector<2x32xf32>
    %48 = arith.negf %47 : vector<2x32xf32>
    %49 = math.exp %48 : vector<2x32xf32>
    %cst_15 = arith.constant 1.000000e+00 : f32
    %50 = vector.broadcast %cst_15 : f32 to vector<2x32xf32>
    %51 = arith.addf %50, %49 : vector<2x32xf32>
    %52 = arith.divf %50, %51 : vector<2x32xf32>
    %53 = vector.extract_strided_slice %40 {offsets = [0, 64], sizes = [2, 32], strides = [1, 1]} : vector<2x128xf32> to vector<2x32xf32>
    %54 = math.tanh %53 : vector<2x32xf32>
    %55 = vector.extract_strided_slice %40 {offsets = [0, 96], sizes = [2, 32], strides = [1, 1]} : vector<2x128xf32> to vector<2x32xf32>
    %56 = arith.negf %55 : vector<2x32xf32>
    %57 = math.exp %56 : vector<2x32xf32>
    %cst_16 = arith.constant 1.000000e+00 : f32
    %58 = vector.broadcast %cst_16 : f32 to vector<2x32xf32>
    %59 = arith.addf %58, %57 : vector<2x32xf32>
    %60 = arith.divf %58, %59 : vector<2x32xf32>
    %61 = arith.mulf %52, %35 : vector<2x32xf32>
    %62 = arith.mulf %46, %54 : vector<2x32xf32>
    %63 = arith.addf %61, %62 : vector<2x32xf32>
    %64 = math.tanh %63 : vector<2x32xf32>
    %65 = arith.mulf %60, %64 : vector<2x32xf32>
    %66 = vector.extract_strided_slice %7 {offsets = [4, 0], sizes = [2, 128], strides = [1, 1]} : vector<16x128xf32> to vector<2x128xf32>
    %cst_17 = arith.constant dense<0.000000e+00> : vector<2x128xf32>
    %67 = tpu.matmul %65, %6, %cst_17 {dimension_numbers = #tpu.dot_dimension_numbers<[1], [0], [0], [1], [0, 0, 1, 1], [], []>} : vector<2x32xf32>, vector<32x128xf32>, vector<2x128xf32> -> vector<2x128xf32>
    %68 = arith.addf %66, %67 : vector<2x128xf32>
    %69 = vector.extract_strided_slice %68 {offsets = [0, 0], sizes = [2, 32], strides = [1, 1]} : vector<2x128xf32> to vector<2x32xf32>
    %70 = arith.negf %69 : vector<2x32xf32>
    %71 = math.exp %70 : vector<2x32xf32>
    %cst_18 = arith.constant 1.000000e+00 : f32
    %72 = vector.broadcast %cst_18 : f32 to vector<2x32xf32>
    %73 = arith.addf %72, %71 : vector<2x32xf32>
    %74 = arith.divf %72, %73 : vector<2x32xf32>
    %75 = vector.extract_strided_slice %68 {offsets = [0, 32], sizes = [2, 32], strides = [1, 1]} : vector<2x128xf32> to vector<2x32xf32>
    %76 = arith.negf %75 : vector<2x32xf32>
    %77 = math.exp %76 : vector<2x32xf32>
    %cst_19 = arith.constant 1.000000e+00 : f32
    %78 = vector.broadcast %cst_19 : f32 to vector<2x32xf32>
    %79 = arith.addf %78, %77 : vector<2x32xf32>
    %80 = arith.divf %78, %79 : vector<2x32xf32>
    %81 = vector.extract_strided_slice %68 {offsets = [0, 64], sizes = [2, 32], strides = [1, 1]} : vector<2x128xf32> to vector<2x32xf32>
    %82 = math.tanh %81 : vector<2x32xf32>
    %83 = vector.extract_strided_slice %68 {offsets = [0, 96], sizes = [2, 32], strides = [1, 1]} : vector<2x128xf32> to vector<2x32xf32>
    %84 = arith.negf %83 : vector<2x32xf32>
    %85 = math.exp %84 : vector<2x32xf32>
    %cst_20 = arith.constant 1.000000e+00 : f32
    %86 = vector.broadcast %cst_20 : f32 to vector<2x32xf32>
    %87 = arith.addf %86, %85 : vector<2x32xf32>
    %88 = arith.divf %86, %87 : vector<2x32xf32>
    %89 = arith.mulf %80, %63 : vector<2x32xf32>
    %90 = arith.mulf %74, %82 : vector<2x32xf32>
    %91 = arith.addf %89, %90 : vector<2x32xf32>
    %92 = math.tanh %91 : vector<2x32xf32>
    %93 = arith.mulf %88, %92 : vector<2x32xf32>
    %94 = vector.extract_strided_slice %7 {offsets = [6, 0], sizes = [2, 128], strides = [1, 1]} : vector<16x128xf32> to vector<2x128xf32>
    %cst_21 = arith.constant dense<0.000000e+00> : vector<2x128xf32>
    %95 = tpu.matmul %93, %6, %cst_21 {dimension_numbers = #tpu.dot_dimension_numbers<[1], [0], [0], [1], [0, 0, 1, 1], [], []>} : vector<2x32xf32>, vector<32x128xf32>, vector<2x128xf32> -> vector<2x128xf32>
    %96 = arith.addf %94, %95 : vector<2x128xf32>
    %97 = vector.extract_strided_slice %96 {offsets = [0, 0], sizes = [2, 32], strides = [1, 1]} : vector<2x128xf32> to vector<2x32xf32>
    %98 = arith.negf %97 : vector<2x32xf32>
    %99 = math.exp %98 : vector<2x32xf32>
    %cst_22 = arith.constant 1.000000e+00 : f32
    %100 = vector.broadcast %cst_22 : f32 to vector<2x32xf32>
    %101 = arith.addf %100, %99 : vector<2x32xf32>
    %102 = arith.divf %100, %101 : vector<2x32xf32>
    %103 = vector.extract_strided_slice %96 {offsets = [0, 32], sizes = [2, 32], strides = [1, 1]} : vector<2x128xf32> to vector<2x32xf32>
    %104 = arith.negf %103 : vector<2x32xf32>
    %105 = math.exp %104 : vector<2x32xf32>
    %cst_23 = arith.constant 1.000000e+00 : f32
    %106 = vector.broadcast %cst_23 : f32 to vector<2x32xf32>
    %107 = arith.addf %106, %105 : vector<2x32xf32>
    %108 = arith.divf %106, %107 : vector<2x32xf32>
    %109 = vector.extract_strided_slice %96 {offsets = [0, 64], sizes = [2, 32], strides = [1, 1]} : vector<2x128xf32> to vector<2x32xf32>
    %110 = math.tanh %109 : vector<2x32xf32>
    %111 = vector.extract_strided_slice %96 {offsets = [0, 96], sizes = [2, 32], strides = [1, 1]} : vector<2x128xf32> to vector<2x32xf32>
    %112 = arith.negf %111 : vector<2x32xf32>
    %113 = math.exp %112 : vector<2x32xf32>
    %cst_24 = arith.constant 1.000000e+00 : f32
    %114 = vector.broadcast %cst_24 : f32 to vector<2x32xf32>
    %115 = arith.addf %114, %113 : vector<2x32xf32>
    %116 = arith.divf %114, %115 : vector<2x32xf32>
    %117 = arith.mulf %108, %91 : vector<2x32xf32>
    %118 = arith.mulf %102, %110 : vector<2x32xf32>
    %119 = arith.addf %117, %118 : vector<2x32xf32>
    %120 = math.tanh %119 : vector<2x32xf32>
    %121 = arith.mulf %116, %120 : vector<2x32xf32>
    %122 = vector.extract_strided_slice %7 {offsets = [8, 0], sizes = [2, 128], strides = [1, 1]} : vector<16x128xf32> to vector<2x128xf32>
    %cst_25 = arith.constant dense<0.000000e+00> : vector<2x128xf32>
    %123 = tpu.matmul %121, %6, %cst_25 {dimension_numbers = #tpu.dot_dimension_numbers<[1], [0], [0], [1], [0, 0, 1, 1], [], []>} : vector<2x32xf32>, vector<32x128xf32>, vector<2x128xf32> -> vector<2x128xf32>
    %124 = arith.addf %122, %123 : vector<2x128xf32>
    %125 = vector.extract_strided_slice %124 {offsets = [0, 0], sizes = [2, 32], strides = [1, 1]} : vector<2x128xf32> to vector<2x32xf32>
    %126 = arith.negf %125 : vector<2x32xf32>
    %127 = math.exp %126 : vector<2x32xf32>
    %cst_26 = arith.constant 1.000000e+00 : f32
    %128 = vector.broadcast %cst_26 : f32 to vector<2x32xf32>
    %129 = arith.addf %128, %127 : vector<2x32xf32>
    %130 = arith.divf %128, %129 : vector<2x32xf32>
    %131 = vector.extract_strided_slice %124 {offsets = [0, 32], sizes = [2, 32], strides = [1, 1]} : vector<2x128xf32> to vector<2x32xf32>
    %132 = arith.negf %131 : vector<2x32xf32>
    %133 = math.exp %132 : vector<2x32xf32>
    %cst_27 = arith.constant 1.000000e+00 : f32
    %134 = vector.broadcast %cst_27 : f32 to vector<2x32xf32>
    %135 = arith.addf %134, %133 : vector<2x32xf32>
    %136 = arith.divf %134, %135 : vector<2x32xf32>
    %137 = vector.extract_strided_slice %124 {offsets = [0, 64], sizes = [2, 32], strides = [1, 1]} : vector<2x128xf32> to vector<2x32xf32>
    %138 = math.tanh %137 : vector<2x32xf32>
    %139 = vector.extract_strided_slice %124 {offsets = [0, 96], sizes = [2, 32], strides = [1, 1]} : vector<2x128xf32> to vector<2x32xf32>
    %140 = arith.negf %139 : vector<2x32xf32>
    %141 = math.exp %140 : vector<2x32xf32>
    %cst_28 = arith.constant 1.000000e+00 : f32
    %142 = vector.broadcast %cst_28 : f32 to vector<2x32xf32>
    %143 = arith.addf %142, %141 : vector<2x32xf32>
    %144 = arith.divf %142, %143 : vector<2x32xf32>
    %145 = arith.mulf %136, %119 : vector<2x32xf32>
    %146 = arith.mulf %130, %138 : vector<2x32xf32>
    %147 = arith.addf %145, %146 : vector<2x32xf32>
    %148 = math.tanh %147 : vector<2x32xf32>
    %149 = arith.mulf %144, %148 : vector<2x32xf32>
    %150 = vector.extract_strided_slice %7 {offsets = [10, 0], sizes = [2, 128], strides = [1, 1]} : vector<16x128xf32> to vector<2x128xf32>
    %cst_29 = arith.constant dense<0.000000e+00> : vector<2x128xf32>
    %151 = tpu.matmul %149, %6, %cst_29 {dimension_numbers = #tpu.dot_dimension_numbers<[1], [0], [0], [1], [0, 0, 1, 1], [], []>} : vector<2x32xf32>, vector<32x128xf32>, vector<2x128xf32> -> vector<2x128xf32>
    %152 = arith.addf %150, %151 : vector<2x128xf32>
    %153 = vector.extract_strided_slice %152 {offsets = [0, 0], sizes = [2, 32], strides = [1, 1]} : vector<2x128xf32> to vector<2x32xf32>
    %154 = arith.negf %153 : vector<2x32xf32>
    %155 = math.exp %154 : vector<2x32xf32>
    %cst_30 = arith.constant 1.000000e+00 : f32
    %156 = vector.broadcast %cst_30 : f32 to vector<2x32xf32>
    %157 = arith.addf %156, %155 : vector<2x32xf32>
    %158 = arith.divf %156, %157 : vector<2x32xf32>
    %159 = vector.extract_strided_slice %152 {offsets = [0, 32], sizes = [2, 32], strides = [1, 1]} : vector<2x128xf32> to vector<2x32xf32>
    %160 = arith.negf %159 : vector<2x32xf32>
    %161 = math.exp %160 : vector<2x32xf32>
    %cst_31 = arith.constant 1.000000e+00 : f32
    %162 = vector.broadcast %cst_31 : f32 to vector<2x32xf32>
    %163 = arith.addf %162, %161 : vector<2x32xf32>
    %164 = arith.divf %162, %163 : vector<2x32xf32>
    %165 = vector.extract_strided_slice %152 {offsets = [0, 64], sizes = [2, 32], strides = [1, 1]} : vector<2x128xf32> to vector<2x32xf32>
    %166 = math.tanh %165 : vector<2x32xf32>
    %167 = vector.extract_strided_slice %152 {offsets = [0, 96], sizes = [2, 32], strides = [1, 1]} : vector<2x128xf32> to vector<2x32xf32>
    %168 = arith.negf %167 : vector<2x32xf32>
    %169 = math.exp %168 : vector<2x32xf32>
    %cst_32 = arith.constant 1.000000e+00 : f32
    %170 = vector.broadcast %cst_32 : f32 to vector<2x32xf32>
    %171 = arith.addf %170, %169 : vector<2x32xf32>
    %172 = arith.divf %170, %171 : vector<2x32xf32>
    %173 = arith.mulf %164, %147 : vector<2x32xf32>
    %174 = arith.mulf %158, %166 : vector<2x32xf32>
    %175 = arith.addf %173, %174 : vector<2x32xf32>
    %176 = math.tanh %175 : vector<2x32xf32>
    %177 = arith.mulf %172, %176 : vector<2x32xf32>
    %178 = vector.extract_strided_slice %7 {offsets = [12, 0], sizes = [2, 128], strides = [1, 1]} : vector<16x128xf32> to vector<2x128xf32>
    %cst_33 = arith.constant dense<0.000000e+00> : vector<2x128xf32>
    %179 = tpu.matmul %177, %6, %cst_33 {dimension_numbers = #tpu.dot_dimension_numbers<[1], [0], [0], [1], [0, 0, 1, 1], [], []>} : vector<2x32xf32>, vector<32x128xf32>, vector<2x128xf32> -> vector<2x128xf32>
    %180 = arith.addf %178, %179 : vector<2x128xf32>
    %181 = vector.extract_strided_slice %180 {offsets = [0, 0], sizes = [2, 32], strides = [1, 1]} : vector<2x128xf32> to vector<2x32xf32>
    %182 = arith.negf %181 : vector<2x32xf32>
    %183 = math.exp %182 : vector<2x32xf32>
    %cst_34 = arith.constant 1.000000e+00 : f32
    %184 = vector.broadcast %cst_34 : f32 to vector<2x32xf32>
    %185 = arith.addf %184, %183 : vector<2x32xf32>
    %186 = arith.divf %184, %185 : vector<2x32xf32>
    %187 = vector.extract_strided_slice %180 {offsets = [0, 32], sizes = [2, 32], strides = [1, 1]} : vector<2x128xf32> to vector<2x32xf32>
    %188 = arith.negf %187 : vector<2x32xf32>
    %189 = math.exp %188 : vector<2x32xf32>
    %cst_35 = arith.constant 1.000000e+00 : f32
    %190 = vector.broadcast %cst_35 : f32 to vector<2x32xf32>
    %191 = arith.addf %190, %189 : vector<2x32xf32>
    %192 = arith.divf %190, %191 : vector<2x32xf32>
    %193 = vector.extract_strided_slice %180 {offsets = [0, 64], sizes = [2, 32], strides = [1, 1]} : vector<2x128xf32> to vector<2x32xf32>
    %194 = math.tanh %193 : vector<2x32xf32>
    %195 = vector.extract_strided_slice %180 {offsets = [0, 96], sizes = [2, 32], strides = [1, 1]} : vector<2x128xf32> to vector<2x32xf32>
    %196 = arith.negf %195 : vector<2x32xf32>
    %197 = math.exp %196 : vector<2x32xf32>
    %cst_36 = arith.constant 1.000000e+00 : f32
    %198 = vector.broadcast %cst_36 : f32 to vector<2x32xf32>
    %199 = arith.addf %198, %197 : vector<2x32xf32>
    %200 = arith.divf %198, %199 : vector<2x32xf32>
    %201 = arith.mulf %192, %175 : vector<2x32xf32>
    %202 = arith.mulf %186, %194 : vector<2x32xf32>
    %203 = arith.addf %201, %202 : vector<2x32xf32>
    %204 = math.tanh %203 : vector<2x32xf32>
    %205 = arith.mulf %200, %204 : vector<2x32xf32>
    %206 = vector.extract_strided_slice %7 {offsets = [14, 0], sizes = [2, 128], strides = [1, 1]} : vector<16x128xf32> to vector<2x128xf32>
    %cst_37 = arith.constant dense<0.000000e+00> : vector<2x128xf32>
    %207 = tpu.matmul %205, %6, %cst_37 {dimension_numbers = #tpu.dot_dimension_numbers<[1], [0], [0], [1], [0, 0, 1, 1], [], []>} : vector<2x32xf32>, vector<32x128xf32>, vector<2x128xf32> -> vector<2x128xf32>
    %208 = arith.addf %206, %207 : vector<2x128xf32>
    %209 = vector.extract_strided_slice %208 {offsets = [0, 0], sizes = [2, 32], strides = [1, 1]} : vector<2x128xf32> to vector<2x32xf32>
    %210 = arith.negf %209 : vector<2x32xf32>
    %211 = math.exp %210 : vector<2x32xf32>
    %cst_38 = arith.constant 1.000000e+00 : f32
    %212 = vector.broadcast %cst_38 : f32 to vector<2x32xf32>
    %213 = arith.addf %212, %211 : vector<2x32xf32>
    %214 = arith.divf %212, %213 : vector<2x32xf32>
    %215 = vector.extract_strided_slice %208 {offsets = [0, 32], sizes = [2, 32], strides = [1, 1]} : vector<2x128xf32> to vector<2x32xf32>
    %216 = arith.negf %215 : vector<2x32xf32>
    %217 = math.exp %216 : vector<2x32xf32>
    %cst_39 = arith.constant 1.000000e+00 : f32
    %218 = vector.broadcast %cst_39 : f32 to vector<2x32xf32>
    %219 = arith.addf %218, %217 : vector<2x32xf32>
    %220 = arith.divf %218, %219 : vector<2x32xf32>
    %221 = vector.extract_strided_slice %208 {offsets = [0, 64], sizes = [2, 32], strides = [1, 1]} : vector<2x128xf32> to vector<2x32xf32>
    %222 = math.tanh %221 : vector<2x32xf32>
    %223 = vector.extract_strided_slice %208 {offsets = [0, 96], sizes = [2, 32], strides = [1, 1]} : vector<2x128xf32> to vector<2x32xf32>
    %224 = arith.negf %223 : vector<2x32xf32>
    %225 = math.exp %224 : vector<2x32xf32>
    %cst_40 = arith.constant 1.000000e+00 : f32
    %226 = vector.broadcast %cst_40 : f32 to vector<2x32xf32>
    %227 = arith.addf %226, %225 : vector<2x32xf32>
    %228 = arith.divf %226, %227 : vector<2x32xf32>
    %229 = arith.mulf %220, %203 : vector<2x32xf32>
    %230 = arith.mulf %214, %222 : vector<2x32xf32>
    %231 = arith.addf %229, %230 : vector<2x32xf32>
    %232 = math.tanh %231 : vector<2x32xf32>
    %233 = arith.mulf %228, %232 : vector<2x32xf32>
    %234 = vector.extract_strided_slice %37 {offsets = [0, 0], sizes = [2, 16], strides = [1, 1]} : vector<2x32xf32> to vector<2x16xf32>
    %235 = vector.extract_strided_slice %233 {offsets = [0, 16], sizes = [2, 16], strides = [1, 1]} : vector<2x32xf32> to vector<2x16xf32>
    %236 = tpu.concatenate %234, %235 in 1 : vector<2x16xf32>, vector<2x16xf32> -> vector<2x32xf32>
    %c0_41 = arith.constant 0 : index
    %c0_42 = arith.constant 0 : index
    %c0_43 = arith.constant 0 : index
    %237 = vector.load %arg4[%c0_41, %c0_42, %c0_43] : memref<8x2x32xf32, #tpu.memory_space<vmem>>, vector<1x2x32xf32>
    %238 = vector.shape_cast %237 : vector<1x2x32xf32> to vector<2x32xf32>
    %239 = vector.shape_cast %236 : vector<2x32xf32> to vector<1x2x32xf32>
    tpu.vector_store %arg4[%c0_41, %c0_42, %c0_43], %239 {strides = array<i32>} : memref<8x2x32xf32, #tpu.memory_space<vmem>>, vector<1x2x32xf32>,
    %240 = vector.extract_strided_slice %65 {offsets = [0, 0], sizes = [2, 16], strides = [1, 1]} : vector<2x32xf32> to vector<2x16xf32>
    %241 = vector.extract_strided_slice %205 {offsets = [0, 16], sizes = [2, 16], strides = [1, 1]} : vector<2x32xf32> to vector<2x16xf32>
    %242 = tpu.concatenate %240, %241 in 1 : vector<2x16xf32>, vector<2x16xf32> -> vector<2x32xf32>
    %c1 = arith.constant 1 : index
    %c0_44 = arith.constant 0 : index
    %c0_45 = arith.constant 0 : index
    %243 = vector.load %arg4[%c1, %c0_44, %c0_45] : memref<8x2x32xf32, #tpu.memory_space<vmem>>, vector<1x2x32xf32>
    %244 = vector.shape_cast %243 : vector<1x2x32xf32> to vector<2x32xf32>
    %245 = vector.shape_cast %242 : vector<2x32xf32> to vector<1x2x32xf32>
    tpu.vector_store %arg4[%c1, %c0_44, %c0_45], %245 {strides = array<i32>} : memref<8x2x32xf32, #tpu.memory_space<vmem>>, vector<1x2x32xf32>,
    %246 = vector.extract_strided_slice %93 {offsets = [0, 0], sizes = [2, 16], strides = [1, 1]} : vector<2x32xf32> to vector<2x16xf32>
    %247 = vector.extract_strided_slice %177 {offsets = [0, 16], sizes = [2, 16], strides = [1, 1]} : vector<2x32xf32> to vector<2x16xf32>
    %248 = tpu.concatenate %246, %247 in 1 : vector<2x16xf32>, vector<2x16xf32> -> vector<2x32xf32>
    %c2 = arith.constant 2 : index
    %c0_46 = arith.constant 0 : index
    %c0_47 = arith.constant 0 : index
    %249 = vector.load %arg4[%c2, %c0_46, %c0_47] : memref<8x2x32xf32, #tpu.memory_space<vmem>>, vector<1x2x32xf32>
    %250 = vector.shape_cast %249 : vector<1x2x32xf32> to vector<2x32xf32>
    %251 = vector.shape_cast %248 : vector<2x32xf32> to vector<1x2x32xf32>
    tpu.vector_store %arg4[%c2, %c0_46, %c0_47], %251 {strides = array<i32>} : memref<8x2x32xf32, #tpu.memory_space<vmem>>, vector<1x2x32xf32>,
    %252 = vector.extract_strided_slice %121 {offsets = [0, 0], sizes = [2, 16], strides = [1, 1]} : vector<2x32xf32> to vector<2x16xf32>
    %253 = vector.extract_strided_slice %149 {offsets = [0, 16], sizes = [2, 16], strides = [1, 1]} : vector<2x32xf32> to vector<2x16xf32>
    %254 = tpu.concatenate %252, %253 in 1 : vector<2x16xf32>, vector<2x16xf32> -> vector<2x32xf32>
    %c3 = arith.constant 3 : index
    %c0_48 = arith.constant 0 : index
    %c0_49 = arith.constant 0 : index
    %255 = vector.load %arg4[%c3, %c0_48, %c0_49] : memref<8x2x32xf32, #tpu.memory_space<vmem>>, vector<1x2x32xf32>
    %256 = vector.shape_cast %255 : vector<1x2x32xf32> to vector<2x32xf32>
    %257 = vector.shape_cast %254 : vector<2x32xf32> to vector<1x2x32xf32>
    tpu.vector_store %arg4[%c3, %c0_48, %c0_49], %257 {strides = array<i32>} : memref<8x2x32xf32, #tpu.memory_space<vmem>>, vector<1x2x32xf32>,
    %258 = vector.extract_strided_slice %149 {offsets = [0, 0], sizes = [2, 16], strides = [1, 1]} : vector<2x32xf32> to vector<2x16xf32>
    %259 = vector.extract_strided_slice %121 {offsets = [0, 16], sizes = [2, 16], strides = [1, 1]} : vector<2x32xf32> to vector<2x16xf32>
    %260 = tpu.concatenate %258, %259 in 1 : vector<2x16xf32>, vector<2x16xf32> -> vector<2x32xf32>
    %c4 = arith.constant 4 : index
    %c0_50 = arith.constant 0 : index
    %c0_51 = arith.constant 0 : index
    %261 = vector.load %arg4[%c4, %c0_50, %c0_51] : memref<8x2x32xf32, #tpu.memory_space<vmem>>, vector<1x2x32xf32>
    %262 = vector.shape_cast %261 : vector<1x2x32xf32> to vector<2x32xf32>
    %263 = vector.shape_cast %260 : vector<2x32xf32> to vector<1x2x32xf32>
    tpu.vector_store %arg4[%c4, %c0_50, %c0_51], %263 {strides = array<i32>} : memref<8x2x32xf32, #tpu.memory_space<vmem>>, vector<1x2x32xf32>,
    %264 = vector.extract_strided_slice %177 {offsets = [0, 0], sizes = [2, 16], strides = [1, 1]} : vector<2x32xf32> to vector<2x16xf32>
    %265 = vector.extract_strided_slice %93 {offsets = [0, 16], sizes = [2, 16], strides = [1, 1]} : vector<2x32xf32> to vector<2x16xf32>
    %266 = tpu.concatenate %264, %265 in 1 : vector<2x16xf32>, vector<2x16xf32> -> vector<2x32xf32>
    %c5 = arith.constant 5 : index
    %c0_52 = arith.constant 0 : index
    %c0_53 = arith.constant 0 : index
    %267 = vector.load %arg4[%c5, %c0_52, %c0_53] : memref<8x2x32xf32, #tpu.memory_space<vmem>>, vector<1x2x32xf32>
    %268 = vector.shape_cast %267 : vector<1x2x32xf32> to vector<2x32xf32>
    %269 = vector.shape_cast %266 : vector<2x32xf32> to vector<1x2x32xf32>
    tpu.vector_store %arg4[%c5, %c0_52, %c0_53], %269 {strides = array<i32>} : memref<8x2x32xf32, #tpu.memory_space<vmem>>, vector<1x2x32xf32>,
    %270 = vector.extract_strided_slice %205 {offsets = [0, 0], sizes = [2, 16], strides = [1, 1]} : vector<2x32xf32> to vector<2x16xf32>
    %271 = vector.extract_strided_slice %65 {offsets = [0, 16], sizes = [2, 16], strides = [1, 1]} : vector<2x32xf32> to vector<2x16xf32>
    %272 = tpu.concatenate %270, %271 in 1 : vector<2x16xf32>, vector<2x16xf32> -> vector<2x32xf32>
    %c6 = arith.constant 6 : index
    %c0_54 = arith.constant 0 : index
    %c0_55 = arith.constant 0 : index
    %273 = vector.load %arg4[%c6, %c0_54, %c0_55] : memref<8x2x32xf32, #tpu.memory_space<vmem>>, vector<1x2x32xf32>
    %274 = vector.shape_cast %273 : vector<1x2x32xf32> to vector<2x32xf32>
    %275 = vector.shape_cast %272 : vector<2x32xf32> to vector<1x2x32xf32>
    tpu.vector_store %arg4[%c6, %c0_54, %c0_55], %275 {strides = array<i32>} : memref<8x2x32xf32, #tpu.memory_space<vmem>>, vector<1x2x32xf32>,
    %276 = vector.extract_strided_slice %233 {offsets = [0, 0], sizes = [2, 16], strides = [1, 1]} : vector<2x32xf32> to vector<2x16xf32>
    %277 = vector.extract_strided_slice %37 {offsets = [0, 16], sizes = [2, 16], strides = [1, 1]} : vector<2x32xf32> to vector<2x16xf32>
    %278 = tpu.concatenate %276, %277 in 1 : vector<2x16xf32>, vector<2x16xf32> -> vector<2x32xf32>
    %c7 = arith.constant 7 : index
    %c0_56 = arith.constant 0 : index
    %c0_57 = arith.constant 0 : index
    %279 = vector.load %arg4[%c7, %c0_56, %c0_57] : memref<8x2x32xf32, #tpu.memory_space<vmem>>, vector<1x2x32xf32>
    %280 = vector.shape_cast %279 : vector<1x2x32xf32> to vector<2x32xf32>
    %281 = vector.shape_cast %278 : vector<2x32xf32> to vector<1x2x32xf32>
    tpu.vector_store %arg4[%c7, %c0_56, %c0_57], %281 {strides = array<i32>} : memref<8x2x32xf32, #tpu.memory_space<vmem>>, vector<1x2x32xf32>,
    %282 = vector.extract_strided_slice %5 {offsets = [16, 0], sizes = [48, 128], strides = [1, 1]} : vector<64x128xf32> to vector<48x128xf32>
    %cst_58 = arith.constant 0.000000e+00 : f32
    %283 = vector.broadcast %cst_58 : f32 to vector<12x32xf32>
    %cst_59 = arith.constant 0.000000e+00 : f32
    %284 = vector.broadcast %cst_59 : f32 to vector<12x32xf32>
    %285 = vector.extract_strided_slice %282 {offsets = [0, 0], sizes = [12, 128], strides = [1, 1]} : vector<48x128xf32> to vector<12x128xf32>
    %cst_60 = arith.constant dense<0.000000e+00> : vector<12x128xf32>
    %286 = tpu.matmul %283, %6, %cst_60 {dimension_numbers = #tpu.dot_dimension_numbers<[1], [0], [0], [1], [0, 0, 1, 1], [], []>} : vector<12x32xf32>, vector<32x128xf32>, vector<12x128xf32> -> vector<12x128xf32>
    %287 = arith.addf %285, %286 : vector<12x128xf32>
    %288 = vector.extract_strided_slice %287 {offsets = [0, 0], sizes = [12, 32], strides = [1, 1]} : vector<12x128xf32> to vector<12x32xf32>
    %289 = arith.negf %288 : vector<12x32xf32>
    %290 = math.exp %289 : vector<12x32xf32>
    %cst_61 = arith.constant 1.000000e+00 : f32
    %291 = vector.broadcast %cst_61 : f32 to vector<12x32xf32>
    %292 = arith.addf %291, %290 : vector<12x32xf32>
    %293 = arith.divf %291, %292 : vector<12x32xf32>
    %294 = vector.extract_strided_slice %287 {offsets = [0, 32], sizes = [12, 32], strides = [1, 1]} : vector<12x128xf32> to vector<12x32xf32>
    %295 = arith.negf %294 : vector<12x32xf32>
    %296 = math.exp %295 : vector<12x32xf32>
    %cst_62 = arith.constant 1.000000e+00 : f32
    %297 = vector.broadcast %cst_62 : f32 to vector<12x32xf32>
    %298 = arith.addf %297, %296 : vector<12x32xf32>
    %299 = arith.divf %297, %298 : vector<12x32xf32>
    %300 = vector.extract_strided_slice %287 {offsets = [0, 64], sizes = [12, 32], strides = [1, 1]} : vector<12x128xf32> to vector<12x32xf32>
    %301 = math.tanh %300 : vector<12x32xf32>
    %302 = vector.extract_strided_slice %287 {offsets = [0, 96], sizes = [12, 32], strides = [1, 1]} : vector<12x128xf32> to vector<12x32xf32>
    %303 = arith.negf %302 : vector<12x32xf32>
    %304 = math.exp %303 : vector<12x32xf32>
    %cst_63 = arith.constant 1.000000e+00 : f32
    %305 = vector.broadcast %cst_63 : f32 to vector<12x32xf32>
    %306 = arith.addf %305, %304 : vector<12x32xf32>
    %307 = arith.divf %305, %306 : vector<12x32xf32>
    %308 = arith.mulf %299, %284 : vector<12x32xf32>
    %309 = arith.mulf %293, %301 : vector<12x32xf32>
    %310 = arith.addf %308, %309 : vector<12x32xf32>
    %311 = math.tanh %310 : vector<12x32xf32>
    %312 = arith.mulf %307, %311 : vector<12x32xf32>
    %313 = vector.extract_strided_slice %282 {offsets = [12, 0], sizes = [12, 128], strides = [1, 1]} : vector<48x128xf32> to vector<12x128xf32>
    %cst_64 = arith.constant dense<0.000000e+00> : vector<12x128xf32>
    %314 = tpu.matmul %312, %6, %cst_64 {dimension_numbers = #tpu.dot_dimension_numbers<[1], [0], [0], [1], [0, 0, 1, 1], [], []>} : vector<12x32xf32>, vector<32x128xf32>, vector<12x128xf32> -> vector<12x128xf32>
    %315 = arith.addf %313, %314 : vector<12x128xf32>
    %316 = vector.extract_strided_slice %315 {offsets = [0, 0], sizes = [12, 32], strides = [1, 1]} : vector<12x128xf32> to vector<12x32xf32>
    %317 = arith.negf %316 : vector<12x32xf32>
    %318 = math.exp %317 : vector<12x32xf32>
    %cst_65 = arith.constant 1.000000e+00 : f32
    %319 = vector.broadcast %cst_65 : f32 to vector<12x32xf32>
    %320 = arith.addf %319, %318 : vector<12x32xf32>
    %321 = arith.divf %319, %320 : vector<12x32xf32>
    %322 = vector.extract_strided_slice %315 {offsets = [0, 32], sizes = [12, 32], strides = [1, 1]} : vector<12x128xf32> to vector<12x32xf32>
    %323 = arith.negf %322 : vector<12x32xf32>
    %324 = math.exp %323 : vector<12x32xf32>
    %cst_66 = arith.constant 1.000000e+00 : f32
    %325 = vector.broadcast %cst_66 : f32 to vector<12x32xf32>
    %326 = arith.addf %325, %324 : vector<12x32xf32>
    %327 = arith.divf %325, %326 : vector<12x32xf32>
    %328 = vector.extract_strided_slice %315 {offsets = [0, 64], sizes = [12, 32], strides = [1, 1]} : vector<12x128xf32> to vector<12x32xf32>
    %329 = math.tanh %328 : vector<12x32xf32>
    %330 = vector.extract_strided_slice %315 {offsets = [0, 96], sizes = [12, 32], strides = [1, 1]} : vector<12x128xf32> to vector<12x32xf32>
    %331 = arith.negf %330 : vector<12x32xf32>
    %332 = math.exp %331 : vector<12x32xf32>
    %cst_67 = arith.constant 1.000000e+00 : f32
    %333 = vector.broadcast %cst_67 : f32 to vector<12x32xf32>
    %334 = arith.addf %333, %332 : vector<12x32xf32>
    %335 = arith.divf %333, %334 : vector<12x32xf32>
    %336 = arith.mulf %327, %310 : vector<12x32xf32>
    %337 = arith.mulf %321, %329 : vector<12x32xf32>
    %338 = arith.addf %336, %337 : vector<12x32xf32>
    %339 = math.tanh %338 : vector<12x32xf32>
    %340 = arith.mulf %335, %339 : vector<12x32xf32>
    %341 = vector.extract_strided_slice %282 {offsets = [24, 0], sizes = [12, 128], strides = [1, 1]} : vector<48x128xf32> to vector<12x128xf32>
    %cst_68 = arith.constant dense<0.000000e+00> : vector<12x128xf32>
    %342 = tpu.matmul %340, %6, %cst_68 {dimension_numbers = #tpu.dot_dimension_numbers<[1], [0], [0], [1], [0, 0, 1, 1], [], []>} : vector<12x32xf32>, vector<32x128xf32>, vector<12x128xf32> -> vector<12x128xf32>
    %343 = arith.addf %341, %342 : vector<12x128xf32>
    %344 = vector.extract_strided_slice %343 {offsets = [0, 0], sizes = [12, 32], strides = [1, 1]} : vector<12x128xf32> to vector<12x32xf32>
    %345 = arith.negf %344 : vector<12x32xf32>
    %346 = math.exp %345 : vector<12x32xf32>
    %cst_69 = arith.constant 1.000000e+00 : f32
    %347 = vector.broadcast %cst_69 : f32 to vector<12x32xf32>
    %348 = arith.addf %347, %346 : vector<12x32xf32>
    %349 = arith.divf %347, %348 : vector<12x32xf32>
    %350 = vector.extract_strided_slice %343 {offsets = [0, 32], sizes = [12, 32], strides = [1, 1]} : vector<12x128xf32> to vector<12x32xf32>
    %351 = arith.negf %350 : vector<12x32xf32>
    %352 = math.exp %351 : vector<12x32xf32>
    %cst_70 = arith.constant 1.000000e+00 : f32
    %353 = vector.broadcast %cst_70 : f32 to vector<12x32xf32>
    %354 = arith.addf %353, %352 : vector<12x32xf32>
    %355 = arith.divf %353, %354 : vector<12x32xf32>
    %356 = vector.extract_strided_slice %343 {offsets = [0, 64], sizes = [12, 32], strides = [1, 1]} : vector<12x128xf32> to vector<12x32xf32>
    %357 = math.tanh %356 : vector<12x32xf32>
    %358 = vector.extract_strided_slice %343 {offsets = [0, 96], sizes = [12, 32], strides = [1, 1]} : vector<12x128xf32> to vector<12x32xf32>
    %359 = arith.negf %358 : vector<12x32xf32>
    %360 = math.exp %359 : vector<12x32xf32>
    %cst_71 = arith.constant 1.000000e+00 : f32
    %361 = vector.broadcast %cst_71 : f32 to vector<12x32xf32>
    %362 = arith.addf %361, %360 : vector<12x32xf32>
    %363 = arith.divf %361, %362 : vector<12x32xf32>
    %364 = arith.mulf %355, %338 : vector<12x32xf32>
    %365 = arith.mulf %349, %357 : vector<12x32xf32>
    %366 = arith.addf %364, %365 : vector<12x32xf32>
    %367 = math.tanh %366 : vector<12x32xf32>
    %368 = arith.mulf %363, %367 : vector<12x32xf32>
    %369 = vector.extract_strided_slice %282 {offsets = [36, 0], sizes = [12, 128], strides = [1, 1]} : vector<48x128xf32> to vector<12x128xf32>
    %cst_72 = arith.constant dense<0.000000e+00> : vector<12x128xf32>
    %370 = tpu.matmul %368, %6, %cst_72 {dimension_numbers = #tpu.dot_dimension_numbers<[1], [0], [0], [1], [0, 0, 1, 1], [], []>} : vector<12x32xf32>, vector<32x128xf32>, vector<12x128xf32> -> vector<12x128xf32>
    %371 = arith.addf %369, %370 : vector<12x128xf32>
    %372 = vector.extract_strided_slice %371 {offsets = [0, 0], sizes = [12, 32], strides = [1, 1]} : vector<12x128xf32> to vector<12x32xf32>
    %373 = arith.negf %372 : vector<12x32xf32>
    %374 = math.exp %373 : vector<12x32xf32>
    %cst_73 = arith.constant 1.000000e+00 : f32
    %375 = vector.broadcast %cst_73 : f32 to vector<12x32xf32>
    %376 = arith.addf %375, %374 : vector<12x32xf32>
    %377 = arith.divf %375, %376 : vector<12x32xf32>
    %378 = vector.extract_strided_slice %371 {offsets = [0, 32], sizes = [12, 32], strides = [1, 1]} : vector<12x128xf32> to vector<12x32xf32>
    %379 = arith.negf %378 : vector<12x32xf32>
    %380 = math.exp %379 : vector<12x32xf32>
    %cst_74 = arith.constant 1.000000e+00 : f32
    %381 = vector.broadcast %cst_74 : f32 to vector<12x32xf32>
    %382 = arith.addf %381, %380 : vector<12x32xf32>
    %383 = arith.divf %381, %382 : vector<12x32xf32>
    %384 = vector.extract_strided_slice %371 {offsets = [0, 64], sizes = [12, 32], strides = [1, 1]} : vector<12x128xf32> to vector<12x32xf32>
    %385 = math.tanh %384 : vector<12x32xf32>
    %386 = vector.extract_strided_slice %371 {offsets = [0, 96], sizes = [12, 32], strides = [1, 1]} : vector<12x128xf32> to vector<12x32xf32>
    %387 = arith.negf %386 : vector<12x32xf32>
    %388 = math.exp %387 : vector<12x32xf32>
    %cst_75 = arith.constant 1.000000e+00 : f32
    %389 = vector.broadcast %cst_75 : f32 to vector<12x32xf32>
    %390 = arith.addf %389, %388 : vector<12x32xf32>
    %391 = arith.divf %389, %390 : vector<12x32xf32>
    %392 = arith.mulf %383, %366 : vector<12x32xf32>
    %393 = arith.mulf %377, %385 : vector<12x32xf32>
    %394 = arith.addf %392, %393 : vector<12x32xf32>
    %395 = math.tanh %394 : vector<12x32xf32>
    %396 = arith.mulf %391, %395 : vector<12x32xf32>
    %397 = vector.extract_strided_slice %312 {offsets = [0, 0], sizes = [12, 16], strides = [1, 1]} : vector<12x32xf32> to vector<12x16xf32>
    %398 = vector.extract_strided_slice %396 {offsets = [0, 16], sizes = [12, 16], strides = [1, 1]} : vector<12x32xf32> to vector<12x16xf32>
    %399 = tpu.concatenate %397, %398 in 1 : vector<12x16xf32>, vector<12x16xf32> -> vector<12x32xf32>
    %c0_76 = arith.constant 0 : index
    %c0_77 = arith.constant 0 : index
    %c0_78 = arith.constant 0 : index
    %400 = vector.load %arg5[%c0_76, %c0_77, %c0_78] : memref<4x12x32xf32, #tpu.memory_space<vmem>>, vector<1x12x32xf32>
    %401 = vector.shape_cast %400 : vector<1x12x32xf32> to vector<12x32xf32>
    %402 = vector.shape_cast %399 : vector<12x32xf32> to vector<1x12x32xf32>
    tpu.vector_store %arg5[%c0_76, %c0_77, %c0_78], %402 {strides = array<i32>} : memref<4x12x32xf32, #tpu.memory_space<vmem>>, vector<1x12x32xf32>,
    %403 = vector.extract_strided_slice %340 {offsets = [0, 0], sizes = [12, 16], strides = [1, 1]} : vector<12x32xf32> to vector<12x16xf32>
    %404 = vector.extract_strided_slice %368 {offsets = [0, 16], sizes = [12, 16], strides = [1, 1]} : vector<12x32xf32> to vector<12x16xf32>
    %405 = tpu.concatenate %403, %404 in 1 : vector<12x16xf32>, vector<12x16xf32> -> vector<12x32xf32>
    %c1_79 = arith.constant 1 : index
    %c0_80 = arith.constant 0 : index
    %c0_81 = arith.constant 0 : index
    %406 = vector.load %arg5[%c1_79, %c0_80, %c0_81] : memref<4x12x32xf32, #tpu.memory_space<vmem>>, vector<1x12x32xf32>
    %407 = vector.shape_cast %406 : vector<1x12x32xf32> to vector<12x32xf32>
    %408 = vector.shape_cast %405 : vector<12x32xf32> to vector<1x12x32xf32>
    tpu.vector_store %arg5[%c1_79, %c0_80, %c0_81], %408 {strides = array<i32>} : memref<4x12x32xf32, #tpu.memory_space<vmem>>, vector<1x12x32xf32>,
    %409 = vector.extract_strided_slice %368 {offsets = [0, 0], sizes = [12, 16], strides = [1, 1]} : vector<12x32xf32> to vector<12x16xf32>
    %410 = vector.extract_strided_slice %340 {offsets = [0, 16], sizes = [12, 16], strides = [1, 1]} : vector<12x32xf32> to vector<12x16xf32>
    %411 = tpu.concatenate %409, %410 in 1 : vector<12x16xf32>, vector<12x16xf32> -> vector<12x32xf32>
    %c2_82 = arith.constant 2 : index
    %c0_83 = arith.constant 0 : index
    %c0_84 = arith.constant 0 : index
    %412 = vector.load %arg5[%c2_82, %c0_83, %c0_84] : memref<4x12x32xf32, #tpu.memory_space<vmem>>, vector<1x12x32xf32>
    %413 = vector.shape_cast %412 : vector<1x12x32xf32> to vector<12x32xf32>
    %414 = vector.shape_cast %411 : vector<12x32xf32> to vector<1x12x32xf32>
    tpu.vector_store %arg5[%c2_82, %c0_83, %c0_84], %414 {strides = array<i32>} : memref<4x12x32xf32, #tpu.memory_space<vmem>>, vector<1x12x32xf32>,
    %415 = vector.extract_strided_slice %396 {offsets = [0, 0], sizes = [12, 16], strides = [1, 1]} : vector<12x32xf32> to vector<12x16xf32>
    %416 = vector.extract_strided_slice %312 {offsets = [0, 16], sizes = [12, 16], strides = [1, 1]} : vector<12x32xf32> to vector<12x16xf32>
    %417 = tpu.concatenate %415, %416 in 1 : vector<12x16xf32>, vector<12x16xf32> -> vector<12x32xf32>
    %c3_85 = arith.constant 3 : index
    %c0_86 = arith.constant 0 : index
    %c0_87 = arith.constant 0 : index
    %418 = vector.load %arg5[%c3_85, %c0_86, %c0_87] : memref<4x12x32xf32, #tpu.memory_space<vmem>>, vector<1x12x32xf32>
    %419 = vector.shape_cast %418 : vector<1x12x32xf32> to vector<12x32xf32>
    %420 = vector.shape_cast %417 : vector<12x32xf32> to vector<1x12x32xf32>
    tpu.vector_store %arg5[%c3_85, %c0_86, %c0_87], %420 {strides = array<i32>} : memref<4x12x32xf32, #tpu.memory_space<vmem>>, vector<1x12x32xf32>,
    return
  }
}

module attributes {stable_mosaic.version = 11 : i64} {
  func.func @_enc_level2_kernel(%arg0: memref<16x76xf32, #tpu.memory_space<vmem>>, %arg1: memref<12x80xf32, #tpu.memory_space<vmem>>, %arg2: memref<76x128xf32, #tpu.memory_space<vmem>>, %arg3: memref<32x128xf32, #tpu.memory_space<vmem>>, %arg4: memref<1x128xf32, #tpu.memory_space<vmem>>, %arg5: memref<80x128xf32, #tpu.memory_space<vmem>>, %arg6: memref<32x128xf32, #tpu.memory_space<vmem>>, %arg7: memref<1x128xf32, #tpu.memory_space<vmem>>, %arg8: memref<8x2x32xf32, #tpu.memory_space<vmem>>, %arg9: memref<6x2x32xf32, #tpu.memory_space<vmem>>) attributes {dimension_semantics = [], scalar_prefetch = 0 : i64, scratch_operands = 0 : i64, tpu.core_type = #tpu.core_type<tc>} {
    %c0 = arith.constant 0 : index
    %c0_0 = arith.constant 0 : index
    %0 = vector.load %arg0[%c0, %c0_0] : memref<16x76xf32, #tpu.memory_space<vmem>>, vector<16x76xf32>
    %c0_1 = arith.constant 0 : index
    %c0_2 = arith.constant 0 : index
    %1 = vector.load %arg2[%c0_1, %c0_2] : memref<76x128xf32, #tpu.memory_space<vmem>>, vector<76x128xf32>
    %cst = arith.constant dense<0.000000e+00> : vector<16x128xf32>
    %2 = tpu.matmul %0, %1, %cst {dimension_numbers = #tpu.dot_dimension_numbers<[1], [0], [0], [1], [0, 0, 1, 1], [], []>} : vector<16x76xf32>, vector<76x128xf32>, vector<16x128xf32> -> vector<16x128xf32>
    %c0_3 = arith.constant 0 : index
    %c0_4 = arith.constant 0 : index
    %3 = vector.load %arg4[%c0_3, %c0_4] : memref<1x128xf32, #tpu.memory_space<vmem>>, vector<1x128xf32>
    %4 = vector.broadcast %3 : vector<1x128xf32> to vector<16x128xf32>
    %5 = arith.addf %2, %4 : vector<16x128xf32>
    %c0_5 = arith.constant 0 : index
    %c0_6 = arith.constant 0 : index
    %6 = vector.load %arg1[%c0_5, %c0_6] : memref<12x80xf32, #tpu.memory_space<vmem>>, vector<12x80xf32>
    %c0_7 = arith.constant 0 : index
    %c0_8 = arith.constant 0 : index
    %7 = vector.load %arg5[%c0_7, %c0_8] : memref<80x128xf32, #tpu.memory_space<vmem>>, vector<80x128xf32>
    %cst_9 = arith.constant dense<0.000000e+00> : vector<12x128xf32>
    %8 = tpu.matmul %6, %7, %cst_9 {dimension_numbers = #tpu.dot_dimension_numbers<[1], [0], [0], [1], [0, 0, 1, 1], [], []>} : vector<12x80xf32>, vector<80x128xf32>, vector<12x128xf32> -> vector<12x128xf32>
    %c0_10 = arith.constant 0 : index
    %c0_11 = arith.constant 0 : index
    %9 = vector.load %arg7[%c0_10, %c0_11] : memref<1x128xf32, #tpu.memory_space<vmem>>, vector<1x128xf32>
    %10 = vector.broadcast %9 : vector<1x128xf32> to vector<12x128xf32>
    %11 = arith.addf %8, %10 : vector<12x128xf32>
    %c0_12 = arith.constant 0 : index
    %c0_13 = arith.constant 0 : index
    %12 = vector.load %arg3[%c0_12, %c0_13] : memref<32x128xf32, #tpu.memory_space<vmem>>, vector<32x128xf32>
    %cst_14 = arith.constant 0.000000e+00 : f32
    %13 = vector.broadcast %cst_14 : f32 to vector<2x32xf32>
    %cst_15 = arith.constant 0.000000e+00 : f32
    %14 = vector.broadcast %cst_15 : f32 to vector<2x32xf32>
    %15 = vector.extract_strided_slice %5 {offsets = [0, 0], sizes = [2, 128], strides = [1, 1]} : vector<16x128xf32> to vector<2x128xf32>
    %cst_16 = arith.constant dense<0.000000e+00> : vector<2x128xf32>
    %16 = tpu.matmul %13, %12, %cst_16 {dimension_numbers = #tpu.dot_dimension_numbers<[1], [0], [0], [1], [0, 0, 1, 1], [], []>} : vector<2x32xf32>, vector<32x128xf32>, vector<2x128xf32> -> vector<2x128xf32>
    %17 = arith.addf %15, %16 : vector<2x128xf32>
    %18 = vector.extract_strided_slice %17 {offsets = [0, 0], sizes = [2, 32], strides = [1, 1]} : vector<2x128xf32> to vector<2x32xf32>
    %19 = arith.negf %18 : vector<2x32xf32>
    %20 = math.exp %19 : vector<2x32xf32>
    %cst_17 = arith.constant 1.000000e+00 : f32
    %21 = vector.broadcast %cst_17 : f32 to vector<2x32xf32>
    %22 = arith.addf %21, %20 : vector<2x32xf32>
    %23 = arith.divf %21, %22 : vector<2x32xf32>
    %24 = vector.extract_strided_slice %17 {offsets = [0, 32], sizes = [2, 32], strides = [1, 1]} : vector<2x128xf32> to vector<2x32xf32>
    %25 = arith.negf %24 : vector<2x32xf32>
    %26 = math.exp %25 : vector<2x32xf32>
    %cst_18 = arith.constant 1.000000e+00 : f32
    %27 = vector.broadcast %cst_18 : f32 to vector<2x32xf32>
    %28 = arith.addf %27, %26 : vector<2x32xf32>
    %29 = arith.divf %27, %28 : vector<2x32xf32>
    %30 = vector.extract_strided_slice %17 {offsets = [0, 64], sizes = [2, 32], strides = [1, 1]} : vector<2x128xf32> to vector<2x32xf32>
    %31 = math.tanh %30 : vector<2x32xf32>
    %32 = vector.extract_strided_slice %17 {offsets = [0, 96], sizes = [2, 32], strides = [1, 1]} : vector<2x128xf32> to vector<2x32xf32>
    %33 = arith.negf %32 : vector<2x32xf32>
    %34 = math.exp %33 : vector<2x32xf32>
    %cst_19 = arith.constant 1.000000e+00 : f32
    %35 = vector.broadcast %cst_19 : f32 to vector<2x32xf32>
    %36 = arith.addf %35, %34 : vector<2x32xf32>
    %37 = arith.divf %35, %36 : vector<2x32xf32>
    %38 = arith.mulf %29, %14 : vector<2x32xf32>
    %39 = arith.mulf %23, %31 : vector<2x32xf32>
    %40 = arith.addf %38, %39 : vector<2x32xf32>
    %41 = math.tanh %40 : vector<2x32xf32>
    %42 = arith.mulf %37, %41 : vector<2x32xf32>
    %43 = vector.extract_strided_slice %5 {offsets = [2, 0], sizes = [2, 128], strides = [1, 1]} : vector<16x128xf32> to vector<2x128xf32>
    %cst_20 = arith.constant dense<0.000000e+00> : vector<2x128xf32>
    %44 = tpu.matmul %42, %12, %cst_20 {dimension_numbers = #tpu.dot_dimension_numbers<[1], [0], [0], [1], [0, 0, 1, 1], [], []>} : vector<2x32xf32>, vector<32x128xf32>, vector<2x128xf32> -> vector<2x128xf32>
    %45 = arith.addf %43, %44 : vector<2x128xf32>
    %46 = vector.extract_strided_slice %45 {offsets = [0, 0], sizes = [2, 32], strides = [1, 1]} : vector<2x128xf32> to vector<2x32xf32>
    %47 = arith.negf %46 : vector<2x32xf32>
    %48 = math.exp %47 : vector<2x32xf32>
    %cst_21 = arith.constant 1.000000e+00 : f32
    %49 = vector.broadcast %cst_21 : f32 to vector<2x32xf32>
    %50 = arith.addf %49, %48 : vector<2x32xf32>
    %51 = arith.divf %49, %50 : vector<2x32xf32>
    %52 = vector.extract_strided_slice %45 {offsets = [0, 32], sizes = [2, 32], strides = [1, 1]} : vector<2x128xf32> to vector<2x32xf32>
    %53 = arith.negf %52 : vector<2x32xf32>
    %54 = math.exp %53 : vector<2x32xf32>
    %cst_22 = arith.constant 1.000000e+00 : f32
    %55 = vector.broadcast %cst_22 : f32 to vector<2x32xf32>
    %56 = arith.addf %55, %54 : vector<2x32xf32>
    %57 = arith.divf %55, %56 : vector<2x32xf32>
    %58 = vector.extract_strided_slice %45 {offsets = [0, 64], sizes = [2, 32], strides = [1, 1]} : vector<2x128xf32> to vector<2x32xf32>
    %59 = math.tanh %58 : vector<2x32xf32>
    %60 = vector.extract_strided_slice %45 {offsets = [0, 96], sizes = [2, 32], strides = [1, 1]} : vector<2x128xf32> to vector<2x32xf32>
    %61 = arith.negf %60 : vector<2x32xf32>
    %62 = math.exp %61 : vector<2x32xf32>
    %cst_23 = arith.constant 1.000000e+00 : f32
    %63 = vector.broadcast %cst_23 : f32 to vector<2x32xf32>
    %64 = arith.addf %63, %62 : vector<2x32xf32>
    %65 = arith.divf %63, %64 : vector<2x32xf32>
    %66 = arith.mulf %57, %40 : vector<2x32xf32>
    %67 = arith.mulf %51, %59 : vector<2x32xf32>
    %68 = arith.addf %66, %67 : vector<2x32xf32>
    %69 = math.tanh %68 : vector<2x32xf32>
    %70 = arith.mulf %65, %69 : vector<2x32xf32>
    %71 = vector.extract_strided_slice %5 {offsets = [4, 0], sizes = [2, 128], strides = [1, 1]} : vector<16x128xf32> to vector<2x128xf32>
    %cst_24 = arith.constant dense<0.000000e+00> : vector<2x128xf32>
    %72 = tpu.matmul %70, %12, %cst_24 {dimension_numbers = #tpu.dot_dimension_numbers<[1], [0], [0], [1], [0, 0, 1, 1], [], []>} : vector<2x32xf32>, vector<32x128xf32>, vector<2x128xf32> -> vector<2x128xf32>
    %73 = arith.addf %71, %72 : vector<2x128xf32>
    %74 = vector.extract_strided_slice %73 {offsets = [0, 0], sizes = [2, 32], strides = [1, 1]} : vector<2x128xf32> to vector<2x32xf32>
    %75 = arith.negf %74 : vector<2x32xf32>
    %76 = math.exp %75 : vector<2x32xf32>
    %cst_25 = arith.constant 1.000000e+00 : f32
    %77 = vector.broadcast %cst_25 : f32 to vector<2x32xf32>
    %78 = arith.addf %77, %76 : vector<2x32xf32>
    %79 = arith.divf %77, %78 : vector<2x32xf32>
    %80 = vector.extract_strided_slice %73 {offsets = [0, 32], sizes = [2, 32], strides = [1, 1]} : vector<2x128xf32> to vector<2x32xf32>
    %81 = arith.negf %80 : vector<2x32xf32>
    %82 = math.exp %81 : vector<2x32xf32>
    %cst_26 = arith.constant 1.000000e+00 : f32
    %83 = vector.broadcast %cst_26 : f32 to vector<2x32xf32>
    %84 = arith.addf %83, %82 : vector<2x32xf32>
    %85 = arith.divf %83, %84 : vector<2x32xf32>
    %86 = vector.extract_strided_slice %73 {offsets = [0, 64], sizes = [2, 32], strides = [1, 1]} : vector<2x128xf32> to vector<2x32xf32>
    %87 = math.tanh %86 : vector<2x32xf32>
    %88 = vector.extract_strided_slice %73 {offsets = [0, 96], sizes = [2, 32], strides = [1, 1]} : vector<2x128xf32> to vector<2x32xf32>
    %89 = arith.negf %88 : vector<2x32xf32>
    %90 = math.exp %89 : vector<2x32xf32>
    %cst_27 = arith.constant 1.000000e+00 : f32
    %91 = vector.broadcast %cst_27 : f32 to vector<2x32xf32>
    %92 = arith.addf %91, %90 : vector<2x32xf32>
    %93 = arith.divf %91, %92 : vector<2x32xf32>
    %94 = arith.mulf %85, %68 : vector<2x32xf32>
    %95 = arith.mulf %79, %87 : vector<2x32xf32>
    %96 = arith.addf %94, %95 : vector<2x32xf32>
    %97 = math.tanh %96 : vector<2x32xf32>
    %98 = arith.mulf %93, %97 : vector<2x32xf32>
    %99 = vector.extract_strided_slice %5 {offsets = [6, 0], sizes = [2, 128], strides = [1, 1]} : vector<16x128xf32> to vector<2x128xf32>
    %cst_28 = arith.constant dense<0.000000e+00> : vector<2x128xf32>
    %100 = tpu.matmul %98, %12, %cst_28 {dimension_numbers = #tpu.dot_dimension_numbers<[1], [0], [0], [1], [0, 0, 1, 1], [], []>} : vector<2x32xf32>, vector<32x128xf32>, vector<2x128xf32> -> vector<2x128xf32>
    %101 = arith.addf %99, %100 : vector<2x128xf32>
    %102 = vector.extract_strided_slice %101 {offsets = [0, 0], sizes = [2, 32], strides = [1, 1]} : vector<2x128xf32> to vector<2x32xf32>
    %103 = arith.negf %102 : vector<2x32xf32>
    %104 = math.exp %103 : vector<2x32xf32>
    %cst_29 = arith.constant 1.000000e+00 : f32
    %105 = vector.broadcast %cst_29 : f32 to vector<2x32xf32>
    %106 = arith.addf %105, %104 : vector<2x32xf32>
    %107 = arith.divf %105, %106 : vector<2x32xf32>
    %108 = vector.extract_strided_slice %101 {offsets = [0, 32], sizes = [2, 32], strides = [1, 1]} : vector<2x128xf32> to vector<2x32xf32>
    %109 = arith.negf %108 : vector<2x32xf32>
    %110 = math.exp %109 : vector<2x32xf32>
    %cst_30 = arith.constant 1.000000e+00 : f32
    %111 = vector.broadcast %cst_30 : f32 to vector<2x32xf32>
    %112 = arith.addf %111, %110 : vector<2x32xf32>
    %113 = arith.divf %111, %112 : vector<2x32xf32>
    %114 = vector.extract_strided_slice %101 {offsets = [0, 64], sizes = [2, 32], strides = [1, 1]} : vector<2x128xf32> to vector<2x32xf32>
    %115 = math.tanh %114 : vector<2x32xf32>
    %116 = vector.extract_strided_slice %101 {offsets = [0, 96], sizes = [2, 32], strides = [1, 1]} : vector<2x128xf32> to vector<2x32xf32>
    %117 = arith.negf %116 : vector<2x32xf32>
    %118 = math.exp %117 : vector<2x32xf32>
    %cst_31 = arith.constant 1.000000e+00 : f32
    %119 = vector.broadcast %cst_31 : f32 to vector<2x32xf32>
    %120 = arith.addf %119, %118 : vector<2x32xf32>
    %121 = arith.divf %119, %120 : vector<2x32xf32>
    %122 = arith.mulf %113, %96 : vector<2x32xf32>
    %123 = arith.mulf %107, %115 : vector<2x32xf32>
    %124 = arith.addf %122, %123 : vector<2x32xf32>
    %125 = math.tanh %124 : vector<2x32xf32>
    %126 = arith.mulf %121, %125 : vector<2x32xf32>
    %127 = vector.extract_strided_slice %5 {offsets = [8, 0], sizes = [2, 128], strides = [1, 1]} : vector<16x128xf32> to vector<2x128xf32>
    %cst_32 = arith.constant dense<0.000000e+00> : vector<2x128xf32>
    %128 = tpu.matmul %126, %12, %cst_32 {dimension_numbers = #tpu.dot_dimension_numbers<[1], [0], [0], [1], [0, 0, 1, 1], [], []>} : vector<2x32xf32>, vector<32x128xf32>, vector<2x128xf32> -> vector<2x128xf32>
    %129 = arith.addf %127, %128 : vector<2x128xf32>
    %130 = vector.extract_strided_slice %129 {offsets = [0, 0], sizes = [2, 32], strides = [1, 1]} : vector<2x128xf32> to vector<2x32xf32>
    %131 = arith.negf %130 : vector<2x32xf32>
    %132 = math.exp %131 : vector<2x32xf32>
    %cst_33 = arith.constant 1.000000e+00 : f32
    %133 = vector.broadcast %cst_33 : f32 to vector<2x32xf32>
    %134 = arith.addf %133, %132 : vector<2x32xf32>
    %135 = arith.divf %133, %134 : vector<2x32xf32>
    %136 = vector.extract_strided_slice %129 {offsets = [0, 32], sizes = [2, 32], strides = [1, 1]} : vector<2x128xf32> to vector<2x32xf32>
    %137 = arith.negf %136 : vector<2x32xf32>
    %138 = math.exp %137 : vector<2x32xf32>
    %cst_34 = arith.constant 1.000000e+00 : f32
    %139 = vector.broadcast %cst_34 : f32 to vector<2x32xf32>
    %140 = arith.addf %139, %138 : vector<2x32xf32>
    %141 = arith.divf %139, %140 : vector<2x32xf32>
    %142 = vector.extract_strided_slice %129 {offsets = [0, 64], sizes = [2, 32], strides = [1, 1]} : vector<2x128xf32> to vector<2x32xf32>
    %143 = math.tanh %142 : vector<2x32xf32>
    %144 = vector.extract_strided_slice %129 {offsets = [0, 96], sizes = [2, 32], strides = [1, 1]} : vector<2x128xf32> to vector<2x32xf32>
    %145 = arith.negf %144 : vector<2x32xf32>
    %146 = math.exp %145 : vector<2x32xf32>
    %cst_35 = arith.constant 1.000000e+00 : f32
    %147 = vector.broadcast %cst_35 : f32 to vector<2x32xf32>
    %148 = arith.addf %147, %146 : vector<2x32xf32>
    %149 = arith.divf %147, %148 : vector<2x32xf32>
    %150 = arith.mulf %141, %124 : vector<2x32xf32>
    %151 = arith.mulf %135, %143 : vector<2x32xf32>
    %152 = arith.addf %150, %151 : vector<2x32xf32>
    %153 = math.tanh %152 : vector<2x32xf32>
    %154 = arith.mulf %149, %153 : vector<2x32xf32>
    %155 = vector.extract_strided_slice %5 {offsets = [10, 0], sizes = [2, 128], strides = [1, 1]} : vector<16x128xf32> to vector<2x128xf32>
    %cst_36 = arith.constant dense<0.000000e+00> : vector<2x128xf32>
    %156 = tpu.matmul %154, %12, %cst_36 {dimension_numbers = #tpu.dot_dimension_numbers<[1], [0], [0], [1], [0, 0, 1, 1], [], []>} : vector<2x32xf32>, vector<32x128xf32>, vector<2x128xf32> -> vector<2x128xf32>
    %157 = arith.addf %155, %156 : vector<2x128xf32>
    %158 = vector.extract_strided_slice %157 {offsets = [0, 0], sizes = [2, 32], strides = [1, 1]} : vector<2x128xf32> to vector<2x32xf32>
    %159 = arith.negf %158 : vector<2x32xf32>
    %160 = math.exp %159 : vector<2x32xf32>
    %cst_37 = arith.constant 1.000000e+00 : f32
    %161 = vector.broadcast %cst_37 : f32 to vector<2x32xf32>
    %162 = arith.addf %161, %160 : vector<2x32xf32>
    %163 = arith.divf %161, %162 : vector<2x32xf32>
    %164 = vector.extract_strided_slice %157 {offsets = [0, 32], sizes = [2, 32], strides = [1, 1]} : vector<2x128xf32> to vector<2x32xf32>
    %165 = arith.negf %164 : vector<2x32xf32>
    %166 = math.exp %165 : vector<2x32xf32>
    %cst_38 = arith.constant 1.000000e+00 : f32
    %167 = vector.broadcast %cst_38 : f32 to vector<2x32xf32>
    %168 = arith.addf %167, %166 : vector<2x32xf32>
    %169 = arith.divf %167, %168 : vector<2x32xf32>
    %170 = vector.extract_strided_slice %157 {offsets = [0, 64], sizes = [2, 32], strides = [1, 1]} : vector<2x128xf32> to vector<2x32xf32>
    %171 = math.tanh %170 : vector<2x32xf32>
    %172 = vector.extract_strided_slice %157 {offsets = [0, 96], sizes = [2, 32], strides = [1, 1]} : vector<2x128xf32> to vector<2x32xf32>
    %173 = arith.negf %172 : vector<2x32xf32>
    %174 = math.exp %173 : vector<2x32xf32>
    %cst_39 = arith.constant 1.000000e+00 : f32
    %175 = vector.broadcast %cst_39 : f32 to vector<2x32xf32>
    %176 = arith.addf %175, %174 : vector<2x32xf32>
    %177 = arith.divf %175, %176 : vector<2x32xf32>
    %178 = arith.mulf %169, %152 : vector<2x32xf32>
    %179 = arith.mulf %163, %171 : vector<2x32xf32>
    %180 = arith.addf %178, %179 : vector<2x32xf32>
    %181 = math.tanh %180 : vector<2x32xf32>
    %182 = arith.mulf %177, %181 : vector<2x32xf32>
    %183 = vector.extract_strided_slice %5 {offsets = [12, 0], sizes = [2, 128], strides = [1, 1]} : vector<16x128xf32> to vector<2x128xf32>
    %cst_40 = arith.constant dense<0.000000e+00> : vector<2x128xf32>
    %184 = tpu.matmul %182, %12, %cst_40 {dimension_numbers = #tpu.dot_dimension_numbers<[1], [0], [0], [1], [0, 0, 1, 1], [], []>} : vector<2x32xf32>, vector<32x128xf32>, vector<2x128xf32> -> vector<2x128xf32>
    %185 = arith.addf %183, %184 : vector<2x128xf32>
    %186 = vector.extract_strided_slice %185 {offsets = [0, 0], sizes = [2, 32], strides = [1, 1]} : vector<2x128xf32> to vector<2x32xf32>
    %187 = arith.negf %186 : vector<2x32xf32>
    %188 = math.exp %187 : vector<2x32xf32>
    %cst_41 = arith.constant 1.000000e+00 : f32
    %189 = vector.broadcast %cst_41 : f32 to vector<2x32xf32>
    %190 = arith.addf %189, %188 : vector<2x32xf32>
    %191 = arith.divf %189, %190 : vector<2x32xf32>
    %192 = vector.extract_strided_slice %185 {offsets = [0, 32], sizes = [2, 32], strides = [1, 1]} : vector<2x128xf32> to vector<2x32xf32>
    %193 = arith.negf %192 : vector<2x32xf32>
    %194 = math.exp %193 : vector<2x32xf32>
    %cst_42 = arith.constant 1.000000e+00 : f32
    %195 = vector.broadcast %cst_42 : f32 to vector<2x32xf32>
    %196 = arith.addf %195, %194 : vector<2x32xf32>
    %197 = arith.divf %195, %196 : vector<2x32xf32>
    %198 = vector.extract_strided_slice %185 {offsets = [0, 64], sizes = [2, 32], strides = [1, 1]} : vector<2x128xf32> to vector<2x32xf32>
    %199 = math.tanh %198 : vector<2x32xf32>
    %200 = vector.extract_strided_slice %185 {offsets = [0, 96], sizes = [2, 32], strides = [1, 1]} : vector<2x128xf32> to vector<2x32xf32>
    %201 = arith.negf %200 : vector<2x32xf32>
    %202 = math.exp %201 : vector<2x32xf32>
    %cst_43 = arith.constant 1.000000e+00 : f32
    %203 = vector.broadcast %cst_43 : f32 to vector<2x32xf32>
    %204 = arith.addf %203, %202 : vector<2x32xf32>
    %205 = arith.divf %203, %204 : vector<2x32xf32>
    %206 = arith.mulf %197, %180 : vector<2x32xf32>
    %207 = arith.mulf %191, %199 : vector<2x32xf32>
    %208 = arith.addf %206, %207 : vector<2x32xf32>
    %209 = math.tanh %208 : vector<2x32xf32>
    %210 = arith.mulf %205, %209 : vector<2x32xf32>
    %211 = vector.extract_strided_slice %5 {offsets = [14, 0], sizes = [2, 128], strides = [1, 1]} : vector<16x128xf32> to vector<2x128xf32>
    %cst_44 = arith.constant dense<0.000000e+00> : vector<2x128xf32>
    %212 = tpu.matmul %210, %12, %cst_44 {dimension_numbers = #tpu.dot_dimension_numbers<[1], [0], [0], [1], [0, 0, 1, 1], [], []>} : vector<2x32xf32>, vector<32x128xf32>, vector<2x128xf32> -> vector<2x128xf32>
    %213 = arith.addf %211, %212 : vector<2x128xf32>
    %214 = vector.extract_strided_slice %213 {offsets = [0, 0], sizes = [2, 32], strides = [1, 1]} : vector<2x128xf32> to vector<2x32xf32>
    %215 = arith.negf %214 : vector<2x32xf32>
    %216 = math.exp %215 : vector<2x32xf32>
    %cst_45 = arith.constant 1.000000e+00 : f32
    %217 = vector.broadcast %cst_45 : f32 to vector<2x32xf32>
    %218 = arith.addf %217, %216 : vector<2x32xf32>
    %219 = arith.divf %217, %218 : vector<2x32xf32>
    %220 = vector.extract_strided_slice %213 {offsets = [0, 32], sizes = [2, 32], strides = [1, 1]} : vector<2x128xf32> to vector<2x32xf32>
    %221 = arith.negf %220 : vector<2x32xf32>
    %222 = math.exp %221 : vector<2x32xf32>
    %cst_46 = arith.constant 1.000000e+00 : f32
    %223 = vector.broadcast %cst_46 : f32 to vector<2x32xf32>
    %224 = arith.addf %223, %222 : vector<2x32xf32>
    %225 = arith.divf %223, %224 : vector<2x32xf32>
    %226 = vector.extract_strided_slice %213 {offsets = [0, 64], sizes = [2, 32], strides = [1, 1]} : vector<2x128xf32> to vector<2x32xf32>
    %227 = math.tanh %226 : vector<2x32xf32>
    %228 = vector.extract_strided_slice %213 {offsets = [0, 96], sizes = [2, 32], strides = [1, 1]} : vector<2x128xf32> to vector<2x32xf32>
    %229 = arith.negf %228 : vector<2x32xf32>
    %230 = math.exp %229 : vector<2x32xf32>
    %cst_47 = arith.constant 1.000000e+00 : f32
    %231 = vector.broadcast %cst_47 : f32 to vector<2x32xf32>
    %232 = arith.addf %231, %230 : vector<2x32xf32>
    %233 = arith.divf %231, %232 : vector<2x32xf32>
    %234 = arith.mulf %225, %208 : vector<2x32xf32>
    %235 = arith.mulf %219, %227 : vector<2x32xf32>
    %236 = arith.addf %234, %235 : vector<2x32xf32>
    %237 = math.tanh %236 : vector<2x32xf32>
    %238 = arith.mulf %233, %237 : vector<2x32xf32>
    %239 = vector.extract_strided_slice %42 {offsets = [0, 0], sizes = [2, 16], strides = [1, 1]} : vector<2x32xf32> to vector<2x16xf32>
    %240 = vector.extract_strided_slice %238 {offsets = [0, 16], sizes = [2, 16], strides = [1, 1]} : vector<2x32xf32> to vector<2x16xf32>
    %241 = tpu.concatenate %239, %240 in 1 : vector<2x16xf32>, vector<2x16xf32> -> vector<2x32xf32>
    %c0_48 = arith.constant 0 : index
    %c0_49 = arith.constant 0 : index
    %c0_50 = arith.constant 0 : index
    %242 = vector.load %arg8[%c0_48, %c0_49, %c0_50] : memref<8x2x32xf32, #tpu.memory_space<vmem>>, vector<1x2x32xf32>
    %243 = vector.shape_cast %242 : vector<1x2x32xf32> to vector<2x32xf32>
    %244 = vector.shape_cast %241 : vector<2x32xf32> to vector<1x2x32xf32>
    tpu.vector_store %arg8[%c0_48, %c0_49, %c0_50], %244 {strides = array<i32>} : memref<8x2x32xf32, #tpu.memory_space<vmem>>, vector<1x2x32xf32>,
    %245 = vector.extract_strided_slice %70 {offsets = [0, 0], sizes = [2, 16], strides = [1, 1]} : vector<2x32xf32> to vector<2x16xf32>
    %246 = vector.extract_strided_slice %210 {offsets = [0, 16], sizes = [2, 16], strides = [1, 1]} : vector<2x32xf32> to vector<2x16xf32>
    %247 = tpu.concatenate %245, %246 in 1 : vector<2x16xf32>, vector<2x16xf32> -> vector<2x32xf32>
    %c1 = arith.constant 1 : index
    %c0_51 = arith.constant 0 : index
    %c0_52 = arith.constant 0 : index
    %248 = vector.load %arg8[%c1, %c0_51, %c0_52] : memref<8x2x32xf32, #tpu.memory_space<vmem>>, vector<1x2x32xf32>
    %249 = vector.shape_cast %248 : vector<1x2x32xf32> to vector<2x32xf32>
    %250 = vector.shape_cast %247 : vector<2x32xf32> to vector<1x2x32xf32>
    tpu.vector_store %arg8[%c1, %c0_51, %c0_52], %250 {strides = array<i32>} : memref<8x2x32xf32, #tpu.memory_space<vmem>>, vector<1x2x32xf32>,
    %251 = vector.extract_strided_slice %98 {offsets = [0, 0], sizes = [2, 16], strides = [1, 1]} : vector<2x32xf32> to vector<2x16xf32>
    %252 = vector.extract_strided_slice %182 {offsets = [0, 16], sizes = [2, 16], strides = [1, 1]} : vector<2x32xf32> to vector<2x16xf32>
    %253 = tpu.concatenate %251, %252 in 1 : vector<2x16xf32>, vector<2x16xf32> -> vector<2x32xf32>
    %c2 = arith.constant 2 : index
    %c0_53 = arith.constant 0 : index
    %c0_54 = arith.constant 0 : index
    %254 = vector.load %arg8[%c2, %c0_53, %c0_54] : memref<8x2x32xf32, #tpu.memory_space<vmem>>, vector<1x2x32xf32>
    %255 = vector.shape_cast %254 : vector<1x2x32xf32> to vector<2x32xf32>
    %256 = vector.shape_cast %253 : vector<2x32xf32> to vector<1x2x32xf32>
    tpu.vector_store %arg8[%c2, %c0_53, %c0_54], %256 {strides = array<i32>} : memref<8x2x32xf32, #tpu.memory_space<vmem>>, vector<1x2x32xf32>,
    %257 = vector.extract_strided_slice %126 {offsets = [0, 0], sizes = [2, 16], strides = [1, 1]} : vector<2x32xf32> to vector<2x16xf32>
    %258 = vector.extract_strided_slice %154 {offsets = [0, 16], sizes = [2, 16], strides = [1, 1]} : vector<2x32xf32> to vector<2x16xf32>
    %259 = tpu.concatenate %257, %258 in 1 : vector<2x16xf32>, vector<2x16xf32> -> vector<2x32xf32>
    %c3 = arith.constant 3 : index
    %c0_55 = arith.constant 0 : index
    %c0_56 = arith.constant 0 : index
    %260 = vector.load %arg8[%c3, %c0_55, %c0_56] : memref<8x2x32xf32, #tpu.memory_space<vmem>>, vector<1x2x32xf32>
    %261 = vector.shape_cast %260 : vector<1x2x32xf32> to vector<2x32xf32>
    %262 = vector.shape_cast %259 : vector<2x32xf32> to vector<1x2x32xf32>
    tpu.vector_store %arg8[%c3, %c0_55, %c0_56], %262 {strides = array<i32>} : memref<8x2x32xf32, #tpu.memory_space<vmem>>, vector<1x2x32xf32>,
    %263 = vector.extract_strided_slice %154 {offsets = [0, 0], sizes = [2, 16], strides = [1, 1]} : vector<2x32xf32> to vector<2x16xf32>
    %264 = vector.extract_strided_slice %126 {offsets = [0, 16], sizes = [2, 16], strides = [1, 1]} : vector<2x32xf32> to vector<2x16xf32>
    %265 = tpu.concatenate %263, %264 in 1 : vector<2x16xf32>, vector<2x16xf32> -> vector<2x32xf32>
    %c4 = arith.constant 4 : index
    %c0_57 = arith.constant 0 : index
    %c0_58 = arith.constant 0 : index
    %266 = vector.load %arg8[%c4, %c0_57, %c0_58] : memref<8x2x32xf32, #tpu.memory_space<vmem>>, vector<1x2x32xf32>
    %267 = vector.shape_cast %266 : vector<1x2x32xf32> to vector<2x32xf32>
    %268 = vector.shape_cast %265 : vector<2x32xf32> to vector<1x2x32xf32>
    tpu.vector_store %arg8[%c4, %c0_57, %c0_58], %268 {strides = array<i32>} : memref<8x2x32xf32, #tpu.memory_space<vmem>>, vector<1x2x32xf32>,
    %269 = vector.extract_strided_slice %182 {offsets = [0, 0], sizes = [2, 16], strides = [1, 1]} : vector<2x32xf32> to vector<2x16xf32>
    %270 = vector.extract_strided_slice %98 {offsets = [0, 16], sizes = [2, 16], strides = [1, 1]} : vector<2x32xf32> to vector<2x16xf32>
    %271 = tpu.concatenate %269, %270 in 1 : vector<2x16xf32>, vector<2x16xf32> -> vector<2x32xf32>
    %c5 = arith.constant 5 : index
    %c0_59 = arith.constant 0 : index
    %c0_60 = arith.constant 0 : index
    %272 = vector.load %arg8[%c5, %c0_59, %c0_60] : memref<8x2x32xf32, #tpu.memory_space<vmem>>, vector<1x2x32xf32>
    %273 = vector.shape_cast %272 : vector<1x2x32xf32> to vector<2x32xf32>
    %274 = vector.shape_cast %271 : vector<2x32xf32> to vector<1x2x32xf32>
    tpu.vector_store %arg8[%c5, %c0_59, %c0_60], %274 {strides = array<i32>} : memref<8x2x32xf32, #tpu.memory_space<vmem>>, vector<1x2x32xf32>,
    %275 = vector.extract_strided_slice %210 {offsets = [0, 0], sizes = [2, 16], strides = [1, 1]} : vector<2x32xf32> to vector<2x16xf32>
    %276 = vector.extract_strided_slice %70 {offsets = [0, 16], sizes = [2, 16], strides = [1, 1]} : vector<2x32xf32> to vector<2x16xf32>
    %277 = tpu.concatenate %275, %276 in 1 : vector<2x16xf32>, vector<2x16xf32> -> vector<2x32xf32>
    %c6 = arith.constant 6 : index
    %c0_61 = arith.constant 0 : index
    %c0_62 = arith.constant 0 : index
    %278 = vector.load %arg8[%c6, %c0_61, %c0_62] : memref<8x2x32xf32, #tpu.memory_space<vmem>>, vector<1x2x32xf32>
    %279 = vector.shape_cast %278 : vector<1x2x32xf32> to vector<2x32xf32>
    %280 = vector.shape_cast %277 : vector<2x32xf32> to vector<1x2x32xf32>
    tpu.vector_store %arg8[%c6, %c0_61, %c0_62], %280 {strides = array<i32>} : memref<8x2x32xf32, #tpu.memory_space<vmem>>, vector<1x2x32xf32>,
    %281 = vector.extract_strided_slice %238 {offsets = [0, 0], sizes = [2, 16], strides = [1, 1]} : vector<2x32xf32> to vector<2x16xf32>
    %282 = vector.extract_strided_slice %42 {offsets = [0, 16], sizes = [2, 16], strides = [1, 1]} : vector<2x32xf32> to vector<2x16xf32>
    %283 = tpu.concatenate %281, %282 in 1 : vector<2x16xf32>, vector<2x16xf32> -> vector<2x32xf32>
    %c7 = arith.constant 7 : index
    %c0_63 = arith.constant 0 : index
    %c0_64 = arith.constant 0 : index
    %284 = vector.load %arg8[%c7, %c0_63, %c0_64] : memref<8x2x32xf32, #tpu.memory_space<vmem>>, vector<1x2x32xf32>
    %285 = vector.shape_cast %284 : vector<1x2x32xf32> to vector<2x32xf32>
    %286 = vector.shape_cast %283 : vector<2x32xf32> to vector<1x2x32xf32>
    tpu.vector_store %arg8[%c7, %c0_63, %c0_64], %286 {strides = array<i32>} : memref<8x2x32xf32, #tpu.memory_space<vmem>>, vector<1x2x32xf32>,
    %c0_65 = arith.constant 0 : index
    %c0_66 = arith.constant 0 : index
    %287 = vector.load %arg6[%c0_65, %c0_66] : memref<32x128xf32, #tpu.memory_space<vmem>>, vector<32x128xf32>
    %cst_67 = arith.constant 0.000000e+00 : f32
    %288 = vector.broadcast %cst_67 : f32 to vector<2x32xf32>
    %cst_68 = arith.constant 0.000000e+00 : f32
    %289 = vector.broadcast %cst_68 : f32 to vector<2x32xf32>
    %290 = vector.extract_strided_slice %11 {offsets = [0, 0], sizes = [2, 128], strides = [1, 1]} : vector<12x128xf32> to vector<2x128xf32>
    %cst_69 = arith.constant dense<0.000000e+00> : vector<2x128xf32>
    %291 = tpu.matmul %288, %287, %cst_69 {dimension_numbers = #tpu.dot_dimension_numbers<[1], [0], [0], [1], [0, 0, 1, 1], [], []>} : vector<2x32xf32>, vector<32x128xf32>, vector<2x128xf32> -> vector<2x128xf32>
    %292 = arith.addf %290, %291 : vector<2x128xf32>
    %293 = vector.extract_strided_slice %292 {offsets = [0, 0], sizes = [2, 32], strides = [1, 1]} : vector<2x128xf32> to vector<2x32xf32>
    %294 = arith.negf %293 : vector<2x32xf32>
    %295 = math.exp %294 : vector<2x32xf32>
    %cst_70 = arith.constant 1.000000e+00 : f32
    %296 = vector.broadcast %cst_70 : f32 to vector<2x32xf32>
    %297 = arith.addf %296, %295 : vector<2x32xf32>
    %298 = arith.divf %296, %297 : vector<2x32xf32>
    %299 = vector.extract_strided_slice %292 {offsets = [0, 32], sizes = [2, 32], strides = [1, 1]} : vector<2x128xf32> to vector<2x32xf32>
    %300 = arith.negf %299 : vector<2x32xf32>
    %301 = math.exp %300 : vector<2x32xf32>
    %cst_71 = arith.constant 1.000000e+00 : f32
    %302 = vector.broadcast %cst_71 : f32 to vector<2x32xf32>
    %303 = arith.addf %302, %301 : vector<2x32xf32>
    %304 = arith.divf %302, %303 : vector<2x32xf32>
    %305 = vector.extract_strided_slice %292 {offsets = [0, 64], sizes = [2, 32], strides = [1, 1]} : vector<2x128xf32> to vector<2x32xf32>
    %306 = math.tanh %305 : vector<2x32xf32>
    %307 = vector.extract_strided_slice %292 {offsets = [0, 96], sizes = [2, 32], strides = [1, 1]} : vector<2x128xf32> to vector<2x32xf32>
    %308 = arith.negf %307 : vector<2x32xf32>
    %309 = math.exp %308 : vector<2x32xf32>
    %cst_72 = arith.constant 1.000000e+00 : f32
    %310 = vector.broadcast %cst_72 : f32 to vector<2x32xf32>
    %311 = arith.addf %310, %309 : vector<2x32xf32>
    %312 = arith.divf %310, %311 : vector<2x32xf32>
    %313 = arith.mulf %304, %289 : vector<2x32xf32>
    %314 = arith.mulf %298, %306 : vector<2x32xf32>
    %315 = arith.addf %313, %314 : vector<2x32xf32>
    %316 = math.tanh %315 : vector<2x32xf32>
    %317 = arith.mulf %312, %316 : vector<2x32xf32>
    %318 = vector.extract_strided_slice %11 {offsets = [2, 0], sizes = [2, 128], strides = [1, 1]} : vector<12x128xf32> to vector<2x128xf32>
    %cst_73 = arith.constant dense<0.000000e+00> : vector<2x128xf32>
    %319 = tpu.matmul %317, %287, %cst_73 {dimension_numbers = #tpu.dot_dimension_numbers<[1], [0], [0], [1], [0, 0, 1, 1], [], []>} : vector<2x32xf32>, vector<32x128xf32>, vector<2x128xf32> -> vector<2x128xf32>
    %320 = arith.addf %318, %319 : vector<2x128xf32>
    %321 = vector.extract_strided_slice %320 {offsets = [0, 0], sizes = [2, 32], strides = [1, 1]} : vector<2x128xf32> to vector<2x32xf32>
    %322 = arith.negf %321 : vector<2x32xf32>
    %323 = math.exp %322 : vector<2x32xf32>
    %cst_74 = arith.constant 1.000000e+00 : f32
    %324 = vector.broadcast %cst_74 : f32 to vector<2x32xf32>
    %325 = arith.addf %324, %323 : vector<2x32xf32>
    %326 = arith.divf %324, %325 : vector<2x32xf32>
    %327 = vector.extract_strided_slice %320 {offsets = [0, 32], sizes = [2, 32], strides = [1, 1]} : vector<2x128xf32> to vector<2x32xf32>
    %328 = arith.negf %327 : vector<2x32xf32>
    %329 = math.exp %328 : vector<2x32xf32>
    %cst_75 = arith.constant 1.000000e+00 : f32
    %330 = vector.broadcast %cst_75 : f32 to vector<2x32xf32>
    %331 = arith.addf %330, %329 : vector<2x32xf32>
    %332 = arith.divf %330, %331 : vector<2x32xf32>
    %333 = vector.extract_strided_slice %320 {offsets = [0, 64], sizes = [2, 32], strides = [1, 1]} : vector<2x128xf32> to vector<2x32xf32>
    %334 = math.tanh %333 : vector<2x32xf32>
    %335 = vector.extract_strided_slice %320 {offsets = [0, 96], sizes = [2, 32], strides = [1, 1]} : vector<2x128xf32> to vector<2x32xf32>
    %336 = arith.negf %335 : vector<2x32xf32>
    %337 = math.exp %336 : vector<2x32xf32>
    %cst_76 = arith.constant 1.000000e+00 : f32
    %338 = vector.broadcast %cst_76 : f32 to vector<2x32xf32>
    %339 = arith.addf %338, %337 : vector<2x32xf32>
    %340 = arith.divf %338, %339 : vector<2x32xf32>
    %341 = arith.mulf %332, %315 : vector<2x32xf32>
    %342 = arith.mulf %326, %334 : vector<2x32xf32>
    %343 = arith.addf %341, %342 : vector<2x32xf32>
    %344 = math.tanh %343 : vector<2x32xf32>
    %345 = arith.mulf %340, %344 : vector<2x32xf32>
    %346 = vector.extract_strided_slice %11 {offsets = [4, 0], sizes = [2, 128], strides = [1, 1]} : vector<12x128xf32> to vector<2x128xf32>
    %cst_77 = arith.constant dense<0.000000e+00> : vector<2x128xf32>
    %347 = tpu.matmul %345, %287, %cst_77 {dimension_numbers = #tpu.dot_dimension_numbers<[1], [0], [0], [1], [0, 0, 1, 1], [], []>} : vector<2x32xf32>, vector<32x128xf32>, vector<2x128xf32> -> vector<2x128xf32>
    %348 = arith.addf %346, %347 : vector<2x128xf32>
    %349 = vector.extract_strided_slice %348 {offsets = [0, 0], sizes = [2, 32], strides = [1, 1]} : vector<2x128xf32> to vector<2x32xf32>
    %350 = arith.negf %349 : vector<2x32xf32>
    %351 = math.exp %350 : vector<2x32xf32>
    %cst_78 = arith.constant 1.000000e+00 : f32
    %352 = vector.broadcast %cst_78 : f32 to vector<2x32xf32>
    %353 = arith.addf %352, %351 : vector<2x32xf32>
    %354 = arith.divf %352, %353 : vector<2x32xf32>
    %355 = vector.extract_strided_slice %348 {offsets = [0, 32], sizes = [2, 32], strides = [1, 1]} : vector<2x128xf32> to vector<2x32xf32>
    %356 = arith.negf %355 : vector<2x32xf32>
    %357 = math.exp %356 : vector<2x32xf32>
    %cst_79 = arith.constant 1.000000e+00 : f32
    %358 = vector.broadcast %cst_79 : f32 to vector<2x32xf32>
    %359 = arith.addf %358, %357 : vector<2x32xf32>
    %360 = arith.divf %358, %359 : vector<2x32xf32>
    %361 = vector.extract_strided_slice %348 {offsets = [0, 64], sizes = [2, 32], strides = [1, 1]} : vector<2x128xf32> to vector<2x32xf32>
    %362 = math.tanh %361 : vector<2x32xf32>
    %363 = vector.extract_strided_slice %348 {offsets = [0, 96], sizes = [2, 32], strides = [1, 1]} : vector<2x128xf32> to vector<2x32xf32>
    %364 = arith.negf %363 : vector<2x32xf32>
    %365 = math.exp %364 : vector<2x32xf32>
    %cst_80 = arith.constant 1.000000e+00 : f32
    %366 = vector.broadcast %cst_80 : f32 to vector<2x32xf32>
    %367 = arith.addf %366, %365 : vector<2x32xf32>
    %368 = arith.divf %366, %367 : vector<2x32xf32>
    %369 = arith.mulf %360, %343 : vector<2x32xf32>
    %370 = arith.mulf %354, %362 : vector<2x32xf32>
    %371 = arith.addf %369, %370 : vector<2x32xf32>
    %372 = math.tanh %371 : vector<2x32xf32>
    %373 = arith.mulf %368, %372 : vector<2x32xf32>
    %374 = vector.extract_strided_slice %11 {offsets = [6, 0], sizes = [2, 128], strides = [1, 1]} : vector<12x128xf32> to vector<2x128xf32>
    %cst_81 = arith.constant dense<0.000000e+00> : vector<2x128xf32>
    %375 = tpu.matmul %373, %287, %cst_81 {dimension_numbers = #tpu.dot_dimension_numbers<[1], [0], [0], [1], [0, 0, 1, 1], [], []>} : vector<2x32xf32>, vector<32x128xf32>, vector<2x128xf32> -> vector<2x128xf32>
    %376 = arith.addf %374, %375 : vector<2x128xf32>
    %377 = vector.extract_strided_slice %376 {offsets = [0, 0], sizes = [2, 32], strides = [1, 1]} : vector<2x128xf32> to vector<2x32xf32>
    %378 = arith.negf %377 : vector<2x32xf32>
    %379 = math.exp %378 : vector<2x32xf32>
    %cst_82 = arith.constant 1.000000e+00 : f32
    %380 = vector.broadcast %cst_82 : f32 to vector<2x32xf32>
    %381 = arith.addf %380, %379 : vector<2x32xf32>
    %382 = arith.divf %380, %381 : vector<2x32xf32>
    %383 = vector.extract_strided_slice %376 {offsets = [0, 32], sizes = [2, 32], strides = [1, 1]} : vector<2x128xf32> to vector<2x32xf32>
    %384 = arith.negf %383 : vector<2x32xf32>
    %385 = math.exp %384 : vector<2x32xf32>
    %cst_83 = arith.constant 1.000000e+00 : f32
    %386 = vector.broadcast %cst_83 : f32 to vector<2x32xf32>
    %387 = arith.addf %386, %385 : vector<2x32xf32>
    %388 = arith.divf %386, %387 : vector<2x32xf32>
    %389 = vector.extract_strided_slice %376 {offsets = [0, 64], sizes = [2, 32], strides = [1, 1]} : vector<2x128xf32> to vector<2x32xf32>
    %390 = math.tanh %389 : vector<2x32xf32>
    %391 = vector.extract_strided_slice %376 {offsets = [0, 96], sizes = [2, 32], strides = [1, 1]} : vector<2x128xf32> to vector<2x32xf32>
    %392 = arith.negf %391 : vector<2x32xf32>
    %393 = math.exp %392 : vector<2x32xf32>
    %cst_84 = arith.constant 1.000000e+00 : f32
    %394 = vector.broadcast %cst_84 : f32 to vector<2x32xf32>
    %395 = arith.addf %394, %393 : vector<2x32xf32>
    %396 = arith.divf %394, %395 : vector<2x32xf32>
    %397 = arith.mulf %388, %371 : vector<2x32xf32>
    %398 = arith.mulf %382, %390 : vector<2x32xf32>
    %399 = arith.addf %397, %398 : vector<2x32xf32>
    %400 = math.tanh %399 : vector<2x32xf32>
    %401 = arith.mulf %396, %400 : vector<2x32xf32>
    %402 = vector.extract_strided_slice %11 {offsets = [8, 0], sizes = [2, 128], strides = [1, 1]} : vector<12x128xf32> to vector<2x128xf32>
    %cst_85 = arith.constant dense<0.000000e+00> : vector<2x128xf32>
    %403 = tpu.matmul %401, %287, %cst_85 {dimension_numbers = #tpu.dot_dimension_numbers<[1], [0], [0], [1], [0, 0, 1, 1], [], []>} : vector<2x32xf32>, vector<32x128xf32>, vector<2x128xf32> -> vector<2x128xf32>
    %404 = arith.addf %402, %403 : vector<2x128xf32>
    %405 = vector.extract_strided_slice %404 {offsets = [0, 0], sizes = [2, 32], strides = [1, 1]} : vector<2x128xf32> to vector<2x32xf32>
    %406 = arith.negf %405 : vector<2x32xf32>
    %407 = math.exp %406 : vector<2x32xf32>
    %cst_86 = arith.constant 1.000000e+00 : f32
    %408 = vector.broadcast %cst_86 : f32 to vector<2x32xf32>
    %409 = arith.addf %408, %407 : vector<2x32xf32>
    %410 = arith.divf %408, %409 : vector<2x32xf32>
    %411 = vector.extract_strided_slice %404 {offsets = [0, 32], sizes = [2, 32], strides = [1, 1]} : vector<2x128xf32> to vector<2x32xf32>
    %412 = arith.negf %411 : vector<2x32xf32>
    %413 = math.exp %412 : vector<2x32xf32>
    %cst_87 = arith.constant 1.000000e+00 : f32
    %414 = vector.broadcast %cst_87 : f32 to vector<2x32xf32>
    %415 = arith.addf %414, %413 : vector<2x32xf32>
    %416 = arith.divf %414, %415 : vector<2x32xf32>
    %417 = vector.extract_strided_slice %404 {offsets = [0, 64], sizes = [2, 32], strides = [1, 1]} : vector<2x128xf32> to vector<2x32xf32>
    %418 = math.tanh %417 : vector<2x32xf32>
    %419 = vector.extract_strided_slice %404 {offsets = [0, 96], sizes = [2, 32], strides = [1, 1]} : vector<2x128xf32> to vector<2x32xf32>
    %420 = arith.negf %419 : vector<2x32xf32>
    %421 = math.exp %420 : vector<2x32xf32>
    %cst_88 = arith.constant 1.000000e+00 : f32
    %422 = vector.broadcast %cst_88 : f32 to vector<2x32xf32>
    %423 = arith.addf %422, %421 : vector<2x32xf32>
    %424 = arith.divf %422, %423 : vector<2x32xf32>
    %425 = arith.mulf %416, %399 : vector<2x32xf32>
    %426 = arith.mulf %410, %418 : vector<2x32xf32>
    %427 = arith.addf %425, %426 : vector<2x32xf32>
    %428 = math.tanh %427 : vector<2x32xf32>
    %429 = arith.mulf %424, %428 : vector<2x32xf32>
    %430 = vector.extract_strided_slice %11 {offsets = [10, 0], sizes = [2, 128], strides = [1, 1]} : vector<12x128xf32> to vector<2x128xf32>
    %cst_89 = arith.constant dense<0.000000e+00> : vector<2x128xf32>
    %431 = tpu.matmul %429, %287, %cst_89 {dimension_numbers = #tpu.dot_dimension_numbers<[1], [0], [0], [1], [0, 0, 1, 1], [], []>} : vector<2x32xf32>, vector<32x128xf32>, vector<2x128xf32> -> vector<2x128xf32>
    %432 = arith.addf %430, %431 : vector<2x128xf32>
    %433 = vector.extract_strided_slice %432 {offsets = [0, 0], sizes = [2, 32], strides = [1, 1]} : vector<2x128xf32> to vector<2x32xf32>
    %434 = arith.negf %433 : vector<2x32xf32>
    %435 = math.exp %434 : vector<2x32xf32>
    %cst_90 = arith.constant 1.000000e+00 : f32
    %436 = vector.broadcast %cst_90 : f32 to vector<2x32xf32>
    %437 = arith.addf %436, %435 : vector<2x32xf32>
    %438 = arith.divf %436, %437 : vector<2x32xf32>
    %439 = vector.extract_strided_slice %432 {offsets = [0, 32], sizes = [2, 32], strides = [1, 1]} : vector<2x128xf32> to vector<2x32xf32>
    %440 = arith.negf %439 : vector<2x32xf32>
    %441 = math.exp %440 : vector<2x32xf32>
    %cst_91 = arith.constant 1.000000e+00 : f32
    %442 = vector.broadcast %cst_91 : f32 to vector<2x32xf32>
    %443 = arith.addf %442, %441 : vector<2x32xf32>
    %444 = arith.divf %442, %443 : vector<2x32xf32>
    %445 = vector.extract_strided_slice %432 {offsets = [0, 64], sizes = [2, 32], strides = [1, 1]} : vector<2x128xf32> to vector<2x32xf32>
    %446 = math.tanh %445 : vector<2x32xf32>
    %447 = vector.extract_strided_slice %432 {offsets = [0, 96], sizes = [2, 32], strides = [1, 1]} : vector<2x128xf32> to vector<2x32xf32>
    %448 = arith.negf %447 : vector<2x32xf32>
    %449 = math.exp %448 : vector<2x32xf32>
    %cst_92 = arith.constant 1.000000e+00 : f32
    %450 = vector.broadcast %cst_92 : f32 to vector<2x32xf32>
    %451 = arith.addf %450, %449 : vector<2x32xf32>
    %452 = arith.divf %450, %451 : vector<2x32xf32>
    %453 = arith.mulf %444, %427 : vector<2x32xf32>
    %454 = arith.mulf %438, %446 : vector<2x32xf32>
    %455 = arith.addf %453, %454 : vector<2x32xf32>
    %456 = math.tanh %455 : vector<2x32xf32>
    %457 = arith.mulf %452, %456 : vector<2x32xf32>
    %458 = vector.extract_strided_slice %317 {offsets = [0, 0], sizes = [2, 16], strides = [1, 1]} : vector<2x32xf32> to vector<2x16xf32>
    %459 = vector.extract_strided_slice %457 {offsets = [0, 16], sizes = [2, 16], strides = [1, 1]} : vector<2x32xf32> to vector<2x16xf32>
    %460 = tpu.concatenate %458, %459 in 1 : vector<2x16xf32>, vector<2x16xf32> -> vector<2x32xf32>
    %c0_93 = arith.constant 0 : index
    %c0_94 = arith.constant 0 : index
    %c0_95 = arith.constant 0 : index
    %461 = vector.load %arg9[%c0_93, %c0_94, %c0_95] : memref<6x2x32xf32, #tpu.memory_space<vmem>>, vector<1x2x32xf32>
    %462 = vector.shape_cast %461 : vector<1x2x32xf32> to vector<2x32xf32>
    %463 = vector.shape_cast %460 : vector<2x32xf32> to vector<1x2x32xf32>
    tpu.vector_store %arg9[%c0_93, %c0_94, %c0_95], %463 {strides = array<i32>} : memref<6x2x32xf32, #tpu.memory_space<vmem>>, vector<1x2x32xf32>,
    %464 = vector.extract_strided_slice %345 {offsets = [0, 0], sizes = [2, 16], strides = [1, 1]} : vector<2x32xf32> to vector<2x16xf32>
    %465 = vector.extract_strided_slice %429 {offsets = [0, 16], sizes = [2, 16], strides = [1, 1]} : vector<2x32xf32> to vector<2x16xf32>
    %466 = tpu.concatenate %464, %465 in 1 : vector<2x16xf32>, vector<2x16xf32> -> vector<2x32xf32>
    %c1_96 = arith.constant 1 : index
    %c0_97 = arith.constant 0 : index
    %c0_98 = arith.constant 0 : index
    %467 = vector.load %arg9[%c1_96, %c0_97, %c0_98] : memref<6x2x32xf32, #tpu.memory_space<vmem>>, vector<1x2x32xf32>
    %468 = vector.shape_cast %467 : vector<1x2x32xf32> to vector<2x32xf32>
    %469 = vector.shape_cast %466 : vector<2x32xf32> to vector<1x2x32xf32>
    tpu.vector_store %arg9[%c1_96, %c0_97, %c0_98], %469 {strides = array<i32>} : memref<6x2x32xf32, #tpu.memory_space<vmem>>, vector<1x2x32xf32>,
    %470 = vector.extract_strided_slice %373 {offsets = [0, 0], sizes = [2, 16], strides = [1, 1]} : vector<2x32xf32> to vector<2x16xf32>
    %471 = vector.extract_strided_slice %401 {offsets = [0, 16], sizes = [2, 16], strides = [1, 1]} : vector<2x32xf32> to vector<2x16xf32>
    %472 = tpu.concatenate %470, %471 in 1 : vector<2x16xf32>, vector<2x16xf32> -> vector<2x32xf32>
    %c2_99 = arith.constant 2 : index
    %c0_100 = arith.constant 0 : index
    %c0_101 = arith.constant 0 : index
    %473 = vector.load %arg9[%c2_99, %c0_100, %c0_101] : memref<6x2x32xf32, #tpu.memory_space<vmem>>, vector<1x2x32xf32>
    %474 = vector.shape_cast %473 : vector<1x2x32xf32> to vector<2x32xf32>
    %475 = vector.shape_cast %472 : vector<2x32xf32> to vector<1x2x32xf32>
    tpu.vector_store %arg9[%c2_99, %c0_100, %c0_101], %475 {strides = array<i32>} : memref<6x2x32xf32, #tpu.memory_space<vmem>>, vector<1x2x32xf32>,
    %476 = vector.extract_strided_slice %401 {offsets = [0, 0], sizes = [2, 16], strides = [1, 1]} : vector<2x32xf32> to vector<2x16xf32>
    %477 = vector.extract_strided_slice %373 {offsets = [0, 16], sizes = [2, 16], strides = [1, 1]} : vector<2x32xf32> to vector<2x16xf32>
    %478 = tpu.concatenate %476, %477 in 1 : vector<2x16xf32>, vector<2x16xf32> -> vector<2x32xf32>
    %c3_102 = arith.constant 3 : index
    %c0_103 = arith.constant 0 : index
    %c0_104 = arith.constant 0 : index
    %479 = vector.load %arg9[%c3_102, %c0_103, %c0_104] : memref<6x2x32xf32, #tpu.memory_space<vmem>>, vector<1x2x32xf32>
    %480 = vector.shape_cast %479 : vector<1x2x32xf32> to vector<2x32xf32>
    %481 = vector.shape_cast %478 : vector<2x32xf32> to vector<1x2x32xf32>
    tpu.vector_store %arg9[%c3_102, %c0_103, %c0_104], %481 {strides = array<i32>} : memref<6x2x32xf32, #tpu.memory_space<vmem>>, vector<1x2x32xf32>,
    %482 = vector.extract_strided_slice %429 {offsets = [0, 0], sizes = [2, 16], strides = [1, 1]} : vector<2x32xf32> to vector<2x16xf32>
    %483 = vector.extract_strided_slice %345 {offsets = [0, 16], sizes = [2, 16], strides = [1, 1]} : vector<2x32xf32> to vector<2x16xf32>
    %484 = tpu.concatenate %482, %483 in 1 : vector<2x16xf32>, vector<2x16xf32> -> vector<2x32xf32>
    %c4_105 = arith.constant 4 : index
    %c0_106 = arith.constant 0 : index
    %c0_107 = arith.constant 0 : index
    %485 = vector.load %arg9[%c4_105, %c0_106, %c0_107] : memref<6x2x32xf32, #tpu.memory_space<vmem>>, vector<1x2x32xf32>
    %486 = vector.shape_cast %485 : vector<1x2x32xf32> to vector<2x32xf32>
    %487 = vector.shape_cast %484 : vector<2x32xf32> to vector<1x2x32xf32>
    tpu.vector_store %arg9[%c4_105, %c0_106, %c0_107], %487 {strides = array<i32>} : memref<6x2x32xf32, #tpu.memory_space<vmem>>, vector<1x2x32xf32>,
    %488 = vector.extract_strided_slice %457 {offsets = [0, 0], sizes = [2, 16], strides = [1, 1]} : vector<2x32xf32> to vector<2x16xf32>
    %489 = vector.extract_strided_slice %317 {offsets = [0, 16], sizes = [2, 16], strides = [1, 1]} : vector<2x32xf32> to vector<2x16xf32>
    %490 = tpu.concatenate %488, %489 in 1 : vector<2x16xf32>, vector<2x16xf32> -> vector<2x32xf32>
    %c5_108 = arith.constant 5 : index
    %c0_109 = arith.constant 0 : index
    %c0_110 = arith.constant 0 : index
    %491 = vector.load %arg9[%c5_108, %c0_109, %c0_110] : memref<6x2x32xf32, #tpu.memory_space<vmem>>, vector<1x2x32xf32>
    %492 = vector.shape_cast %491 : vector<1x2x32xf32> to vector<2x32xf32>
    %493 = vector.shape_cast %490 : vector<2x32xf32> to vector<1x2x32xf32>
    tpu.vector_store %arg9[%c5_108, %c0_109, %c0_110], %493 {strides = array<i32>} : memref<6x2x32xf32, #tpu.memory_space<vmem>>, vector<1x2x32xf32>,
    return
  }
}

module attributes {stable_mosaic.version = 11 : i64} {
  func.func @_decoder_kernel(%arg0: memref<2x32xf32, #tpu.memory_space<vmem>>, %arg1: memref<2x30x40xf32, #tpu.memory_space<vmem>>, %arg2: memref<1x8xf32, #tpu.memory_space<vmem>>, %arg3: memref<8x128xf32, #tpu.memory_space<vmem>>, %arg4: memref<32x128xf32, #tpu.memory_space<vmem>>, %arg5: memref<32x128xf32, #tpu.memory_space<vmem>>, %arg6: memref<1x128xf32, #tpu.memory_space<vmem>>, %arg7: memref<32x40xf32, #tpu.memory_space<vmem>>, %arg8: memref<1x1xf32, #tpu.memory_space<vmem>>, %arg9: memref<2x150xf32, #tpu.memory_space<vmem>>) attributes {dimension_semantics = [], scalar_prefetch = 0 : i64, scratch_operands = 0 : i64, tpu.core_type = #tpu.core_type<tc>} {
    %c0 = arith.constant 0 : index
    %c0_0 = arith.constant 0 : index
    %c0_1 = arith.constant 0 : index
    %0 = vector.load %arg1[%c0, %c0_0, %c0_1] : memref<2x30x40xf32, #tpu.memory_space<vmem>>, vector<2x30x40xf32>
    %1 = vector.extract_strided_slice %0 {offsets = [0, 0, 0], sizes = [2, 30, 8], strides = [1, 1, 1]} : vector<2x30x40xf32> to vector<2x30x8xf32>
    %c0_2 = arith.constant 0 : index
    %c0_3 = arith.constant 0 : index
    %2 = vector.load %arg3[%c0_2, %c0_3] : memref<8x128xf32, #tpu.memory_space<vmem>>, vector<8x128xf32>
    %c0_4 = arith.constant 0 : index
    %c0_5 = arith.constant 0 : index
    %3 = vector.load %arg5[%c0_4, %c0_5] : memref<32x128xf32, #tpu.memory_space<vmem>>, vector<32x128xf32>
    %c0_6 = arith.constant 0 : index
    %c0_7 = arith.constant 0 : index
    %4 = vector.load %arg7[%c0_6, %c0_7] : memref<32x40xf32, #tpu.memory_space<vmem>>, vector<32x40xf32>
    %c0_8 = arith.constant 0 : index
    %c0_9 = arith.constant 0 : index
    %5 = vector.load %arg8[%c0_8, %c0_9] : memref<1x1xf32, #tpu.memory_space<vmem>>, vector<1x1xf32>
    %6 = vector.extract %5[0, 0] : f32 from vector<1x1xf32>
    %c0_10 = arith.constant 0 : index
    %c0_11 = arith.constant 0 : index
    %7 = vector.load %arg0[%c0_10, %c0_11] : memref<2x32xf32, #tpu.memory_space<vmem>>, vector<2x32xf32>
    %c0_12 = arith.constant 0 : index
    %c0_13 = arith.constant 0 : index
    %8 = vector.load %arg4[%c0_12, %c0_13] : memref<32x128xf32, #tpu.memory_space<vmem>>, vector<32x128xf32>
    %cst = arith.constant dense<0.000000e+00> : vector<2x128xf32>
    %9 = tpu.matmul %7, %8, %cst {dimension_numbers = #tpu.dot_dimension_numbers<[1], [0], [0], [1], [0, 0, 1, 1], [], []>} : vector<2x32xf32>, vector<32x128xf32>, vector<2x128xf32> -> vector<2x128xf32>
    %c0_14 = arith.constant 0 : index
    %c0_15 = arith.constant 0 : index
    %10 = vector.load %arg6[%c0_14, %c0_15] : memref<1x128xf32, #tpu.memory_space<vmem>>, vector<1x128xf32>
    %11 = vector.broadcast %10 : vector<1x128xf32> to vector<2x128xf32>
    %12 = arith.addf %9, %11 : vector<2x128xf32>
    %cst_16 = arith.constant 0.000000e+00 : f32
    %13 = vector.broadcast %cst_16 : f32 to vector<2x32xf32>
    %cst_17 = arith.constant 0.000000e+00 : f32
    %14 = vector.broadcast %cst_17 : f32 to vector<2x32xf32>
    %c0_18 = arith.constant 0 : index
    %c0_19 = arith.constant 0 : index
    %15 = vector.load %arg2[%c0_18, %c0_19] : memref<1x8xf32, #tpu.memory_space<vmem>>, vector<1x8xf32>
    %16 = vector.shape_cast %15 : vector<1x8xf32> to vector<1x8xf32>
    %17 = vector.broadcast %16 : vector<1x8xf32> to vector<2x8xf32>
    %18 = tpu.iota {dimensions = array<i32: 1>} : vector<2x30xi32>
    %c0_i32 = arith.constant 0 : i32
    %19 = vector.broadcast %c0_i32 : i32 to vector<2x30xi32>
    %20 = arith.cmpi eq, %18, %19 : vector<2x30xi32>
    %21 = arith.extui %20 : vector<2x30xi1> to vector<2x30xi32>
    %22 = arith.sitofp %21 : vector<2x30xi32> to vector<2x30xf32>
    %cst_20 = arith.constant dense<0.000000e+00> : vector<2x128xf32>
    %23 = tpu.matmul %17, %2, %cst_20 {dimension_numbers = #tpu.dot_dimension_numbers<[1], [0], [0], [1], [0, 0, 1, 1], [], []>} : vector<2x8xf32>, vector<8x128xf32>, vector<2x128xf32> -> vector<2x128xf32>
    %24 = arith.addf %12, %23 : vector<2x128xf32>
    %cst_21 = arith.constant dense<0.000000e+00> : vector<2x128xf32>
    %25 = tpu.matmul %13, %3, %cst_21 {dimension_numbers = #tpu.dot_dimension_numbers<[1], [0], [0], [1], [0, 0, 1, 1], [], []>} : vector<2x32xf32>, vector<32x128xf32>, vector<2x128xf32> -> vector<2x128xf32>
    %26 = arith.addf %24, %25 : vector<2x128xf32>
    %27 = vector.extract_strided_slice %26 {offsets = [0, 0], sizes = [2, 32], strides = [1, 1]} : vector<2x128xf32> to vector<2x32xf32>
    %28 = arith.negf %27 : vector<2x32xf32>
    %29 = math.exp %28 : vector<2x32xf32>
    %cst_22 = arith.constant 1.000000e+00 : f32
    %30 = vector.broadcast %cst_22 : f32 to vector<2x32xf32>
    %31 = arith.addf %30, %29 : vector<2x32xf32>
    %32 = arith.divf %30, %31 : vector<2x32xf32>
    %33 = vector.extract_strided_slice %26 {offsets = [0, 32], sizes = [2, 32], strides = [1, 1]} : vector<2x128xf32> to vector<2x32xf32>
    %34 = arith.negf %33 : vector<2x32xf32>
    %35 = math.exp %34 : vector<2x32xf32>
    %cst_23 = arith.constant 1.000000e+00 : f32
    %36 = vector.broadcast %cst_23 : f32 to vector<2x32xf32>
    %37 = arith.addf %36, %35 : vector<2x32xf32>
    %38 = arith.divf %36, %37 : vector<2x32xf32>
    %39 = vector.extract_strided_slice %26 {offsets = [0, 64], sizes = [2, 32], strides = [1, 1]} : vector<2x128xf32> to vector<2x32xf32>
    %40 = math.tanh %39 : vector<2x32xf32>
    %41 = vector.extract_strided_slice %26 {offsets = [0, 96], sizes = [2, 32], strides = [1, 1]} : vector<2x128xf32> to vector<2x32xf32>
    %42 = arith.negf %41 : vector<2x32xf32>
    %43 = math.exp %42 : vector<2x32xf32>
    %cst_24 = arith.constant 1.000000e+00 : f32
    %44 = vector.broadcast %cst_24 : f32 to vector<2x32xf32>
    %45 = arith.addf %44, %43 : vector<2x32xf32>
    %46 = arith.divf %44, %45 : vector<2x32xf32>
    %47 = arith.mulf %38, %14 : vector<2x32xf32>
    %48 = arith.mulf %32, %40 : vector<2x32xf32>
    %49 = arith.addf %47, %48 : vector<2x32xf32>
    %50 = math.tanh %49 : vector<2x32xf32>
    %51 = arith.mulf %46, %50 : vector<2x32xf32>
    %cst_25 = arith.constant dense<0.000000e+00> : vector<2x40xf32>
    %52 = tpu.matmul %51, %4, %cst_25 {dimension_numbers = #tpu.dot_dimension_numbers<[1], [0], [0], [1], [0, 0, 1, 1], [], []>} : vector<2x32xf32>, vector<32x40xf32>, vector<2x40xf32> -> vector<2x40xf32>
    %53 = vector.shape_cast %52 : vector<2x40xf32> to vector<2x1x40xf32>
    %cst_26 = arith.constant dense<0.000000e+00> : vector<2x1x30xf32>
    %54 = tpu.matmul %53, %0, %cst_26 {dimension_numbers = #tpu.dot_dimension_numbers<[2], [2], [1], [1], [0, 0, 0, 1, 1, 1], [0], [0]>} : vector<2x1x40xf32>, vector<2x30x40xf32>, vector<2x1x30xf32> -> vector<2x1x30xf32>
    %55 = vector.shape_cast %54 : vector<2x1x30xf32> to vector<2x30xf32>
    %56 = vector.broadcast %6 : f32 to vector<2x30xf32>
    %57 = arith.addf %55, %56 : vector<2x30xf32>
    %cst_27 = arith.constant dense<0xFF800000> : vector<2xf32>
    %58 = vector.multi_reduction <maximumf>, %57, %cst_27 [1] : vector<2x30xf32> to vector<2xf32>
    %59 = vector.shape_cast %58 : vector<2xf32> to vector<2x1xf32>
    %60 = vector.broadcast %59 : vector<2x1xf32> to vector<2x30xf32>
    %61 = arith.cmpf oge, %57, %60 : vector<2x30xf32>
    %c30_i32 = arith.constant 30 : i32
    %62 = vector.broadcast %c30_i32 : i32 to vector<2x30xi32>
    %63 = arith.select %61, %18, %62 : vector<2x30xi1>, vector<2x30xi32>
    %cst_28 = arith.constant dense<2147483647> : vector<2xi32>
    %64 = vector.multi_reduction <minsi>, %63, %cst_28 [1] : vector<2x30xi32> to vector<2xi32>
    %65 = vector.shape_cast %64 : vector<2xi32> to vector<2x1xi32>
    %66 = vector.broadcast %65 : vector<2x1xi32> to vector<2x30xi32>
    %67 = arith.cmpi eq, %18, %66 : vector<2x30xi32>
    %68 = arith.extui %67 : vector<2x30xi1> to vector<2x30xi32>
    %69 = arith.sitofp %68 : vector<2x30xi32> to vector<2x30xf32>
    %70 = vector.shape_cast %69 : vector<2x30xf32> to vector<2x1x30xf32>
    %cst_29 = arith.constant dense<0.000000e+00> : vector<2x1x8xf32>
    %71 = tpu.matmul %70, %1, %cst_29 {dimension_numbers = #tpu.dot_dimension_numbers<[2], [1], [1], [2], [0, 0, 0, 1, 1, 2], [0], [0]>} : vector<2x1x30xf32>, vector<2x30x8xf32>, vector<2x1x8xf32> -> vector<2x1x8xf32>
    %72 = vector.shape_cast %71 : vector<2x1x8xf32> to vector<2x8xf32>
    %cst_30 = arith.constant dense<0.000000e+00> : vector<2x128xf32>
    %73 = tpu.matmul %72, %2, %cst_30 {dimension_numbers = #tpu.dot_dimension_numbers<[1], [0], [0], [1], [0, 0, 1, 1], [], []>} : vector<2x8xf32>, vector<8x128xf32>, vector<2x128xf32> -> vector<2x128xf32>
    %74 = arith.addf %12, %73 : vector<2x128xf32>
    %cst_31 = arith.constant dense<0.000000e+00> : vector<2x128xf32>
    %75 = tpu.matmul %51, %3, %cst_31 {dimension_numbers = #tpu.dot_dimension_numbers<[1], [0], [0], [1], [0, 0, 1, 1], [], []>} : vector<2x32xf32>, vector<32x128xf32>, vector<2x128xf32> -> vector<2x128xf32>
    %76 = arith.addf %74, %75 : vector<2x128xf32>
    %77 = vector.extract_strided_slice %76 {offsets = [0, 0], sizes = [2, 32], strides = [1, 1]} : vector<2x128xf32> to vector<2x32xf32>
    %78 = arith.negf %77 : vector<2x32xf32>
    %79 = math.exp %78 : vector<2x32xf32>
    %cst_32 = arith.constant 1.000000e+00 : f32
    %80 = vector.broadcast %cst_32 : f32 to vector<2x32xf32>
    %81 = arith.addf %80, %79 : vector<2x32xf32>
    %82 = arith.divf %80, %81 : vector<2x32xf32>
    %83 = vector.extract_strided_slice %76 {offsets = [0, 32], sizes = [2, 32], strides = [1, 1]} : vector<2x128xf32> to vector<2x32xf32>
    %84 = arith.negf %83 : vector<2x32xf32>
    %85 = math.exp %84 : vector<2x32xf32>
    %cst_33 = arith.constant 1.000000e+00 : f32
    %86 = vector.broadcast %cst_33 : f32 to vector<2x32xf32>
    %87 = arith.addf %86, %85 : vector<2x32xf32>
    %88 = arith.divf %86, %87 : vector<2x32xf32>
    %89 = vector.extract_strided_slice %76 {offsets = [0, 64], sizes = [2, 32], strides = [1, 1]} : vector<2x128xf32> to vector<2x32xf32>
    %90 = math.tanh %89 : vector<2x32xf32>
    %91 = vector.extract_strided_slice %76 {offsets = [0, 96], sizes = [2, 32], strides = [1, 1]} : vector<2x128xf32> to vector<2x32xf32>
    %92 = arith.negf %91 : vector<2x32xf32>
    %93 = math.exp %92 : vector<2x32xf32>
    %cst_34 = arith.constant 1.000000e+00 : f32
    %94 = vector.broadcast %cst_34 : f32 to vector<2x32xf32>
    %95 = arith.addf %94, %93 : vector<2x32xf32>
    %96 = arith.divf %94, %95 : vector<2x32xf32>
    %97 = arith.mulf %88, %49 : vector<2x32xf32>
    %98 = arith.mulf %82, %90 : vector<2x32xf32>
    %99 = arith.addf %97, %98 : vector<2x32xf32>
    %100 = math.tanh %99 : vector<2x32xf32>
    %101 = arith.mulf %96, %100 : vector<2x32xf32>
    %cst_35 = arith.constant dense<0.000000e+00> : vector<2x40xf32>
    %102 = tpu.matmul %101, %4, %cst_35 {dimension_numbers = #tpu.dot_dimension_numbers<[1], [0], [0], [1], [0, 0, 1, 1], [], []>} : vector<2x32xf32>, vector<32x40xf32>, vector<2x40xf32> -> vector<2x40xf32>
    %103 = vector.shape_cast %102 : vector<2x40xf32> to vector<2x1x40xf32>
    %cst_36 = arith.constant dense<0.000000e+00> : vector<2x1x30xf32>
    %104 = tpu.matmul %103, %0, %cst_36 {dimension_numbers = #tpu.dot_dimension_numbers<[2], [2], [1], [1], [0, 0, 0, 1, 1, 1], [0], [0]>} : vector<2x1x40xf32>, vector<2x30x40xf32>, vector<2x1x30xf32> -> vector<2x1x30xf32>
    %105 = vector.shape_cast %104 : vector<2x1x30xf32> to vector<2x30xf32>
    %106 = vector.broadcast %6 : f32 to vector<2x30xf32>
    %107 = arith.addf %105, %106 : vector<2x30xf32>
    %cst_37 = arith.constant dense<0xFF800000> : vector<2xf32>
    %108 = vector.multi_reduction <maximumf>, %107, %cst_37 [1] : vector<2x30xf32> to vector<2xf32>
    %109 = vector.shape_cast %108 : vector<2xf32> to vector<2x1xf32>
    %110 = vector.broadcast %109 : vector<2x1xf32> to vector<2x30xf32>
    %111 = arith.cmpf oge, %107, %110 : vector<2x30xf32>
    %c30_i32_38 = arith.constant 30 : i32
    %112 = vector.broadcast %c30_i32_38 : i32 to vector<2x30xi32>
    %113 = arith.select %111, %18, %112 : vector<2x30xi1>, vector<2x30xi32>
    %cst_39 = arith.constant dense<2147483647> : vector<2xi32>
    %114 = vector.multi_reduction <minsi>, %113, %cst_39 [1] : vector<2x30xi32> to vector<2xi32>
    %115 = vector.shape_cast %114 : vector<2xi32> to vector<2x1xi32>
    %116 = vector.broadcast %115 : vector<2x1xi32> to vector<2x30xi32>
    %117 = arith.cmpi eq, %18, %116 : vector<2x30xi32>
    %118 = arith.extui %117 : vector<2x30xi1> to vector<2x30xi32>
    %119 = arith.sitofp %118 : vector<2x30xi32> to vector<2x30xf32>
    %120 = vector.shape_cast %119 : vector<2x30xf32> to vector<2x1x30xf32>
    %cst_40 = arith.constant dense<0.000000e+00> : vector<2x1x8xf32>
    %121 = tpu.matmul %120, %1, %cst_40 {dimension_numbers = #tpu.dot_dimension_numbers<[2], [1], [1], [2], [0, 0, 0, 1, 1, 2], [0], [0]>} : vector<2x1x30xf32>, vector<2x30x8xf32>, vector<2x1x8xf32> -> vector<2x1x8xf32>
    %122 = vector.shape_cast %121 : vector<2x1x8xf32> to vector<2x8xf32>
    %cst_41 = arith.constant dense<0.000000e+00> : vector<2x128xf32>
    %123 = tpu.matmul %122, %2, %cst_41 {dimension_numbers = #tpu.dot_dimension_numbers<[1], [0], [0], [1], [0, 0, 1, 1], [], []>} : vector<2x8xf32>, vector<8x128xf32>, vector<2x128xf32> -> vector<2x128xf32>
    %124 = arith.addf %12, %123 : vector<2x128xf32>
    %cst_42 = arith.constant dense<0.000000e+00> : vector<2x128xf32>
    %125 = tpu.matmul %101, %3, %cst_42 {dimension_numbers = #tpu.dot_dimension_numbers<[1], [0], [0], [1], [0, 0, 1, 1], [], []>} : vector<2x32xf32>, vector<32x128xf32>, vector<2x128xf32> -> vector<2x128xf32>
    %126 = arith.addf %124, %125 : vector<2x128xf32>
    %127 = vector.extract_strided_slice %126 {offsets = [0, 0], sizes = [2, 32], strides = [1, 1]} : vector<2x128xf32> to vector<2x32xf32>
    %128 = arith.negf %127 : vector<2x32xf32>
    %129 = math.exp %128 : vector<2x32xf32>
    %cst_43 = arith.constant 1.000000e+00 : f32
    %130 = vector.broadcast %cst_43 : f32 to vector<2x32xf32>
    %131 = arith.addf %130, %129 : vector<2x32xf32>
    %132 = arith.divf %130, %131 : vector<2x32xf32>
    %133 = vector.extract_strided_slice %126 {offsets = [0, 32], sizes = [2, 32], strides = [1, 1]} : vector<2x128xf32> to vector<2x32xf32>
    %134 = arith.negf %133 : vector<2x32xf32>
    %135 = math.exp %134 : vector<2x32xf32>
    %cst_44 = arith.constant 1.000000e+00 : f32
    %136 = vector.broadcast %cst_44 : f32 to vector<2x32xf32>
    %137 = arith.addf %136, %135 : vector<2x32xf32>
    %138 = arith.divf %136, %137 : vector<2x32xf32>
    %139 = vector.extract_strided_slice %126 {offsets = [0, 64], sizes = [2, 32], strides = [1, 1]} : vector<2x128xf32> to vector<2x32xf32>
    %140 = math.tanh %139 : vector<2x32xf32>
    %141 = vector.extract_strided_slice %126 {offsets = [0, 96], sizes = [2, 32], strides = [1, 1]} : vector<2x128xf32> to vector<2x32xf32>
    %142 = arith.negf %141 : vector<2x32xf32>
    %143 = math.exp %142 : vector<2x32xf32>
    %cst_45 = arith.constant 1.000000e+00 : f32
    %144 = vector.broadcast %cst_45 : f32 to vector<2x32xf32>
    %145 = arith.addf %144, %143 : vector<2x32xf32>
    %146 = arith.divf %144, %145 : vector<2x32xf32>
    %147 = arith.mulf %138, %99 : vector<2x32xf32>
    %148 = arith.mulf %132, %140 : vector<2x32xf32>
    %149 = arith.addf %147, %148 : vector<2x32xf32>
    %150 = math.tanh %149 : vector<2x32xf32>
    %151 = arith.mulf %146, %150 : vector<2x32xf32>
    %cst_46 = arith.constant dense<0.000000e+00> : vector<2x40xf32>
    %152 = tpu.matmul %151, %4, %cst_46 {dimension_numbers = #tpu.dot_dimension_numbers<[1], [0], [0], [1], [0, 0, 1, 1], [], []>} : vector<2x32xf32>, vector<32x40xf32>, vector<2x40xf32> -> vector<2x40xf32>
    %153 = vector.shape_cast %152 : vector<2x40xf32> to vector<2x1x40xf32>
    %cst_47 = arith.constant dense<0.000000e+00> : vector<2x1x30xf32>
    %154 = tpu.matmul %153, %0, %cst_47 {dimension_numbers = #tpu.dot_dimension_numbers<[2], [2], [1], [1], [0, 0, 0, 1, 1, 1], [0], [0]>} : vector<2x1x40xf32>, vector<2x30x40xf32>, vector<2x1x30xf32> -> vector<2x1x30xf32>
    %155 = vector.shape_cast %154 : vector<2x1x30xf32> to vector<2x30xf32>
    %156 = vector.broadcast %6 : f32 to vector<2x30xf32>
    %157 = arith.addf %155, %156 : vector<2x30xf32>
    %cst_48 = arith.constant dense<0xFF800000> : vector<2xf32>
    %158 = vector.multi_reduction <maximumf>, %157, %cst_48 [1] : vector<2x30xf32> to vector<2xf32>
    %159 = vector.shape_cast %158 : vector<2xf32> to vector<2x1xf32>
    %160 = vector.broadcast %159 : vector<2x1xf32> to vector<2x30xf32>
    %161 = arith.cmpf oge, %157, %160 : vector<2x30xf32>
    %c30_i32_49 = arith.constant 30 : i32
    %162 = vector.broadcast %c30_i32_49 : i32 to vector<2x30xi32>
    %163 = arith.select %161, %18, %162 : vector<2x30xi1>, vector<2x30xi32>
    %cst_50 = arith.constant dense<2147483647> : vector<2xi32>
    %164 = vector.multi_reduction <minsi>, %163, %cst_50 [1] : vector<2x30xi32> to vector<2xi32>
    %165 = vector.shape_cast %164 : vector<2xi32> to vector<2x1xi32>
    %166 = vector.broadcast %165 : vector<2x1xi32> to vector<2x30xi32>
    %167 = arith.cmpi eq, %18, %166 : vector<2x30xi32>
    %168 = arith.extui %167 : vector<2x30xi1> to vector<2x30xi32>
    %169 = arith.sitofp %168 : vector<2x30xi32> to vector<2x30xf32>
    %170 = vector.shape_cast %169 : vector<2x30xf32> to vector<2x1x30xf32>
    %cst_51 = arith.constant dense<0.000000e+00> : vector<2x1x8xf32>
    %171 = tpu.matmul %170, %1, %cst_51 {dimension_numbers = #tpu.dot_dimension_numbers<[2], [1], [1], [2], [0, 0, 0, 1, 1, 2], [0], [0]>} : vector<2x1x30xf32>, vector<2x30x8xf32>, vector<2x1x8xf32> -> vector<2x1x8xf32>
    %172 = vector.shape_cast %171 : vector<2x1x8xf32> to vector<2x8xf32>
    %cst_52 = arith.constant dense<0.000000e+00> : vector<2x128xf32>
    %173 = tpu.matmul %172, %2, %cst_52 {dimension_numbers = #tpu.dot_dimension_numbers<[1], [0], [0], [1], [0, 0, 1, 1], [], []>} : vector<2x8xf32>, vector<8x128xf32>, vector<2x128xf32> -> vector<2x128xf32>
    %174 = arith.addf %12, %173 : vector<2x128xf32>
    %cst_53 = arith.constant dense<0.000000e+00> : vector<2x128xf32>
    %175 = tpu.matmul %151, %3, %cst_53 {dimension_numbers = #tpu.dot_dimension_numbers<[1], [0], [0], [1], [0, 0, 1, 1], [], []>} : vector<2x32xf32>, vector<32x128xf32>, vector<2x128xf32> -> vector<2x128xf32>
    %176 = arith.addf %174, %175 : vector<2x128xf32>
    %177 = vector.extract_strided_slice %176 {offsets = [0, 0], sizes = [2, 32], strides = [1, 1]} : vector<2x128xf32> to vector<2x32xf32>
    %178 = arith.negf %177 : vector<2x32xf32>
    %179 = math.exp %178 : vector<2x32xf32>
    %cst_54 = arith.constant 1.000000e+00 : f32
    %180 = vector.broadcast %cst_54 : f32 to vector<2x32xf32>
    %181 = arith.addf %180, %179 : vector<2x32xf32>
    %182 = arith.divf %180, %181 : vector<2x32xf32>
    %183 = vector.extract_strided_slice %176 {offsets = [0, 32], sizes = [2, 32], strides = [1, 1]} : vector<2x128xf32> to vector<2x32xf32>
    %184 = arith.negf %183 : vector<2x32xf32>
    %185 = math.exp %184 : vector<2x32xf32>
    %cst_55 = arith.constant 1.000000e+00 : f32
    %186 = vector.broadcast %cst_55 : f32 to vector<2x32xf32>
    %187 = arith.addf %186, %185 : vector<2x32xf32>
    %188 = arith.divf %186, %187 : vector<2x32xf32>
    %189 = vector.extract_strided_slice %176 {offsets = [0, 64], sizes = [2, 32], strides = [1, 1]} : vector<2x128xf32> to vector<2x32xf32>
    %190 = math.tanh %189 : vector<2x32xf32>
    %191 = vector.extract_strided_slice %176 {offsets = [0, 96], sizes = [2, 32], strides = [1, 1]} : vector<2x128xf32> to vector<2x32xf32>
    %192 = arith.negf %191 : vector<2x32xf32>
    %193 = math.exp %192 : vector<2x32xf32>
    %cst_56 = arith.constant 1.000000e+00 : f32
    %194 = vector.broadcast %cst_56 : f32 to vector<2x32xf32>
    %195 = arith.addf %194, %193 : vector<2x32xf32>
    %196 = arith.divf %194, %195 : vector<2x32xf32>
    %197 = arith.mulf %188, %149 : vector<2x32xf32>
    %198 = arith.mulf %182, %190 : vector<2x32xf32>
    %199 = arith.addf %197, %198 : vector<2x32xf32>
    %200 = math.tanh %199 : vector<2x32xf32>
    %201 = arith.mulf %196, %200 : vector<2x32xf32>
    %cst_57 = arith.constant dense<0.000000e+00> : vector<2x40xf32>
    %202 = tpu.matmul %201, %4, %cst_57 {dimension_numbers = #tpu.dot_dimension_numbers<[1], [0], [0], [1], [0, 0, 1, 1], [], []>} : vector<2x32xf32>, vector<32x40xf32>, vector<2x40xf32> -> vector<2x40xf32>
    %203 = vector.shape_cast %202 : vector<2x40xf32> to vector<2x1x40xf32>
    %cst_58 = arith.constant dense<0.000000e+00> : vector<2x1x30xf32>
    %204 = tpu.matmul %203, %0, %cst_58 {dimension_numbers = #tpu.dot_dimension_numbers<[2], [2], [1], [1], [0, 0, 0, 1, 1, 1], [0], [0]>} : vector<2x1x40xf32>, vector<2x30x40xf32>, vector<2x1x30xf32> -> vector<2x1x30xf32>
    %205 = vector.shape_cast %204 : vector<2x1x30xf32> to vector<2x30xf32>
    %206 = vector.broadcast %6 : f32 to vector<2x30xf32>
    %207 = arith.addf %205, %206 : vector<2x30xf32>
    %208 = tpu.concatenate %22, %57, %107, %157, %207 in 1 : vector<2x30xf32>, vector<2x30xf32>, vector<2x30xf32>, vector<2x30xf32>, vector<2x30xf32> -> vector<2x150xf32>
    %c0_59 = arith.constant 0 : index
    %c0_60 = arith.constant 0 : index
    %209 = vector.load %arg9[%c0_59, %c0_60] : memref<2x150xf32, #tpu.memory_space<vmem>>, vector<2x150xf32>
    tpu.vector_store %arg9[%c0_59, %c0_60], %208 {strides = array<i32>} : memref<2x150xf32, #tpu.memory_space<vmem>>, vector<2x150xf32>,
    return
  }
}

</mosaic_0001>

<llo_original>
// kernel: squeeze.2
$region0: #{squeeze.2}
  %s0 = inlined_call_operand.vmem [shape: f32[1,12,32], index: 0, kind: input, shape index: {}]
  %s1 = inlined_call_operand.vmem [shape: f32[2,6,32], index: 1, kind: output, shape index: {}]
  %v2 = vld [vmem:[%s0] sm:$0xff]
  %vm3 = vcmask 261120
  %4 = vst.msk [vmem:[%s1] sm:$0x3f] %vm3, %v2
  %s5 = scalar_lea.vmem %s1, 2
  %6 = vst.msk [vmem:[%s5] sm:$0xc0] %vm3, %v2
  %s7 = scalar_lea.vmem %s0, 8
  %v8 = vld [vmem:[%s7] sm:$0xf]
  %vm9 = vcmask 261120
  %s10 = scalar_lea.vmem %s1, 10
  %11 = vst.msk [vmem:[%s10] sm:$0xf] %vm9, %v8

// kernel: nl2sql_forward.3
$region0: #{nl2sql_forward.3}
  #allocation0 [shape = 'u32[]', space=smem, size = 0x4, offset = 0x4, fixed_abs, tag = 'smem constant byte address 0x4 - core index']
  #allocation1 [shape = 'u32[72,128]{1,0:T(1,128)}', space=vmem, size = 0x9000, scoped, tag = 'internal scratch']
  %s0 = inlined_call_operand.vmem [shape: f32[64,32], index: 0, kind: input, shape index: {}]
  %s1 = inlined_call_operand.vmem [shape: f32[32,128], index: 1, kind: input, shape index: {}]
  %s2 = inlined_call_operand.vmem [shape: f32[32,128], index: 2, kind: input, shape index: {}]
  %s3 = inlined_call_operand.vmem [shape: f32[1,128], index: 3, kind: input, shape index: {}]
  %s4 = inlined_call_operand.vmem [shape: f32[8,2,32], index: 4, kind: output, shape index: {0}]
  %s5 = inlined_call_operand.vmem [shape: f32[4,12,32], index: 5, kind: output, shape index: {1}]
  %6 = xla_tuple %s4, %s5
  %s7 = sld [smem:[#allocation0]]
  $region34: #{nl2sql_forward.3} parent=0
    _
  %s9 = ssub.s32 1, %s7
  %s10 = scalar_select 0, %s9, %s7
  // Predicated region
  $region2: #{nl2sql_forward.3} parent=0 // pred_check
    _
  $region3: #{nl2sql_forward.3} parent=0 // pred_check_branch
    %12 = sbr.rel (0) target = $region5
  $region4: #{nl2sql_forward.3} parent=0 // pred_region
    _
  $region5: #{nl2sql_forward.3} parent=0 // pred_fallthru
    _
  // Predicated region
  $region6: #{nl2sql_forward.3} parent=0 // pred_check
    _
  $region7: #{nl2sql_forward.3} parent=0 // pred_check_branch
    %14 = sbr.rel (0) target = $region9
  $region8: #{nl2sql_forward.3} parent=0 // pred_region
    _
  $region9: #{nl2sql_forward.3} parent=0 // pred_fallthru
    _
  // Predicated region
  $region10: #{nl2sql_forward.3} parent=0 // pred_check
    _
  $region11: #{nl2sql_forward.3} parent=0 // pred_check_branch
    %16 = sbr.rel (0) target = $region13
  $region12: #{nl2sql_forward.3} parent=0 // pred_region
    _
  $region13: #{nl2sql_forward.3} parent=0 // pred_fallthru
    _
  // Predicated region
  $region14: #{nl2sql_forward.3} parent=0 // pred_check
    _
  $region15: #{nl2sql_forward.3} parent=0 // pred_check_branch
    %18 = sbr.rel (0) target = $region17
  $region16: #{nl2sql_forward.3} parent=0 // pred_region
    _
  $region17: #{nl2sql_forward.3} parent=0 // pred_fallthru
    _
  %v19 = vld [vmem:[%s0] sm:$0xff]
  %v20 = vld [vmem:[%s0 + $0x8] sm:$0xff]
  %v21 = vld [vmem:[%s0 + $0x10] sm:$0xff]
  %v22 = vld [vmem:[%s0 + $0x18] sm:$0xff]
  %v23 = vld [vmem:[%s0 + $0x20] sm:$0xff]
  %v24 = vld [vmem:[%s0 + $0x28] sm:$0xff]
  %v25 = vld [vmem:[%s0 + $0x30] sm:$0xff]
  %v26 = vld [vmem:[%s0 + $0x38] sm:$0xff]
  %v27 = vld [vmem:[%s1] sm:$0xff]
  %v28 = vld [vmem:[%s1 + $0x8] sm:$0xff]
  %v29 = vld [vmem:[%s1 + $0x10] sm:$0xff]
  %v30 = vld [vmem:[%s1 + $0x18] sm:$0xff]
  %v31 = vld [vmem:[%s3] sm:$0x1]
  %v33 = vperm.slane %v31, 0
  %vm35 = vcmask 261120
  %v37 = vsel %vm35, %v19, 0
  %v40 = vsel %vm35, %v20, 0
  %v43 = vsel %vm35, %v21, 0
  %v46 = vsel %vm35, %v22, 0
  %v49 = vsel %vm35, %v23, 0
  %v52 = vsel %vm35, %v24, 0
  %v55 = vsel %vm35, %v25, 0
  %v58 = vsel %vm35, %v26, 0
  %60 = vmatpush.msra.mxu0 0.0
  %61 = vmatpush.msra.mxu0 0.0
  %62 = vmatpush.msra.mxu0 0.0
  %63 = vmatpush.msra.mxu0 0.0
  %64 = vmatpush.msra.mxu0 0.0
  %65 = vmatpush.msra.mxu0 0.0
  %66 = vmatpush.msra.mxu0 0.0
  %67 = vmatpush.msra.mxu0 0.0
  %68 = vmatpush.msra.mxu0 0.0
  %69 = vmatpush.msra.mxu0 0.0
  %70 = vmatpush.msra.mxu0 0.0
  %71 = vmatpush.msra.mxu0 0.0
  %72 = vmatpush.msra.mxu0 %v30
  %73 = vmatpush.msra.mxu0 %v29
  %74 = vmatpush.msra.mxu0 %v28
  %75 = vmatpush.msra.mxu0 %v27
  %76 = vmatmul.f32.gmra.mxu0 %v37
  %v77 = vpop.f32.mrf.mxu0
  %v78 = vadd.f32 %v33, %v77
  %79 = vmatmul.f32.gmra.mxu0 %v40
  %v80 = vpop.f32.mrf.mxu0
  %v81 = vadd.f32 %v33, %v80
  %82 = vmatmul.f32.gmra.mxu0 %v43
  %v83 = vpop.f32.mrf.mxu0
  %v84 = vadd.f32 %v33, %v83
  %85 = vmatmul.f32.gmra.mxu0 %v46
  %v86 = vpop.f32.mrf.mxu0
  %v87 = vadd.f32 %v33, %v86
  %88 = vmatmul.f32.gmra.mxu0 %v49
  %v89 = vpop.f32.mrf.mxu0
  %v90 = vadd.f32 %v33, %v89
  %91 = vmatmul.f32.gmra.mxu0 %v52
  %v92 = vpop.f32.mrf.mxu0
  %v93 = vadd.f32 %v33, %v92
  %94 = vmatmul.f32.gmra.mxu0 %v55
  %v95 = vpop.f32.mrf.mxu0
  %v96 = vadd.f32 %v33, %v95
  %97 = vmatmul.f32.gmra.mxu0 %v58
  %v98 = vpop.f32.mrf.mxu0
  %v99 = vadd.f32 %v33, %v98
  %100 = vdwg.mxu0
  %v101 = vld [vmem:[%s2] sm:$0xff]
  %v102 = vld [vmem:[%s2 + $0x8] sm:$0xff]
  %v103 = vld [vmem:[%s2 + $0x10] sm:$0xff]
  %v104 = vld [vmem:[%s2 + $0x18] sm:$0xff]
  %v106 = vsel %vm35, 0.0, 0
  %108 = vmatpush.msra.mxu0 0.0
  %109 = vmatpush.msra.mxu0 0.0
  %110 = vmatpush.msra.mxu0 0.0
  %111 = vmatpush.msra.mxu0 0.0
  %112 = vmatpush.msra.mxu0 0.0
  %113 = vmatpush.msra.mxu0 0.0
  %114 = vmatpush.msra.mxu0 0.0
  %115 = vmatpush.msra.mxu0 0.0
  %116 = vmatpush.msra.mxu0 0.0
  %117 = vmatpush.msra.mxu0 0.0
  %118 = vmatpush.msra.mxu0 0.0
  %119 = vmatpush.msra.mxu0 0.0
  %120 = vmatpush.msra.mxu0 %v104
  %121 = vmatpush.msra.mxu0 %v103
  %122 = vmatpush.msra.mxu0 %v102
  %123 = vmatpush.msra.mxu0 %v101
  %124 = vmatmul.f32.gmra.mxu0 %v106
  %v125 = vpop.f32.mrf.mxu0
  %v126 = vadd.f32 0.0, %v125
  %127 = vdwg.mxu0
  %v128 = vadd.f32 %v78, %v126
  %v129 = vxor.u32 %v128, 2147483648
  %v130 = vmul.f32 %v129, 1.442695
  %v131 = vpow.pop %v130
  %v132 = vadd.f32 %v131, 1.0
  %v133 = vrcp.pop %v132
  %v134 = vmul.f32 %v132, %v133
  %v135 = vsub.f32 1.0, %v134
  %v136 = vmul.f32 %v133, %v135
  %v137 = vadd.f32 %v133, %v136
  %vm138 = vweird.f32 %v132
  %vm139 = vweird.f32 %v133
  %vm140 = vmor %vm138, %vm139
  %v141 = vsel %vm140, %v133, %v137
  %v142 = vand.u32 2147483647, %v132
  %vm143 = vcmp.eq.f32.partialorder %v142, 8.507059e+37
  %v144 = vand.u32 %v132, 2147483648
  %v145 = vor.u32 1.1754944e-38, %v144
  %v146 = vsel %vm143, %v145, %v141
  %v147 = vmul.f32 1.0, %v146
  %v148 = vtanh.pop %v128
  %v149 = vmul.f32 %v147, 0.0
  %151 = vrot.lane.b32.xlu0 %v148, 64
  %v152 = vpop.permute.xlu0 %151
  %v154 = vmul.f32 %v147, %v152
  %156 = vrot.lane.b32.xlu0 %v154, 32
  %v157 = vpop.permute.xlu0 %156
  %v159 = vadd.f32 %v149, %v157
  %v160 = vtanh.pop %v159
  %162 = vrot.lane.b32.xlu0 %v160, 64
  %v163 = vpop.permute.xlu0 %162
  %v165 = vmul.f32 %v147, %v163
  %167 = vrot.lane.b32.xlu0 %v165, 32
  %v168 = vpop.permute.xlu0 %167
  %v169 = vsel %vm35, %v168, 0
  %171 = vmatpush.msra.mxu0 0.0
  %172 = vmatpush.msra.mxu0 0.0
  %173 = vmatpush.msra.mxu0 0.0
  %174 = vmatpush.msra.mxu0 0.0
  %175 = vmatpush.msra.mxu0 0.0
  %176 = vmatpush.msra.mxu0 0.0
  %177 = vmatpush.msra.mxu0 0.0
  %178 = vmatpush.msra.mxu0 0.0
  %179 = vmatpush.msra.mxu0 0.0
  %180 = vmatpush.msra.mxu0 0.0
  %181 = vmatpush.msra.mxu0 0.0
  %182 = vmatpush.msra.mxu0 0.0
  %183 = vmatpush.msra.mxu0 %v104
  %184 = vmatpush.msra.mxu0 %v103
  %185 = vmatpush.msra.mxu0 %v102
  %186 = vmatpush.msra.mxu0 %v101
  %187 = vmatmul.f32.gmra.mxu0 %v169
  %v188 = vpop.f32.mrf.mxu0
  %v189 = vadd.f32 0.0, %v188
  %190 = vdwg.mxu0
  %v192 = vrot.slane %v189, 6
  %v194 = vadd.f32 %v78, %v192
  %v195 = vxor.u32 %v194, 2147483648
  %v196 = vmul.f32 %v195, 1.442695
  %v197 = vpow.pop %v196
  %v198 = vadd.f32 %v197, 1.0
  %v199 = vrcp.pop %v198
  %v200 = vmul.f32 %v198, %v199
  %v201 = vsub.f32 1.0, %v200
  %v202 = vmul.f32 %v199, %v201
  %v203 = vadd.f32 %v199, %v202
  %vm204 = vweird.f32 %v198
  %vm205 = vweird.f32 %v199
  %vm206 = vmor %vm204, %vm205
  %v207 = vsel %vm206, %v199, %v203
  %v208 = vand.u32 2147483647, %v198
  %vm209 = vcmp.eq.f32.partialorder %v208, 8.507059e+37
  %v210 = vand.u32 %v198, 2147483648
  %v211 = vor.u32 1.1754944e-38, %v210
  %v212 = vsel %vm209, %v211, %v207
  %v213 = vmul.f32 1.0, %v212
  %v214 = vtanh.pop %v194
  %v216 = vrot.slane %v159, 6
  %v218 = vmul.f32 %v213, %v216
  %220 = vrot.lane.b32.xlu0 %v214, 64
  %v221 = vpop.permute.xlu0 %220
  %v223 = vmul.f32 %v213, %v221
  %225 = vrot.lane.b32.xlu0 %v223, 32
  %v226 = vpop.permute.xlu0 %225
  %v228 = vadd.f32 %v218, %v226
  %v229 = vtanh.pop %v228
  %231 = vrot.lane.b32.xlu0 %v229, 64
  %v232 = vpop.permute.xlu0 %231
  %v234 = vmul.f32 %v213, %v232
  %v236 = vrot.slane %v234, 2
  %237 = vrot.lane.b32.xlu0 %v236, 32
  %v238 = vpop.permute.xlu0 %237
  %v239 = vsel %vm35, %v238, 0
  %241 = vmatpush.msra.mxu0 0.0
  %242 = vmatpush.msra.mxu0 0.0
  %243 = vmatpush.msra.mxu0 0.0
  %244 = vmatpush.msra.mxu0 0.0
  %245 = vmatpush.msra.mxu0 0.0
  %246 = vmatpush.msra.mxu0 0.0
  %247 = vmatpush.msra.mxu0 0.0
  %248 = vmatpush.msra.mxu0 0.0
  %249 = vmatpush.msra.mxu0 0.0
  %250 = vmatpush.msra.mxu0 0.0
  %251 = vmatpush.msra.mxu0 0.0
  %252 = vmatpush.msra.mxu0 0.0
  %253 = vmatpush.msra.mxu0 %v104
  %254 = vmatpush.msra.mxu0 %v103
  %255 = vmatpush.msra.mxu0 %v102
  %256 = vmatpush.msra.mxu0 %v101
  %257 = vmatmul.f32.gmra.mxu0 %v239
  %v258 = vpop.f32.mrf.mxu0
  %v259 = vadd.f32 0.0, %v258
  %260 = vdwg.mxu0
  %v262 = vrot.slane %v259, 4
  %v264 = vadd.f32 %v78, %v262
  %v265 = vxor.u32 %v264, 2147483648
  %v266 = vmul.f32 %v265, 1.442695
  %v267 = vpow.pop %v266
  %v268 = vadd.f32 %v267, 1.0
  %v269 = vrcp.pop %v268
  %v270 = vmul.f32 %v268, %v269
  %v271 = vsub.f32 1.0, %v270
  %v272 = vmul.f32 %v269, %v271
  %v273 = vadd.f32 %v269, %v272
  %vm274 = vweird.f32 %v268
  %vm275 = vweird.f32 %v269
  %vm276 = vmor %vm274, %vm275
  %v277 = vsel %vm276, %v269, %v273
  %v278 = vand.u32 2147483647, %v268
  %vm279 = vcmp.eq.f32.partialorder %v278, 8.507059e+37
  %v280 = vand.u32 %v268, 2147483648
  %v281 = vor.u32 1.1754944e-38, %v280
  %v282 = vsel %vm279, %v281, %v277
  %v283 = vmul.f32 1.0, %v282
  %v284 = vtanh.pop %v264
  %v286 = vrot.slane %v228, 6
  %v288 = vmul.f32 %v283, %v286
  %290 = vrot.lane.b32.xlu0 %v284, 64
  %v291 = vpop.permute.xlu0 %290
  %v293 = vmul.f32 %v283, %v291
  %295 = vrot.lane.b32.xlu0 %v293, 32
  %v296 = vpop.permute.xlu0 %295
  %v298 = vadd.f32 %v288, %v296
  %v299 = vtanh.pop %v298
  %301 = vrot.lane.b32.xlu0 %v299, 64
  %v302 = vpop.permute.xlu0 %301
  %v304 = vmul.f32 %v283, %v302
  %v306 = vrot.slane %v304, 4
  %307 = vrot.lane.b32.xlu0 %v306, 32
  %v308 = vpop.permute.xlu0 %307
  %v309 = vsel %vm35, %v308, 0
  %311 = vmatpush.msra.mxu0 0.0
  %312 = vmatpush.msra.mxu0 0.0
  %313 = vmatpush.msra.mxu0 0.0
  %314 = vmatpush.msra.mxu0 0.0
  %315 = vmatpush.msra.mxu0 0.0
  %316 = vmatpush.msra.mxu0 0.0
  %317 = vmatpush.msra.mxu0 0.0
  %318 = vmatpush.msra.mxu0 0.0
  %319 = vmatpush.msra.mxu0 0.0
  %320 = vmatpush.msra.mxu0 0.0
  %321 = vmatpush.msra.mxu0 0.0
  %322 = vmatpush.msra.mxu0 0.0
  %323 = vmatpush.msra.mxu0 %v104
  %324 = vmatpush.msra.mxu0 %v103
  %325 = vmatpush.msra.mxu0 %v102
  %326 = vmatpush.msra.mxu0 %v101
  %327 = vmatmul.f32.gmra.mxu0 %v309
  %v328 = vpop.f32.mrf.mxu0
  %v329 = vadd.f32 0.0, %v328
  %330 = vdwg.mxu0
  %v332 = vrot.slane %v329, 2
  %v334 = vadd.f32 %v78, %v332
  %v335 = vxor.u32 %v334, 2147483648
  %v336 = vmul.f32 %v335, 1.442695
  %v337 = vpow.pop %v336
  %v338 = vadd.f32 %v337, 1.0
  %v339 = vrcp.pop %v338
  %v340 = vmul.f32 %v338, %v339
  %v341 = vsub.f32 1.0, %v340
  %v342 = vmul.f32 %v339, %v341
  %v343 = vadd.f32 %v339, %v342
  %vm344 = vweird.f32 %v338
  %vm345 = vweird.f32 %v339
  %vm346 = vmor %vm344, %vm345
  %v347 = vsel %vm346, %v339, %v343
  %v348 = vand.u32 2147483647, %v338
  %vm349 = vcmp.eq.f32.partialorder %v348, 8.507059e+37
  %v350 = vand.u32 %v338, 2147483648
  %v351 = vor.u32 1.1754944e-38, %v350
  %v352 = vsel %vm349, %v351, %v347
  %v353 = vmul.f32 1.0, %v352
  %v354 = vtanh.pop %v334
  %v356 = vrot.slane %v298, 6
  %v358 = vmul.f32 %v353, %v356
  %360 = vrot.lane.b32.xlu0 %v354, 64
  %v361 = vpop.permute.xlu0 %360
  %v363 = vmul.f32 %v353, %v361
  %365 = vrot.lane.b32.xlu0 %v363, 32
  %v366 = vpop.permute.xlu0 %365
  %v368 = vadd.f32 %v358, %v366
  %v369 = vtanh.pop %v368
  %371 = vrot.lane.b32.xlu0 %v369, 64
  %v372 = vpop.permute.xlu0 %371
  %v374 = vmul.f32 %v353, %v372
  %v376 = vrot.slane %v374, 6
  %377 = vrot.lane.b32.xlu0 %v376, 32
  %v378 = vpop.permute.xlu0 %377
  %v379 = vsel %vm35, %v378, 0
  %381 = vmatpush.msra.mxu0 0.0
  %382 = vmatpush.msra.mxu0 0.0
  %383 = vmatpush.msra.mxu0 0.0
  %384 = vmatpush.msra.mxu0 0.0
  %385 = vmatpush.msra.mxu0 0.0
  %386 = vmatpush.msra.mxu0 0.0
  %387 = vmatpush.msra.mxu0 0.0
  %388 = vmatpush.msra.mxu0 0.0
  %389 = vmatpush.msra.mxu0 0.0
  %390 = vmatpush.msra.mxu0 0.0
  %391 = vmatpush.msra.mxu0 0.0
  %392 = vmatpush.msra.mxu0 0.0
  %393 = vmatpush.msra.mxu0 %v104
  %394 = vmatpush.msra.mxu0 %v103
  %395 = vmatpush.msra.mxu0 %v102
  %396 = vmatpush.msra.mxu0 %v101
  %397 = vmatmul.f32.gmra.mxu0 %v379
  %v398 = vpop.f32.mrf.mxu0
  %v399 = vadd.f32 0.0, %v398
  %400 = vdwg.mxu0
  %v401 = vadd.f32 %v81, %v399
  %v402 = vxor.u32 %v401, 2147483648
  %v403 = vmul.f32 %v402, 1.442695
  %v404 = vpow.pop %v403
  %v405 = vadd.f32 %v404, 1.0
  %v406 = vrcp.pop %v405
  %v407 = vmul.f32 %v405, %v406
  %v408 = vsub.f32 1.0, %v407
  %v409 = vmul.f32 %v406, %v408
  %v410 = vadd.f32 %v406, %v409
  %vm411 = vweird.f32 %v405
  %vm412 = vweird.f32 %v406
  %vm413 = vmor %vm411, %vm412
  %v414 = vsel %vm413, %v406, %v410
  %v415 = vand.u32 2147483647, %v405
  %vm416 = vcmp.eq.f32.partialorder %v415, 8.507059e+37
  %v417 = vand.u32 %v405, 2147483648
  %v418 = vor.u32 1.1754944e-38, %v417
  %v419 = vsel %vm416, %v418, %v414
  %v420 = vmul.f32 1.0, %v419
  %v421 = vtanh.pop %v401
  %v423 = vrot.slane %v368, 6
  %v425 = vmul.f32 %v420, %v423
  %427 = vrot.lane.b32.xlu0 %v421, 64
  %v428 = vpop.permute.xlu0 %427
  %v430 = vmul.f32 %v420, %v428
  %432 = vrot.lane.b32.xlu0 %v430, 32
  %v433 = vpop.permute.xlu0 %432
  %v435 = vadd.f32 %v425, %v433
  %v436 = vtanh.pop %v435
  %438 = vrot.lane.b32.xlu0 %v436, 64
  %v439 = vpop.permute.xlu0 %438
  %v441 = vmul.f32 %v420, %v439
  %443 = vrot.lane.b32.xlu0 %v441, 32
  %v444 = vpop.permute.xlu0 %443
  %v445 = vsel %vm35, %v444, 0
  %447 = vmatpush.msra.mxu0 0.0
  %448 = vmatpush.msra.mxu0 0.0
  %449 = vmatpush.msra.mxu0 0.0
  %450 = vmatpush.msra.mxu0 0.0
  %451 = vmatpush.msra.mxu0 0.0
  %452 = vmatpush.msra.mxu0 0.0
  %453 = vmatpush.msra.mxu0 0.0
  %454 = vmatpush.msra.mxu0 0.0
  %455 = vmatpush.msra.mxu0 0.0
  %456 = vmatpush.msra.mxu0 0.0
  %457 = vmatpush.msra.mxu0 0.0
  %458 = vmatpush.msra.mxu0 0.0
  %459 = vmatpush.msra.mxu0 %v104
  %460 = vmatpush.msra.mxu0 %v103
  %461 = vmatpush.msra.mxu0 %v102
  %462 = vmatpush.msra.mxu0 %v101
  %463 = vmatmul.f32.gmra.mxu0 %v445
  %v464 = vpop.f32.mrf.mxu0
  %v465 = vadd.f32 0.0, %v464
  %466 = vdwg.mxu0
  %v468 = vrot.slane %v465, 6
  %v470 = vadd.f32 %v81, %v468
  %v471 = vxor.u32 %v470, 2147483648
  %v472 = vmul.f32 %v471, 1.442695
  %v473 = vpow.pop %v472
  %v474 = vadd.f32 %v473, 1.0
  %v475 = vrcp.pop %v474
  %v476 = vmul.f32 %v474, %v475
  %v477 = vsub.f32 1.0, %v476
  %v478 = vmul.f32 %v475, %v477
  %v479 = vadd.f32 %v475, %v478
  %vm480 = vweird.f32 %v474
  %vm481 = vweird.f32 %v475
  %vm482 = vmor %vm480, %vm481
  %v483 = vsel %vm482, %v475, %v479
  %v484 = vand.u32 2147483647, %v474
  %vm485 = vcmp.eq.f32.partialorder %v484, 8.507059e+37
  %v486 = vand.u32 %v474, 2147483648
  %v487 = vor.u32 1.1754944e-38, %v486
  %v488 = vsel %vm485, %v487, %v483
  %v489 = vmul.f32 1.0, %v488
  %v490 = vtanh.pop %v470
  %v492 = vrot.slane %v435, 6
  %v494 = vmul.f32 %v489, %v492
  %496 = vrot.lane.b32.xlu0 %v490, 64
  %v497 = vpop.permute.xlu0 %496
  %v499 = vmul.f32 %v489, %v497
  %501 = vrot.lane.b32.xlu0 %v499, 32
  %v502 = vpop.permute.xlu0 %501
  %v504 = vadd.f32 %v494, %v502
  %v505 = vtanh.pop %v504
  %507 = vrot.lane.b32.xlu0 %v505, 64
  %v508 = vpop.permute.xlu0 %507
  %v510 = vmul.f32 %v489, %v508
  %v512 = vrot.slane %v510, 2
  %513 = vrot.lane.b32.xlu0 %v512, 32
  %v514 = vpop.permute.xlu0 %513
  %v515 = vsel %vm35, %v514, 0
  %517 = vmatpush.msra.mxu0 0.0
  %518 = vmatpush.msra.mxu0 0.0
  %519 = vmatpush.msra.mxu0 0.0
  %520 = vmatpush.msra.mxu0 0.0
  %521 = vmatpush.msra.mxu0 0.0
  %522 = vmatpush.msra.mxu0 0.0
  %523 = vmatpush.msra.mxu0 0.0
  %524 = vmatpush.msra.mxu0 0.0
  %525 = vmatpush.msra.mxu0 0.0
  %526 = vmatpush.msra.mxu0 0.0
  %527 = vmatpush.msra.mxu0 0.0
  %528 = vmatpush.msra.mxu0 0.0
  %529 = vmatpush.msra.mxu0 %v104
  %530 = vmatpush.msra.mxu0 %v103
  %531 = vmatpush.msra.mxu0 %v102
  %532 = vmatpush.msra.mxu0 %v101
  %533 = vmatmul.f32.gmra.mxu0 %v515
  %v534 = vpop.f32.mrf.mxu0
  %v535 = vadd.f32 0.0, %v534
  %536 = vdwg.mxu0
  %v538 = vrot.slane %v535, 4
  %v540 = vadd.f32 %v81, %v538
  %v541 = vxor.u32 %v540, 2147483648
  %v542 = vmul.f32 %v541, 1.442695
  %v543 = vpow.pop %v542
  %v544 = vadd.f32 %v543, 1.0
  %v545 = vrcp.pop %v544
  %v546 = vmul.f32 %v544, %v545
  %v547 = vsub.f32 1.0, %v546
  %v548 = vmul.f32 %v545, %v547
  %v549 = vadd.f32 %v545, %v548
  %vm550 = vweird.f32 %v544
  %vm551 = vweird.f32 %v545
  %vm552 = vmor %vm550, %vm551
  %v553 = vsel %vm552, %v545, %v549
  %v554 = vand.u32 2147483647, %v544
  %vm555 = vcmp.eq.f32.partialorder %v554, 8.507059e+37
  %v556 = vand.u32 %v544, 2147483648
  %v557 = vor.u32 1.1754944e-38, %v556
  %v558 = vsel %vm555, %v557, %v553
  %v559 = vmul.f32 1.0, %v558
  %v560 = vtanh.pop %v540
  %v562 = vrot.slane %v504, 6
  %v564 = vmul.f32 %v559, %v562
  %566 = vrot.lane.b32.xlu0 %v560, 64
  %v567 = vpop.permute.xlu0 %566
  %v569 = vmul.f32 %v559, %v567
  %571 = vrot.lane.b32.xlu0 %v569, 32
  %v572 = vpop.permute.xlu0 %571
  %v574 = vadd.f32 %v564, %v572
  %v575 = vtanh.pop %v574
  %577 = vrot.lane.b32.xlu0 %v575, 64
  %v578 = vpop.permute.xlu0 %577
  %v580 = vmul.f32 %v559, %v578
  %v582 = vrot.slane %v580, 4
  %583 = vrot.lane.b32.xlu0 %v582, 32
  %v584 = vpop.permute.xlu0 %583
  %v585 = vsel %vm35, %v584, 0
  %587 = vmatpush.msra.mxu0 0.0
  %588 = vmatpush.msra.mxu0 0.0
  %589 = vmatpush.msra.mxu0 0.0
  %590 = vmatpush.msra.mxu0 0.0
  %591 = vmatpush.msra.mxu0 0.0
  %592 = vmatpush.msra.mxu0 0.0
  %593 = vmatpush.msra.mxu0 0.0
  %594 = vmatpush.msra.mxu0 0.0
  %595 = vmatpush.msra.mxu0 0.0
  %596 = vmatpush.msra.mxu0 0.0
  %597 = vmatpush.msra.mxu0 0.0
  %598 = vmatpush.msra.mxu0 0.0
  %599 = vmatpush.msra.mxu0 %v104
  %600 = vmatpush.msra.mxu0 %v103
  %601 = vmatpush.msra.mxu0 %v102
  %602 = vmatpush.msra.mxu0 %v101
  %603 = vmatmul.f32.gmra.mxu0 %v585
  %v604 = vpop.f32.mrf.mxu0
  %v605 = vadd.f32 0.0, %v604
  %606 = vdwg.mxu0
  %v608 = vrot.slane %v605, 2
  %v610 = vadd.f32 %v81, %v608
  %v611 = vxor.u32 %v610, 2147483648
  %v612 = vmul.f32 %v611, 1.442695
  %v613 = vpow.pop %v612
  %v614 = vadd.f32 %v613, 1.0
  %v615 = vrcp.pop %v614
  %v616 = vmul.f32 %v614, %v615
  %v617 = vsub.f32 1.0, %v616
  %v618 = vmul.f32 %v615, %v617
  %v619 = vadd.f32 %v615, %v618
  %vm620 = vweird.f32 %v614
  %vm621 = vweird.f32 %v615
  %vm622 = vmor %vm620, %vm621
  %v623 = vsel %vm622, %v615, %v619
  %v624 = vand.u32 2147483647, %v614
  %vm625 = vcmp.eq.f32.partialorder %v624, 8.507059e+37
  %v626 = vand.u32 %v614, 2147483648
  %v627 = vor.u32 1.1754944e-38, %v626
  %v628 = vsel %vm625, %v627, %v623
  %v629 = vmul.f32 1.0, %v628
  %v630 = vtanh.pop %v610
  %v632 = vrot.slane %v574, 6
  %v634 = vmul.f32 %v629, %v632
  %636 = vrot.lane.b32.xlu0 %v630, 64
  %v637 = vpop.permute.xlu0 %636
  %v639 = vmul.f32 %v629, %v637
  %641 = vrot.lane.b32.xlu0 %v639, 32
  %v642 = vpop.permute.xlu0 %641
  %v644 = vadd.f32 %v634, %v642
  %v645 = vtanh.pop %v644
  %647 = vrot.lane.b32.xlu0 %v645, 64
  %v648 = vpop.permute.xlu0 %647
  %v650 = vmul.f32 %v629, %v648
  %v653 = vrot.slane %v650, 6
  %654 = vrot.lane.b32.xlu0 %v653, 32
  %v655 = vpop.permute.xlu0 %654
  %vm657 = vcmask 130048
  %v658 = vsel %vm657, %v168, %v655
  %vm659 = vcmask 254976
  %660 = vst.msk [vmem:[%s4] sm:$0x3] %vm659, %v658
  %661 = vrot.lane.b32.xlu0 %v234, 32
  %v662 = vpop.permute.xlu0 %661
  %v664 = vrot.slane %v580, 2
  %665 = vrot.lane.b32.xlu0 %v664, 32
  %v666 = vpop.permute.xlu0 %665
  %v668 = vsel %vm657, %v662, %v666
  %s669 = scalar_lea.vmem %s4, 2
  %vm670 = vcmask 257026
  %671 = vst.msk [vmem:[%s669 - $0x2] sm:$0xc] %vm670, %v668
  %672 = vrot.lane.b32.xlu0 %v304, 32
  %v673 = vpop.permute.xlu0 %672
  %v675 = vrot.slane %v510, 6
  %676 = vrot.lane.b32.xlu0 %v675, 32
  %v677 = vpop.permute.xlu0 %676
  %v679 = vsel %vm657, %v673, %v677
  %s680 = scalar_lea.vmem %s4, 4
  %vm681 = vcmask 259076
  %682 = vst.msk [vmem:[%s680 - $0x4] sm:$0x30] %vm681, %v679
  %683 = vrot.lane.b32.xlu0 %v374, 32
  %v684 = vpop.permute.xlu0 %683
  %v686 = vrot.slane %v441, 2
  %687 = vrot.lane.b32.xlu0 %v686, 32
  %v688 = vpop.permute.xlu0 %687
  %v690 = vsel %vm657, %v684, %v688
  %s691 = scalar_lea.vmem %s4, 6
  %vm692 = vcmask 261126
  %693 = vst.msk [vmem:[%s691 - $0x6] sm:$0xc0] %vm692, %v690
  %v696 = vsel %vm657, %v444, %v378
  %s697 = scalar_lea.vmem %s4, 8
  %698 = vst.msk [vmem:[%s697] sm:$0x3] %vm659, %v696
  %699 = vrot.lane.b32.xlu0 %v510, 32
  %v700 = vpop.permute.xlu0 %699
  %v702 = vrot.slane %v304, 2
  %703 = vrot.lane.b32.xlu0 %v702, 32
  %v704 = vpop.permute.xlu0 %703
  %v706 = vsel %vm657, %v700, %v704
  %s707 = scalar_lea.vmem %s4, 10
  %708 = vst.msk [vmem:[%s707 - $0x2] sm:$0xc] %vm670, %v706
  %709 = vrot.lane.b32.xlu0 %v580, 32
  %v710 = vpop.permute.xlu0 %709
  %v712 = vrot.slane %v234, 6
  %713 = vrot.lane.b32.xlu0 %v712, 32
  %v714 = vpop.permute.xlu0 %713
  %v716 = vsel %vm657, %v710, %v714
  %s717 = scalar_lea.vmem %s4, 12
  %718 = vst.msk [vmem:[%s717 - $0x4] sm:$0x30] %vm681, %v716
  %719 = vrot.lane.b32.xlu0 %v650, 32
  %v720 = vpop.permute.xlu0 %719
  %v722 = vrot.slane %v165, 2
  %723 = vrot.lane.b32.xlu0 %v722, 32
  %v724 = vpop.permute.xlu0 %723
  %v726 = vsel %vm657, %v720, %v724
  %s727 = scalar_lea.vmem %s4, 14
  %728 = vst.msk [vmem:[%s727 - $0x6] sm:$0xc0] %vm692, %v726
  %729 = vmatpush.msra.mxu0 0.0
  %730 = vmatpush.msra.mxu0 0.0
  %731 = vmatpush.msra.mxu0 0.0
  %732 = vmatpush.msra.mxu0 0.0
  %733 = vmatpush.msra.mxu0 0.0
  %734 = vmatpush.msra.mxu0 0.0
  %735 = vmatpush.msra.mxu0 0.0
  %736 = vmatpush.msra.mxu0 0.0
  %737 = vmatpush.msra.mxu0 0.0
  %738 = vmatpush.msra.mxu0 0.0
  %739 = vmatpush.msra.mxu0 0.0
  %740 = vmatpush.msra.mxu0 0.0
  %741 = vmatpush.msra.mxu0 %v104
  %742 = vmatpush.msra.mxu0 %v103
  %743 = vmatpush.msra.mxu0 %v102
  %744 = vmatpush.msra.mxu0 %v101
  %745 = vmatmul.f32.gmra.mxu0 %v106
  %v746 = vpop.f32.mrf.mxu0
  %v747 = vadd.f32 0.0, %v746
  %748 = vmatmul.f32.gmra.mxu0 %v106
  %v749 = vpop.f32.mrf.mxu0
  %v750 = vadd.f32 0.0, %v749
  %751 = vdwg.mxu0
  %v752 = vadd.f32 %v84, %v747
  %v753 = vadd.f32 %v87, %v750
  %v754 = vxor.u32 %v752, 2147483648
  %v755 = vxor.u32 %v753, 2147483648
  %v756 = vmul.f32 %v754, 1.442695
  %v757 = vpow.pop %v756
  %v758 = vmul.f32 %v755, 1.442695
  %v759 = vpow.pop %v758
  %v760 = vadd.f32 %v757, 1.0
  %v761 = vadd.f32 %v759, 1.0
  %v762 = vrcp.pop %v760
  %v763 = vmul.f32 %v760, %v762
  %v764 = vsub.f32 1.0, %v763
  %v765 = vmul.f32 %v762, %v764
  %v766 = vadd.f32 %v762, %v765
  %vm767 = vweird.f32 %v760
  %vm768 = vweird.f32 %v762
  %vm769 = vmor %vm767, %vm768
  %v770 = vsel %vm769, %v762, %v766
  %v771 = vand.u32 2147483647, %v760
  %vm772 = vcmp.eq.f32.partialorder %v771, 8.507059e+37
  %v773 = vand.u32 %v760, 2147483648
  %v774 = vor.u32 1.1754944e-38, %v773
  %v775 = vsel %vm772, %v774, %v770
  %v776 = vmul.f32 1.0, %v775
  %v777 = vrcp.pop %v761
  %v778 = vmul.f32 %v761, %v777
  %v779 = vsub.f32 1.0, %v778
  %v780 = vmul.f32 %v777, %v779
  %v781 = vadd.f32 %v777, %v780
  %vm782 = vweird.f32 %v761
  %vm783 = vweird.f32 %v777
  %vm784 = vmor %vm782, %vm783
  %v785 = vsel %vm784, %v777, %v781
  %v786 = vand.u32 2147483647, %v761
  %vm787 = vcmp.eq.f32.partialorder %v786, 8.507059e+37
  %v788 = vand.u32 %v761, 2147483648
  %v789 = vor.u32 1.1754944e-38, %v788
  %v790 = vsel %vm787, %v789, %v785
  %v791 = vmul.f32 1.0, %v790
  %v792 = vtanh.pop %v752
  %v793 = vtanh.pop %v753
  %v794 = vmul.f32 %v776, 0.0
  %v795 = vmul.f32 %v791, 0.0
  %798 = vrot.lane.b32.xlu0 %v792, 64
  %v799 = vpop.permute.xlu0 %798
  %800 = vrot.lane.b32.xlu0 %v793, 64
  %v801 = vpop.permute.xlu0 %800
  %v804 = vmul.f32 %v776, %v799
  %v805 = vmul.f32 %v791, %v801
  %808 = vrot.lane.b32.xlu0 %v804, 32
  %v809 = vpop.permute.xlu0 %808
  %810 = vrot.lane.b32.xlu0 %v805, 32
  %v811 = vpop.permute.xlu0 %810
  %v814 = vadd.f32 %v794, %v809
  %v815 = vadd.f32 %v795, %v811
  %v816 = vtanh.pop %v814
  %v817 = vtanh.pop %v815
  %820 = vrot.lane.b32.xlu0 %v816, 64
  %v821 = vpop.permute.xlu0 %820
  %822 = vrot.lane.b32.xlu0 %v817, 64
  %v823 = vpop.permute.xlu0 %822
  %v826 = vmul.f32 %v776, %v821
  %v827 = vmul.f32 %v791, %v823
  %830 = vrot.lane.b32.xlu0 %v826, 32
  %v831 = vpop.permute.xlu0 %830
  %832 = vrot.lane.b32.xlu0 %v827, 32
  %v833 = vpop.permute.xlu0 %832
  %v834 = vsel %vm35, %v831, 0
  %v836 = vsel %vm35, %v833, 0
  %838 = vmatpush.msra.mxu0 0.0
  %839 = vmatpush.msra.mxu0 0.0
  %840 = vmatpush.msra.mxu0 0.0
  %841 = vmatpush.msra.mxu0 0.0
  %842 = vmatpush.msra.mxu0 0.0
  %843 = vmatpush.msra.mxu0 0.0
  %844 = vmatpush.msra.mxu0 0.0
  %845 = vmatpush.msra.mxu0 0.0
  %846 = vmatpush.msra.mxu0 0.0
  %847 = vmatpush.msra.mxu0 0.0
  %848 = vmatpush.msra.mxu0 0.0
  %849 = vmatpush.msra.mxu0 0.0
  %850 = vmatpush.msra.mxu0 %v104
  %851 = vmatpush.msra.mxu0 %v103
  %852 = vmatpush.msra.mxu0 %v102
  %853 = vmatpush.msra.mxu0 %v101
  %854 = vmatmul.f32.gmra.mxu0 %v834
  %v855 = vpop.f32.mrf.mxu0
  %v856 = vadd.f32 0.0, %v855
  %857 = vmatmul.f32.gmra.mxu0 %v836
  %v858 = vpop.f32.mrf.mxu0
  %v859 = vadd.f32 0.0, %v858
  %860 = vdwg.mxu0
  %vm863 = vcmask 1043456
  %v864 = vrot.slane %v856, 4
  %v865 = vrot.slane %v859, 4
  %v866 = vsel %vm863, %v864, %v865
  %v869 = vadd.f32 %v87, %v864
  %v870 = vadd.f32 %v90, %v866
  %v871 = vxor.u32 %v869, 2147483648
  %v872 = vxor.u32 %v870, 2147483648
  %v873 = vmul.f32 %v871, 1.442695
  %v874 = vpow.pop %v873
  %v875 = vmul.f32 %v872, 1.442695
  %v876 = vpow.pop %v875
  %v877 = vadd.f32 %v874, 1.0
  %v878 = vadd.f32 %v876, 1.0
  %v879 = vrcp.pop %v877
  %v880 = vmul.f32 %v877, %v879
  %v881 = vsub.f32 1.0, %v880
  %v882 = vmul.f32 %v879, %v881
  %v883 = vadd.f32 %v879, %v882
  %vm884 = vweird.f32 %v877
  %vm885 = vweird.f32 %v879
  %vm886 = vmor %vm884, %vm885
  %v887 = vsel %vm886, %v879, %v883
  %v888 = vand.u32 2147483647, %v877
  %vm889 = vcmp.eq.f32.partialorder %v888, 8.507059e+37
  %v890 = vand.u32 %v877, 2147483648
  %v891 = vor.u32 1.1754944e-38, %v890
  %v892 = vsel %vm889, %v891, %v887
  %v893 = vmul.f32 1.0, %v892
  %v894 = vrcp.pop %v878
  %v895 = vmul.f32 %v878, %v894
  %v896 = vsub.f32 1.0, %v895
  %v897 = vmul.f32 %v894, %v896
  %v898 = vadd.f32 %v894, %v897
  %vm899 = vweird.f32 %v878
  %vm900 = vweird.f32 %v894
  %vm901 = vmor %vm899, %vm900
  %v902 = vsel %vm901, %v894, %v898
  %v903 = vand.u32 2147483647, %v878
  %vm904 = vcmp.eq.f32.partialorder %v903, 8.507059e+37
  %v905 = vand.u32 %v878, 2147483648
  %v906 = vor.u32 1.1754944e-38, %v905
  %v907 = vsel %vm904, %v906, %v902
  %v908 = vmul.f32 1.0, %v907
  %v909 = vtanh.pop %v869
  %v910 = vtanh.pop %v870
  %v913 = vrot.slane %v814, 4
  %v914 = vrot.slane %v815, 4
  %v915 = vsel %vm863, %v913, %v914
  %v918 = vmul.f32 %v893, %v913
  %v919 = vmul.f32 %v908, %v915
  %922 = vrot.lane.b32.xlu0 %v909, 64
  %v923 = vpop.permute.xlu0 %922
  %924 = vrot.lane.b32.xlu0 %v910, 64
  %v925 = vpop.permute.xlu0 %924
  %v928 = vmul.f32 %v893, %v923
  %v929 = vmul.f32 %v908, %v925
  %932 = vrot.lane.b32.xlu0 %v928, 32
  %v933 = vpop.permute.xlu0 %932
  %934 = vrot.lane.b32.xlu0 %v929, 32
  %v935 = vpop.permute.xlu0 %934
  %v938 = vadd.f32 %v918, %v933
  %v939 = vadd.f32 %v919, %v935
  %v940 = vtanh.pop %v938
  %v941 = vtanh.pop %v939
  %944 = vrot.lane.b32.xlu0 %v940, 64
  %v945 = vpop.permute.xlu0 %944
  %946 = vrot.lane.b32.xlu0 %v941, 64
  %v947 = vpop.permute.xlu0 %946
  %v950 = vmul.f32 %v893, %v945
  %v951 = vmul.f32 %v908, %v947
  %v954 = vrot.slane %v950, 4
  %v955 = vrot.slane %v951, 4
  %v956 = vsel %vm863, %v954, %v955
  %957 = vrot.lane.b32.xlu0 %v956, 32
  %v958 = vpop.permute.xlu0 %957
  %959 = vrot.lane.b32.xlu0 %v955, 32
  %v960 = vpop.permute.xlu0 %959
  %v961 = vsel %vm35, %v958, 0
  %v963 = vsel %vm35, %v960, 0
  %965 = vmatpush.msra.mxu0 0.0
  %966 = vmatpush.msra.mxu0 0.0
  %967 = vmatpush.msra.mxu0 0.0
  %968 = vmatpush.msra.mxu0 0.0
  %969 = vmatpush.msra.mxu0 0.0
  %970 = vmatpush.msra.mxu0 0.0
  %971 = vmatpush.msra.mxu0 0.0
  %972 = vmatpush.msra.mxu0 0.0
  %973 = vmatpush.msra.mxu0 0.0
  %974 = vmatpush.msra.mxu0 0.0
  %975 = vmatpush.msra.mxu0 0.0
  %976 = vmatpush.msra.mxu0 0.0
  %977 = vmatpush.msra.mxu0 %v104
  %978 = vmatpush.msra.mxu0 %v103
  %979 = vmatpush.msra.mxu0 %v102
  %980 = vmatpush.msra.mxu0 %v101
  %981 = vmatmul.f32.gmra.mxu0 %v961
  %v982 = vpop.f32.mrf.mxu0
  %v983 = vadd.f32 0.0, %v982
  %984 = vmatmul.f32.gmra.mxu0 %v963
  %v985 = vpop.f32.mrf.mxu0
  %v986 = vadd.f32 0.0, %v985
  %987 = vdwg.mxu0
  %v988 = vadd.f32 %v93, %v983
  %v989 = vadd.f32 %v96, %v986
  %v990 = vxor.u32 %v988, 2147483648
  %v991 = vxor.u32 %v989, 2147483648
  %v992 = vmul.f32 %v990, 1.442695
  %v993 = vpow.pop %v992
  %v994 = vmul.f32 %v991, 1.442695
  %v995 = vpow.pop %v994
  %v996 = vadd.f32 %v993, 1.0
  %v997 = vadd.f32 %v995, 1.0
  %v998 = vrcp.pop %v996
  %v999 = vmul.f32 %v996, %v998
  %v1000 = vsub.f32 1.0, %v999
  %v1001 = vmul.f32 %v998, %v1000
  %v1002 = vadd.f32 %v998, %v1001
  %vm1003 = vweird.f32 %v996
  %vm1004 = vweird.f32 %v998
  %vm1005 = vmor %vm1003, %vm1004
  %v1006 = vsel %vm1005, %v998, %v1002
  %v1007 = vand.u32 2147483647, %v996
  %vm1008 = vcmp.eq.f32.partialorder %v1007, 8.507059e+37
  %v1009 = vand.u32 %v996, 2147483648
  %v1010 = vor.u32 1.1754944e-38, %v1009
  %v1011 = vsel %vm1008, %v1010, %v1006
  %v1012 = vmul.f32 1.0, %v1011
  %v1013 = vrcp.pop %v997
  %v1014 = vmul.f32 %v997, %v1013
  %v1015 = vsub.f32 1.0, %v1014
  %v1016 = vmul.f32 %v1013, %v1015
  %v1017 = vadd.f32 %v1013, %v1016
  %vm1018 = vweird.f32 %v997
  %vm1019 = vweird.f32 %v1013
  %vm1020 = vmor %vm1018, %vm1019
  %v1021 = vsel %vm1020, %v1013, %v1017
  %v1022 = vand.u32 2147483647, %v997
  %vm1023 = vcmp.eq.f32.partialorder %v1022, 8.507059e+37
  %v1024 = vand.u32 %v997, 2147483648
  %v1025 = vor.u32 1.1754944e-38, %v1024
  %v1026 = vsel %vm1023, %v1025, %v1021
  %v1027 = vmul.f32 1.0, %v1026
  %v1028 = vtanh.pop %v988
  %v1029 = vtanh.pop %v989
  %v1032 = vrot.slane %v938, 4
  %v1033 = vrot.slane %v939, 4
  %v1034 = vsel %vm863, %v1032, %v1033
  %v1037 = vmul.f32 %v1012, %v1034
  %v1038 = vmul.f32 %v1027, %v1033
  %1041 = vrot.lane.b32.xlu0 %v1028, 64
  %v1042 = vpop.permute.xlu0 %1041
  %1043 = vrot.lane.b32.xlu0 %v1029, 64
  %v1044 = vpop.permute.xlu0 %1043
  %v1047 = vmul.f32 %v1012, %v1042
  %v1048 = vmul.f32 %v1027, %v1044
  %1051 = vrot.lane.b32.xlu0 %v1047, 32
  %v1052 = vpop.permute.xlu0 %1051
  %1053 = vrot.lane.b32.xlu0 %v1048, 32
  %v1054 = vpop.permute.xlu0 %1053
  %v1057 = vadd.f32 %v1037, %v1052
  %v1058 = vadd.f32 %v1038, %v1054
  %v1059 = vtanh.pop %v1057
  %v1060 = vtanh.pop %v1058
  %1063 = vrot.lane.b32.xlu0 %v1059, 64
  %v1064 = vpop.permute.xlu0 %1063
  %1065 = vrot.lane.b32.xlu0 %v1060, 64
  %v1066 = vpop.permute.xlu0 %1065
  %v1069 = vmul.f32 %v1012, %v1064
  %v1070 = vmul.f32 %v1027, %v1066
  %1073 = vrot.lane.b32.xlu0 %v1069, 32
  %v1074 = vpop.permute.xlu0 %1073
  %1075 = vrot.lane.b32.xlu0 %v1070, 32
  %v1076 = vpop.permute.xlu0 %1075
  %v1077 = vsel %vm35, %v1074, 0
  %v1079 = vsel %vm35, %v1076, 0
  %1081 = vmatpush.msra.mxu0 0.0
  %1082 = vmatpush.msra.mxu0 0.0
  %1083 = vmatpush.msra.mxu0 0.0
  %1084 = vmatpush.msra.mxu0 0.0
  %1085 = vmatpush.msra.mxu0 0.0
  %1086 = vmatpush.msra.mxu0 0.0
  %1087 = vmatpush.msra.mxu0 0.0
  %1088 = vmatpush.msra.mxu0 0.0
  %1089 = vmatpush.msra.mxu0 0.0
  %1090 = vmatpush.msra.mxu0 0.0
  %1091 = vmatpush.msra.mxu0 0.0
  %1092 = vmatpush.msra.mxu0 0.0
  %1093 = vmatpush.msra.mxu0 %v104
  %1094 = vmatpush.msra.mxu0 %v103
  %1095 = vmatpush.msra.mxu0 %v102
  %1096 = vmatpush.msra.mxu0 %v101
  %1097 = vmatmul.f32.gmra.mxu0 %v1077
  %v1098 = vpop.f32.mrf.mxu0
  %v1099 = vadd.f32 0.0, %v1098
  %1100 = vmatmul.f32.gmra.mxu0 %v1079
  %v1101 = vpop.f32.mrf.mxu0
  %v1102 = vadd.f32 0.0, %v1101
  %1103 = vdwg.mxu0
  %v1106 = vrot.slane %v1099, 4
  %v1107 = vrot.slane %v1102, 4
  %v1108 = vsel %vm863, %v1106, %v1107
  %v1111 = vadd.f32 %v96, %v1106
  %v1112 = vadd.f32 %v99, %v1108
  %v1113 = vxor.u32 %v1111, 2147483648
  %v1114 = vxor.u32 %v1112, 2147483648
  %v1115 = vmul.f32 %v1113, 1.442695
  %v1116 = vpow.pop %v1115
  %v1117 = vmul.f32 %v1114, 1.442695
  %v1118 = vpow.pop %v1117
  %v1119 = vadd.f32 %v1116, 1.0
  %v1120 = vadd.f32 %v1118, 1.0
  %v1121 = vrcp.pop %v1119
  %v1122 = vmul.f32 %v1119, %v1121
  %v1123 = vsub.f32 1.0, %v1122
  %v1124 = vmul.f32 %v1121, %v1123
  %v1125 = vadd.f32 %v1121, %v1124
  %vm1126 = vweird.f32 %v1119
  %vm1127 = vweird.f32 %v1121
  %vm1128 = vmor %vm1126, %vm1127
  %v1129 = vsel %vm1128, %v1121, %v1125
  %v1130 = vand.u32 2147483647, %v1119
  %vm1131 = vcmp.eq.f32.partialorder %v1130, 8.507059e+37
  %v1132 = vand.u32 %v1119, 2147483648
  %v1133 = vor.u32 1.1754944e-38, %v1132
  %v1134 = vsel %vm1131, %v1133, %v1129
  %v1135 = vmul.f32 1.0, %v1134
  %v1136 = vrcp.pop %v1120
  %v1137 = vmul.f32 %v1120, %v1136
  %v1138 = vsub.f32 1.0, %v1137
  %v1139 = vmul.f32 %v1136, %v1138
  %v1140 = vadd.f32 %v1136, %v1139
  %vm1141 = vweird.f32 %v1120
  %vm1142 = vweird.f32 %v1136
  %vm1143 = vmor %vm1141, %vm1142
  %v1144 = vsel %vm1143, %v1136, %v1140
  %v1145 = vand.u32 2147483647, %v1120
  %vm1146 = vcmp.eq.f32.partialorder %v1145, 8.507059e+37
  %v1147 = vand.u32 %v1120, 2147483648
  %v1148 = vor.u32 1.1754944e-38, %v1147
  %v1149 = vsel %vm1146, %v1148, %v1144
  %v1150 = vmul.f32 1.0, %v1149
  %v1151 = vtanh.pop %v1111
  %v1152 = vtanh.pop %v1112
  %v1155 = vrot.slane %v1057, 4
  %v1156 = vrot.slane %v1058, 4
  %v1157 = vsel %vm863, %v1155, %v1156
  %v1160 = vmul.f32 %v1135, %v1155
  %v1161 = vmul.f32 %v1150, %v1157
  %1164 = vrot.lane.b32.xlu0 %v1151, 64
  %v1165 = vpop.permute.xlu0 %1164
  %1166 = vrot.lane.b32.xlu0 %v1152, 64
  %v1167 = vpop.permute.xlu0 %1166
  %v1170 = vmul.f32 %v1135, %v1165
  %v1171 = vmul.f32 %v1150, %v1167
  %1174 = vrot.lane.b32.xlu0 %v1170, 32
  %v1175 = vpop.permute.xlu0 %1174
  %1176 = vrot.lane.b32.xlu0 %v1171, 32
  %v1177 = vpop.permute.xlu0 %1176
  %v1180 = vadd.f32 %v1160, %v1175
  %v1181 = vadd.f32 %v1161, %v1177
  %v1182 = vtanh.pop %v1180
  %v1183 = vtanh.pop %v1181
  %1186 = vrot.lane.b32.xlu0 %v1182, 64
  %v1187 = vpop.permute.xlu0 %1186
  %1188 = vrot.lane.b32.xlu0 %v1183, 64
  %v1189 = vpop.permute.xlu0 %1188
  %v1192 = vmul.f32 %v1135, %v1187
  %v1193 = vmul.f32 %v1150, %v1189
  %v1198 = vrot.slane %v1192, 4
  %v1199 = vrot.slane %v1193, 4
  %v1200 = vsel %vm863, %v1198, %v1199
  %1201 = vrot.lane.b32.xlu0 %v1200, 32
  %v1202 = vpop.permute.xlu0 %1201
  %1203 = vrot.lane.b32.xlu0 %v1199, 32
  %v1204 = vpop.permute.xlu0 %1203
  %v1207 = vsel %vm657, %v831, %v1202
  %v1208 = vsel %vm657, %v833, %v1204
  %1209 = vst.msk [vmem:[%s5] sm:$0xff] %vm35, %v1207
  %vm1210 = vcmask 257024
  %1211 = vst.msk [vmem:[%s5 + $0x8] sm:$0xf] %vm1210, %v1208
  %1212 = vrot.lane.b32.xlu0 %v950, 32
  %v1213 = vpop.permute.xlu0 %1212
  %1214 = vrot.lane.b32.xlu0 %v951, 32
  %v1215 = vpop.permute.xlu0 %1214
  %v1218 = vrot.slane %v1069, 4
  %v1219 = vrot.slane %v1070, 4
  %v1220 = vsel %vm863, %v1218, %v1219
  %1221 = vrot.lane.b32.xlu0 %v1218, 32
  %v1222 = vpop.permute.xlu0 %1221
  %1223 = vrot.lane.b32.xlu0 %v1220, 32
  %v1224 = vpop.permute.xlu0 %1223
  %v1227 = vsel %vm657, %v1213, %v1222
  %v1228 = vsel %vm657, %v1215, %v1224
  %s1229 = scalar_lea.vmem %s5, 16
  %vm1230 = vcmask 261124
  %1231 = vst.msk [vmem:[%s1229 - $0x4] sm:$0xf0] %vm1230, %v1227
  %1232 = vst.msk [vmem:[%s1229 + $0x4] sm:$0xff] %vm35, %v1228
  %v1237 = vsel %vm657, %v1074, %v958
  %v1238 = vsel %vm657, %v1076, %v960
  %s1239 = scalar_lea.vmem %s5, 32
  %1240 = vst.msk [vmem:[%s1239] sm:$0xff] %vm35, %v1237
  %1241 = vst.msk [vmem:[%s1239 + $0x8] sm:$0xf] %vm1210, %v1238
  %1242 = vrot.lane.b32.xlu0 %v1192, 32
  %v1243 = vpop.permute.xlu0 %1242
  %1244 = vrot.lane.b32.xlu0 %v1193, 32
  %v1245 = vpop.permute.xlu0 %1244
  %v1248 = vrot.slane %v826, 4
  %v1249 = vrot.slane %v827, 4
  %v1250 = vsel %vm863, %v1248, %v1249
  %1251 = vrot.lane.b32.xlu0 %v1248, 32
  %v1252 = vpop.permute.xlu0 %1251
  %1253 = vrot.lane.b32.xlu0 %v1250, 32
  %v1254 = vpop.permute.xlu0 %1253
  %v1257 = vsel %vm657, %v1243, %v1252
  %v1258 = vsel %vm657, %v1245, %v1254
  %s1259 = scalar_lea.vmem %s5, 48
  %1260 = vst.msk [vmem:[%s1259 - $0x4] sm:$0xf0] %vm1230, %v1257
  %1261 = vst.msk [vmem:[%s1259 + $0x4] sm:$0xff] %vm35, %v1258
  // Predicated region
  $region18: #{nl2sql_forward.3} parent=0 // pred_check
    _
  $region19: #{nl2sql_forward.3} parent=0 // pred_check_branch
    %1263 = sbr.rel (0) target = $region21
  $region20: #{nl2sql_forward.3} parent=0 // pred_region
    _
  $region21: #{nl2sql_forward.3} parent=0 // pred_fallthru
    _
  // Predicated region
  $region22: #{nl2sql_forward.3} parent=0 // pred_check
    _
  $region23: #{nl2sql_forward.3} parent=0 // pred_check_branch
    %1265 = sbr.rel (0) target = $region25
  $region24: #{nl2sql_forward.3} parent=0 // pred_region
    _
  $region25: #{nl2sql_forward.3} parent=0 // pred_fallthru
    _
  // Predicated region
  $region26: #{nl2sql_forward.3} parent=0 // pred_check
    _
  $region27: #{nl2sql_forward.3} parent=0 // pred_check_branch
    %1267 = sbr.rel (0) target = $region29
  $region28: #{nl2sql_forward.3} parent=0 // pred_region
    _
  $region29: #{nl2sql_forward.3} parent=0 // pred_fallthru
    _
  // Predicated region
  $region30: #{nl2sql_forward.3} parent=0 // pred_check
    _
  $region31: #{nl2sql_forward.3} parent=0 // pred_check_branch
    %1269 = sbr.rel (0) target = $region33
  $region32: #{nl2sql_forward.3} parent=0 // pred_region
    _
  $region33: #{nl2sql_forward.3} parent=0 // pred_fallthru
    _

// kernel: nl2sql_forward.4
$region0: #{nl2sql_forward.4}
  #allocation0 [shape = 'u32[]', space=smem, size = 0x4, offset = 0x4, fixed_abs, tag = 'smem constant byte address 0x4 - core index']
  #allocation1 [shape = 'u32[72,128]{1,0:T(1,128)}', space=vmem, size = 0x9000, scoped, tag = 'internal scratch']
  %s0 = inlined_call_operand.vmem [shape: f32[16,76], index: 0, kind: input, shape index: {}]
  %s1 = inlined_call_operand.vmem [shape: f32[12,80], index: 1, kind: input, shape index: {}]
  %s2 = inlined_call_operand.vmem [shape: f32[76,128], index: 2, kind: input, shape index: {}]
  %s3 = inlined_call_operand.vmem [shape: f32[32,128], index: 3, kind: input, shape index: {}]
  %s4 = inlined_call_operand.vmem [shape: f32[1,128], index: 4, kind: input, shape index: {}]
  %s5 = inlined_call_operand.vmem [shape: f32[80,128], index: 5, kind: input, shape index: {}]
  %s6 = inlined_call_operand.vmem [shape: f32[32,128], index: 6, kind: input, shape index: {}]
  %s7 = inlined_call_operand.vmem [shape: f32[1,128], index: 7, kind: input, shape index: {}]
  %s8 = inlined_call_operand.vmem [shape: f32[8,2,32], index: 8, kind: output, shape index: {0}]
  %s9 = inlined_call_operand.vmem [shape: f32[6,2,32], index: 9, kind: output, shape index: {1}]
  %10 = xla_tuple %s8, %s9
  %s11 = sld [smem:[#allocation0]]
  $region50: #{nl2sql_forward.4} parent=0
    _
  %s13 = ssub.s32 1, %s11
  %s14 = scalar_select 0, %s13, %s11
  // Predicated region
  $region2: #{nl2sql_forward.4} parent=0 // pred_check
    _
  $region3: #{nl2sql_forward.4} parent=0 // pred_check_branch
    %16 = sbr.rel (0) target = $region5
  $region4: #{nl2sql_forward.4} parent=0 // pred_region
    _
  $region5: #{nl2sql_forward.4} parent=0 // pred_fallthru
    _
  // Predicated region
  $region6: #{nl2sql_forward.4} parent=0 // pred_check
    _
  $region7: #{nl2sql_forward.4} parent=0 // pred_check_branch
    %18 = sbr.rel (0) target = $region9
  $region8: #{nl2sql_forward.4} parent=0 // pred_region
    _
  $region9: #{nl2sql_forward.4} parent=0 // pred_fallthru
    _
  // Predicated region
  $region10: #{nl2sql_forward.4} parent=0 // pred_check
    _
  $region11: #{nl2sql_forward.4} parent=0 // pred_check_branch
    %20 = sbr.rel (0) target = $region13
  $region12: #{nl2sql_forward.4} parent=0 // pred_region
    _
  $region13: #{nl2sql_forward.4} parent=0 // pred_fallthru
    _
  // Predicated region
  $region14: #{nl2sql_forward.4} parent=0 // pred_check
    _
  $region15: #{nl2sql_forward.4} parent=0 // pred_check_branch
    %22 = sbr.rel (0) target = $region17
  $region16: #{nl2sql_forward.4} parent=0 // pred_region
    _
  $region17: #{nl2sql_forward.4} parent=0 // pred_fallthru
    _
  // Predicated region
  $region18: #{nl2sql_forward.4} parent=0 // pred_check
    _
  $region19: #{nl2sql_forward.4} parent=0 // pred_check_branch
    %24 = sbr.rel (0) target = $region21
  $region20: #{nl2sql_forward.4} parent=0 // pred_region
    _
  $region21: #{nl2sql_forward.4} parent=0 // pred_fallthru
    _
  // Predicated region
  $region22: #{nl2sql_forward.4} parent=0 // pred_check
    _
  $region23: #{nl2sql_forward.4} parent=0 // pred_check_branch
    %26 = sbr.rel (0) target = $region25
  $region24: #{nl2sql_forward.4} parent=0 // pred_region
    _
  $region25: #{nl2sql_forward.4} parent=0 // pred_fallthru
    _
  // Predicated region
  $region26: #{nl2sql_forward.4} parent=0 // pred_check
    _
  $region27: #{nl2sql_forward.4} parent=0 // pred_check_branch
    %28 = sbr.rel (0) target = $region29
  $region28: #{nl2sql_forward.4} parent=0 // pred_region
    _
  $region29: #{nl2sql_forward.4} parent=0 // pred_fallthru
    _
  // Predicated region
  $region30: #{nl2sql_forward.4} parent=0 // pred_check
    _
  $region31: #{nl2sql_forward.4} parent=0 // pred_check_branch
    %30 = sbr.rel (0) target = $region33
  $region32: #{nl2sql_forward.4} parent=0 // pred_region
    _
  $region33: #{nl2sql_forward.4} parent=0 // pred_fallthru
    _
  %v31 = vld [vmem:[%s0] sm:$0xff]
  %v32 = vld [vmem:[%s0 + $0x8] sm:$0xff]
  %v33 = vld [vmem:[%s2] sm:$0xff]
  %v34 = vld [vmem:[%s2 + $0x8] sm:$0xff]
  %v35 = vld [vmem:[%s2 + $0x10] sm:$0xff]
  %v36 = vld [vmem:[%s2 + $0x18] sm:$0xff]
  %v37 = vld [vmem:[%s2 + $0x20] sm:$0xff]
  %v38 = vld [vmem:[%s2 + $0x28] sm:$0xff]
  %v39 = vld [vmem:[%s2 + $0x30] sm:$0xff]
  %v40 = vld [vmem:[%s2 + $0x38] sm:$0xff]
  %v41 = vld [vmem:[%s2 + $0x40] sm:$0xff]
  %v42 = vld [vmem:[%s2 + $0x48] sm:$0xf]
  %v43 = vld [vmem:[%s4] sm:$0x1]
  %v45 = vperm.slane %v43, 0
  %vm47 = vcmask 621568
  %v49 = vsel %vm47, %v31, 0
  %v52 = vsel %vm47, %v32, 0
  %vm54 = vcmask 1043456
  %v56 = vsel %vm54, %v42, 0
  %58 = vmatpush.msra.mxu0 0.0
  %59 = vmatpush.msra.mxu0 0.0
  %60 = vmatpush.msra.mxu0 0.0
  %61 = vmatpush.msra.mxu0 0.0
  %62 = vmatpush.msra.mxu0 0.0
  %63 = vmatpush.msra.mxu0 0.0
  %64 = vmatpush.msra.mxu0 %v56
  %65 = vmatpush.msra.mxu0 %v41
  %66 = vmatpush.msra.mxu0 %v40
  %67 = vmatpush.msra.mxu0 %v39
  %68 = vmatpush.msra.mxu0 %v38
  %69 = vmatpush.msra.mxu0 %v37
  %70 = vmatpush.msra.mxu0 %v36
  %71 = vmatpush.msra.mxu0 %v35
  %72 = vmatpush.msra.mxu0 %v34
  %73 = vmatpush.msra.mxu0 %v33
  %74 = vmatmul.f32.gmra.mxu0 %v49
  %v75 = vpop.f32.mrf.mxu0
  %v76 = vadd.f32 %v45, %v75
  %77 = vmatmul.f32.gmra.mxu0 %v52
  %v78 = vpop.f32.mrf.mxu0
  %v79 = vadd.f32 %v45, %v78
  %80 = vdwg.mxu0
  %v81 = vld [vmem:[%s1] sm:$0xff]
  %v82 = vld [vmem:[%s1 + $0x8] sm:$0xf]
  %v83 = vld [vmem:[%s5] sm:$0xff]
  %v84 = vld [vmem:[%s5 + $0x8] sm:$0xff]
  %v85 = vld [vmem:[%s5 + $0x10] sm:$0xff]
  %v86 = vld [vmem:[%s5 + $0x18] sm:$0xff]
  %v87 = vld [vmem:[%s5 + $0x20] sm:$0xff]
  %v88 = vld [vmem:[%s5 + $0x28] sm:$0xff]
  %v89 = vld [vmem:[%s5 + $0x30] sm:$0xff]
  %v90 = vld [vmem:[%s5 + $0x38] sm:$0xff]
  %v91 = vld [vmem:[%s5 + $0x40] sm:$0xff]
  %v92 = vld [vmem:[%s5 + $0x48] sm:$0xff]
  %v93 = vld [vmem:[%s7] sm:$0x1]
  %v95 = vperm.slane %v93, 0
  %vm97 = vcmask 654336
  %v99 = vsel %vm97, %v81, 0
  %v102 = vsel %vm97, %v82, 0
  %104 = vmatpush.msra.mxu0 0.0
  %105 = vmatpush.msra.mxu0 0.0
  %106 = vmatpush.msra.mxu0 0.0
  %107 = vmatpush.msra.mxu0 0.0
  %108 = vmatpush.msra.mxu0 0.0
  %109 = vmatpush.msra.mxu0 0.0
  %110 = vmatpush.msra.mxu0 %v92
  %111 = vmatpush.msra.mxu0 %v91
  %112 = vmatpush.msra.mxu0 %v90
  %113 = vmatpush.msra.mxu0 %v89
  %114 = vmatpush.msra.mxu0 %v88
  %115 = vmatpush.msra.mxu0 %v87
  %116 = vmatpush.msra.mxu0 %v86
  %117 = vmatpush.msra.mxu0 %v85
  %118 = vmatpush.msra.mxu0 %v84
  %119 = vmatpush.msra.mxu0 %v83
  %120 = vmatmul.f32.gmra.mxu0 %v99
  %v121 = vpop.f32.mrf.mxu0
  %v122 = vadd.f32 %v95, %v121
  %123 = vmatmul.f32.gmra.mxu0 %v102
  %v124 = vpop.f32.mrf.mxu0
  %v125 = vadd.f32 %v95, %v124
  %126 = vdwg.mxu0
  %v127 = vld [vmem:[%s3] sm:$0xff]
  %v128 = vld [vmem:[%s3 + $0x8] sm:$0xff]
  %v129 = vld [vmem:[%s3 + $0x10] sm:$0xff]
  %v130 = vld [vmem:[%s3 + $0x18] sm:$0xff]
  %vm131 = vcmask 261120
  %v133 = vsel %vm131, 0.0, 0
  %135 = vmatpush.msra.mxu0 0.0
  %136 = vmatpush.msra.mxu0 0.0
  %137 = vmatpush.msra.mxu0 0.0
  %138 = vmatpush.msra.mxu0 0.0
  %139 = vmatpush.msra.mxu0 0.0
  %140 = vmatpush.msra.mxu0 0.0
  %141 = vmatpush.msra.mxu0 0.0
  %142 = vmatpush.msra.mxu0 0.0
  %143 = vmatpush.msra.mxu0 0.0
  %144 = vmatpush.msra.mxu0 0.0
  %145 = vmatpush.msra.mxu0 0.0
  %146 = vmatpush.msra.mxu0 0.0
  %147 = vmatpush.msra.mxu0 %v130
  %148 = vmatpush.msra.mxu0 %v129
  %149 = vmatpush.msra.mxu0 %v128
  %150 = vmatpush.msra.mxu0 %v127
  %151 = vmatmul.f32.gmra.mxu0 %v133
  %v152 = vpop.f32.mrf.mxu0
  %v153 = vadd.f32 0.0, %v152
  %154 = vdwg.mxu0
  %v155 = vadd.f32 %v76, %v153
  %v156 = vxor.u32 %v155, 2147483648
  %v157 = vmul.f32 %v156, 1.442695
  %v158 = vpow.pop %v157
  %v159 = vadd.f32 %v158, 1.0
  %v160 = vrcp.pop %v159
  %v161 = vmul.f32 %v159, %v160
  %v162 = vsub.f32 1.0, %v161
  %v163 = vmul.f32 %v160, %v162
  %v164 = vadd.f32 %v160, %v163
  %vm165 = vweird.f32 %v159
  %vm166 = vweird.f32 %v160
  %vm167 = vmor %vm165, %vm166
  %v168 = vsel %vm167, %v160, %v164
  %v169 = vand.u32 2147483647, %v159
  %vm170 = vcmp.eq.f32.partialorder %v169, 8.507059e+37
  %v171 = vand.u32 %v159, 2147483648
  %v172 = vor.u32 1.1754944e-38, %v171
  %v173 = vsel %vm170, %v172, %v168
  %v174 = vmul.f32 1.0, %v173
  %v175 = vtanh.pop %v155
  %v176 = vmul.f32 %v174, 0.0
  %178 = vrot.lane.b32.xlu0 %v175, 64
  %v179 = vpop.permute.xlu0 %178
  %v181 = vmul.f32 %v174, %v179
  %183 = vrot.lane.b32.xlu0 %v181, 32
  %v184 = vpop.permute.xlu0 %183
  %v186 = vadd.f32 %v176, %v184
  %v187 = vtanh.pop %v186
  %189 = vrot.lane.b32.xlu0 %v187, 64
  %v190 = vpop.permute.xlu0 %189
  %v192 = vmul.f32 %v174, %v190
  %194 = vrot.lane.b32.xlu0 %v192, 32
  %v195 = vpop.permute.xlu0 %194
  %v196 = vsel %vm131, %v195, 0
  %198 = vmatpush.msra.mxu0 0.0
  %199 = vmatpush.msra.mxu0 0.0
  %200 = vmatpush.msra.mxu0 0.0
  %201 = vmatpush.msra.mxu0 0.0
  %202 = vmatpush.msra.mxu0 0.0
  %203 = vmatpush.msra.mxu0 0.0
  %204 = vmatpush.msra.mxu0 0.0
  %205 = vmatpush.msra.mxu0 0.0
  %206 = vmatpush.msra.mxu0 0.0
  %207 = vmatpush.msra.mxu0 0.0
  %208 = vmatpush.msra.mxu0 0.0
  %209 = vmatpush.msra.mxu0 0.0
  %210 = vmatpush.msra.mxu0 %v130
  %211 = vmatpush.msra.mxu0 %v129
  %212 = vmatpush.msra.mxu0 %v128
  %213 = vmatpush.msra.mxu0 %v127
  %214 = vmatmul.f32.gmra.mxu0 %v196
  %v215 = vpop.f32.mrf.mxu0
  %v216 = vadd.f32 0.0, %v215
  %217 = vdwg.mxu0
  %v219 = vrot.slane %v216, 6
  %v221 = vadd.f32 %v76, %v219
  %v222 = vxor.u32 %v221, 2147483648
  %v223 = vmul.f32 %v222, 1.442695
  %v224 = vpow.pop %v223
  %v225 = vadd.f32 %v224, 1.0
  %v226 = vrcp.pop %v225
  %v227 = vmul.f32 %v225, %v226
  %v228 = vsub.f32 1.0, %v227
  %v229 = vmul.f32 %v226, %v228
  %v230 = vadd.f32 %v226, %v229
  %vm231 = vweird.f32 %v225
  %vm232 = vweird.f32 %v226
  %vm233 = vmor %vm231, %vm232
  %v234 = vsel %vm233, %v226, %v230
  %v235 = vand.u32 2147483647, %v225
  %vm236 = vcmp.eq.f32.partialorder %v235, 8.507059e+37
  %v237 = vand.u32 %v225, 2147483648
  %v238 = vor.u32 1.1754944e-38, %v237
  %v239 = vsel %vm236, %v238, %v234
  %v240 = vmul.f32 1.0, %v239
  %v241 = vtanh.pop %v221
  %v243 = vrot.slane %v186, 6
  %v245 = vmul.f32 %v240, %v243
  %247 = vrot.lane.b32.xlu0 %v241, 64
  %v248 = vpop.permute.xlu0 %247
  %v250 = vmul.f32 %v240, %v248
  %252 = vrot.lane.b32.xlu0 %v250, 32
  %v253 = vpop.permute.xlu0 %252
  %v255 = vadd.f32 %v245, %v253
  %v256 = vtanh.pop %v255
  %258 = vrot.lane.b32.xlu0 %v256, 64
  %v259 = vpop.permute.xlu0 %258
  %v261 = vmul.f32 %v240, %v259
  %v263 = vrot.slane %v261, 2
  %264 = vrot.lane.b32.xlu0 %v263, 32
  %v265 = vpop.permute.xlu0 %264
  %v266 = vsel %vm131, %v265, 0
  %268 = vmatpush.msra.mxu0 0.0
  %269 = vmatpush.msra.mxu0 0.0
  %270 = vmatpush.msra.mxu0 0.0
  %271 = vmatpush.msra.mxu0 0.0
  %272 = vmatpush.msra.mxu0 0.0
  %273 = vmatpush.msra.mxu0 0.0
  %274 = vmatpush.msra.mxu0 0.0
  %275 = vmatpush.msra.mxu0 0.0
  %276 = vmatpush.msra.mxu0 0.0
  %277 = vmatpush.msra.mxu0 0.0
  %278 = vmatpush.msra.mxu0 0.0
  %279 = vmatpush.msra.mxu0 0.0
  %280 = vmatpush.msra.mxu0 %v130
  %281 = vmatpush.msra.mxu0 %v129
  %282 = vmatpush.msra.mxu0 %v128
  %283 = vmatpush.msra.mxu0 %v127
  %284 = vmatmul.f32.gmra.mxu0 %v266
  %v285 = vpop.f32.mrf.mxu0
  %v286 = vadd.f32 0.0, %v285
  %287 = vdwg.mxu0
  %v289 = vrot.slane %v286, 4
  %v291 = vadd.f32 %v76, %v289
  %v292 = vxor.u32 %v291, 2147483648
  %v293 = vmul.f32 %v292, 1.442695
  %v294 = vpow.pop %v293
  %v295 = vadd.f32 %v294, 1.0
  %v296 = vrcp.pop %v295
  %v297 = vmul.f32 %v295, %v296
  %v298 = vsub.f32 1.0, %v297
  %v299 = vmul.f32 %v296, %v298
  %v300 = vadd.f32 %v296, %v299
  %vm301 = vweird.f32 %v295
  %vm302 = vweird.f32 %v296
  %vm303 = vmor %vm301, %vm302
  %v304 = vsel %vm303, %v296, %v300
  %v305 = vand.u32 2147483647, %v295
  %vm306 = vcmp.eq.f32.partialorder %v305, 8.507059e+37
  %v307 = vand.u32 %v295, 2147483648
  %v308 = vor.u32 1.1754944e-38, %v307
  %v309 = vsel %vm306, %v308, %v304
  %v310 = vmul.f32 1.0, %v309
  %v311 = vtanh.pop %v291
  %v313 = vrot.slane %v255, 6
  %v315 = vmul.f32 %v310, %v313
  %317 = vrot.lane.b32.xlu0 %v311, 64
  %v318 = vpop.permute.xlu0 %317
  %v320 = vmul.f32 %v310, %v318
  %322 = vrot.lane.b32.xlu0 %v320, 32
  %v323 = vpop.permute.xlu0 %322
  %v325 = vadd.f32 %v315, %v323
  %v326 = vtanh.pop %v325
  %328 = vrot.lane.b32.xlu0 %v326, 64
  %v329 = vpop.permute.xlu0 %328
  %v331 = vmul.f32 %v310, %v329
  %v333 = vrot.slane %v331, 4
  %334 = vrot.lane.b32.xlu0 %v333, 32
  %v335 = vpop.permute.xlu0 %334
  %v336 = vsel %vm131, %v335, 0
  %338 = vmatpush.msra.mxu0 0.0
  %339 = vmatpush.msra.mxu0 0.0
  %340 = vmatpush.msra.mxu0 0.0
  %341 = vmatpush.msra.mxu0 0.0
  %342 = vmatpush.msra.mxu0 0.0
  %343 = vmatpush.msra.mxu0 0.0
  %344 = vmatpush.msra.mxu0 0.0
  %345 = vmatpush.msra.mxu0 0.0
  %346 = vmatpush.msra.mxu0 0.0
  %347 = vmatpush.msra.mxu0 0.0
  %348 = vmatpush.msra.mxu0 0.0
  %349 = vmatpush.msra.mxu0 0.0
  %350 = vmatpush.msra.mxu0 %v130
  %351 = vmatpush.msra.mxu0 %v129
  %352 = vmatpush.msra.mxu0 %v128
  %353 = vmatpush.msra.mxu0 %v127
  %354 = vmatmul.f32.gmra.mxu0 %v336
  %v355 = vpop.f32.mrf.mxu0
  %v356 = vadd.f32 0.0, %v355
  %357 = vdwg.mxu0
  %v359 = vrot.slane %v356, 2
  %v361 = vadd.f32 %v76, %v359
  %v362 = vxor.u32 %v361, 2147483648
  %v363 = vmul.f32 %v362, 1.442695
  %v364 = vpow.pop %v363
  %v365 = vadd.f32 %v364, 1.0
  %v366 = vrcp.pop %v365
  %v367 = vmul.f32 %v365, %v366
  %v368 = vsub.f32 1.0, %v367
  %v369 = vmul.f32 %v366, %v368
  %v370 = vadd.f32 %v366, %v369
  %vm371 = vweird.f32 %v365
  %vm372 = vweird.f32 %v366
  %vm373 = vmor %vm371, %vm372
  %v374 = vsel %vm373, %v366, %v370
  %v375 = vand.u32 2147483647, %v365
  %vm376 = vcmp.eq.f32.partialorder %v375, 8.507059e+37
  %v377 = vand.u32 %v365, 2147483648
  %v378 = vor.u32 1.1754944e-38, %v377
  %v379 = vsel %vm376, %v378, %v374
  %v380 = vmul.f32 1.0, %v379
  %v381 = vtanh.pop %v361
  %v383 = vrot.slane %v325, 6
  %v385 = vmul.f32 %v380, %v383
  %387 = vrot.lane.b32.xlu0 %v381, 64
  %v388 = vpop.permute.xlu0 %387
  %v390 = vmul.f32 %v380, %v388
  %392 = vrot.lane.b32.xlu0 %v390, 32
  %v393 = vpop.permute.xlu0 %392
  %v395 = vadd.f32 %v385, %v393
  %v396 = vtanh.pop %v395
  %398 = vrot.lane.b32.xlu0 %v396, 64
  %v399 = vpop.permute.xlu0 %398
  %v401 = vmul.f32 %v380, %v399
  %v403 = vrot.slane %v401, 6
  %404 = vrot.lane.b32.xlu0 %v403, 32
  %v405 = vpop.permute.xlu0 %404
  %v406 = vsel %vm131, %v405, 0
  %408 = vmatpush.msra.mxu0 0.0
  %409 = vmatpush.msra.mxu0 0.0
  %410 = vmatpush.msra.mxu0 0.0
  %411 = vmatpush.msra.mxu0 0.0
  %412 = vmatpush.msra.mxu0 0.0
  %413 = vmatpush.msra.mxu0 0.0
  %414 = vmatpush.msra.mxu0 0.0
  %415 = vmatpush.msra.mxu0 0.0
  %416 = vmatpush.msra.mxu0 0.0
  %417 = vmatpush.msra.mxu0 0.0
  %418 = vmatpush.msra.mxu0 0.0
  %419 = vmatpush.msra.mxu0 0.0
  %420 = vmatpush.msra.mxu0 %v130
  %421 = vmatpush.msra.mxu0 %v129
  %422 = vmatpush.msra.mxu0 %v128
  %423 = vmatpush.msra.mxu0 %v127
  %424 = vmatmul.f32.gmra.mxu0 %v406
  %v425 = vpop.f32.mrf.mxu0
  %v426 = vadd.f32 0.0, %v425
  %427 = vdwg.mxu0
  %v428 = vadd.f32 %v79, %v426
  %v429 = vxor.u32 %v428, 2147483648
  %v430 = vmul.f32 %v429, 1.442695
  %v431 = vpow.pop %v430
  %v432 = vadd.f32 %v431, 1.0
  %v433 = vrcp.pop %v432
  %v434 = vmul.f32 %v432, %v433
  %v435 = vsub.f32 1.0, %v434
  %v436 = vmul.f32 %v433, %v435
  %v437 = vadd.f32 %v433, %v436
  %vm438 = vweird.f32 %v432
  %vm439 = vweird.f32 %v433
  %vm440 = vmor %vm438, %vm439
  %v441 = vsel %vm440, %v433, %v437
  %v442 = vand.u32 2147483647, %v432
  %vm443 = vcmp.eq.f32.partialorder %v442, 8.507059e+37
  %v444 = vand.u32 %v432, 2147483648
  %v445 = vor.u32 1.1754944e-38, %v444
  %v446 = vsel %vm443, %v445, %v441
  %v447 = vmul.f32 1.0, %v446
  %v448 = vtanh.pop %v428
  %v450 = vrot.slane %v395, 6
  %v452 = vmul.f32 %v447, %v450
  %454 = vrot.lane.b32.xlu0 %v448, 64
  %v455 = vpop.permute.xlu0 %454
  %v457 = vmul.f32 %v447, %v455
  %459 = vrot.lane.b32.xlu0 %v457, 32
  %v460 = vpop.permute.xlu0 %459
  %v462 = vadd.f32 %v452, %v460
  %v463 = vtanh.pop %v462
  %465 = vrot.lane.b32.xlu0 %v463, 64
  %v466 = vpop.permute.xlu0 %465
  %v468 = vmul.f32 %v447, %v466
  %470 = vrot.lane.b32.xlu0 %v468, 32
  %v471 = vpop.permute.xlu0 %470
  %v472 = vsel %vm131, %v471, 0
  %474 = vmatpush.msra.mxu0 0.0
  %475 = vmatpush.msra.mxu0 0.0
  %476 = vmatpush.msra.mxu0 0.0
  %477 = vmatpush.msra.mxu0 0.0
  %478 = vmatpush.msra.mxu0 0.0
  %479 = vmatpush.msra.mxu0 0.0
  %480 = vmatpush.msra.mxu0 0.0
  %481 = vmatpush.msra.mxu0 0.0
  %482 = vmatpush.msra.mxu0 0.0
  %483 = vmatpush.msra.mxu0 0.0
  %484 = vmatpush.msra.mxu0 0.0
  %485 = vmatpush.msra.mxu0 0.0
  %486 = vmatpush.msra.mxu0 %v130
  %487 = vmatpush.msra.mxu0 %v129
  %488 = vmatpush.msra.mxu0 %v128
  %489 = vmatpush.msra.mxu0 %v127
  %490 = vmatmul.f32.gmra.mxu0 %v472
  %v491 = vpop.f32.mrf.mxu0
  %v492 = vadd.f32 0.0, %v491
  %493 = vdwg.mxu0
  %v495 = vrot.slane %v492, 6
  %v497 = vadd.f32 %v79, %v495
  %v498 = vxor.u32 %v497, 2147483648
  %v499 = vmul.f32 %v498, 1.442695
  %v500 = vpow.pop %v499
  %v501 = vadd.f32 %v500, 1.0
  %v502 = vrcp.pop %v501
  %v503 = vmul.f32 %v501, %v502
  %v504 = vsub.f32 1.0, %v503
  %v505 = vmul.f32 %v502, %v504
  %v506 = vadd.f32 %v502, %v505
  %vm507 = vweird.f32 %v501
  %vm508 = vweird.f32 %v502
  %vm509 = vmor %vm507, %vm508
  %v510 = vsel %vm509, %v502, %v506
  %v511 = vand.u32 2147483647, %v501
  %vm512 = vcmp.eq.f32.partialorder %v511, 8.507059e+37
  %v513 = vand.u32 %v501, 2147483648
  %v514 = vor.u32 1.1754944e-38, %v513
  %v515 = vsel %vm512, %v514, %v510
  %v516 = vmul.f32 1.0, %v515
  %v517 = vtanh.pop %v497
  %v519 = vrot.slane %v462, 6
  %v521 = vmul.f32 %v516, %v519
  %523 = vrot.lane.b32.xlu0 %v517, 64
  %v524 = vpop.permute.xlu0 %523
  %v526 = vmul.f32 %v516, %v524
  %528 = vrot.lane.b32.xlu0 %v526, 32
  %v529 = vpop.permute.xlu0 %528
  %v531 = vadd.f32 %v521, %v529
  %v532 = vtanh.pop %v531
  %534 = vrot.lane.b32.xlu0 %v532, 64
  %v535 = vpop.permute.xlu0 %534
  %v537 = vmul.f32 %v516, %v535
  %v539 = vrot.slane %v537, 2
  %540 = vrot.lane.b32.xlu0 %v539, 32
  %v541 = vpop.permute.xlu0 %540
  %v542 = vsel %vm131, %v541, 0
  %544 = vmatpush.msra.mxu0 0.0
  %545 = vmatpush.msra.mxu0 0.0
  %546 = vmatpush.msra.mxu0 0.0
  %547 = vmatpush.msra.mxu0 0.0
  %548 = vmatpush.msra.mxu0 0.0
  %549 = vmatpush.msra.mxu0 0.0
  %550 = vmatpush.msra.mxu0 0.0
  %551 = vmatpush.msra.mxu0 0.0
  %552 = vmatpush.msra.mxu0 0.0
  %553 = vmatpush.msra.mxu0 0.0
  %554 = vmatpush.msra.mxu0 0.0
  %555 = vmatpush.msra.mxu0 0.0
  %556 = vmatpush.msra.mxu0 %v130
  %557 = vmatpush.msra.mxu0 %v129
  %558 = vmatpush.msra.mxu0 %v128
  %559 = vmatpush.msra.mxu0 %v127
  %560 = vmatmul.f32.gmra.mxu0 %v542
  %v561 = vpop.f32.mrf.mxu0
  %v562 = vadd.f32 0.0, %v561
  %563 = vdwg.mxu0
  %v565 = vrot.slane %v562, 4
  %v567 = vadd.f32 %v79, %v565
  %v568 = vxor.u32 %v567, 2147483648
  %v569 = vmul.f32 %v568, 1.442695
  %v570 = vpow.pop %v569
  %v571 = vadd.f32 %v570, 1.0
  %v572 = vrcp.pop %v571
  %v573 = vmul.f32 %v571, %v572
  %v574 = vsub.f32 1.0, %v573
  %v575 = vmul.f32 %v572, %v574
  %v576 = vadd.f32 %v572, %v575
  %vm577 = vweird.f32 %v571
  %vm578 = vweird.f32 %v572
  %vm579 = vmor %vm577, %vm578
  %v580 = vsel %vm579, %v572, %v576
  %v581 = vand.u32 2147483647, %v571
  %vm582 = vcmp.eq.f32.partialorder %v581, 8.507059e+37
  %v583 = vand.u32 %v571, 2147483648
  %v584 = vor.u32 1.1754944e-38, %v583
  %v585 = vsel %vm582, %v584, %v580
  %v586 = vmul.f32 1.0, %v585
  %v587 = vtanh.pop %v567
  %v589 = vrot.slane %v531, 6
  %v591 = vmul.f32 %v586, %v589
  %593 = vrot.lane.b32.xlu0 %v587, 64
  %v594 = vpop.permute.xlu0 %593
  %v596 = vmul.f32 %v586, %v594
  %598 = vrot.lane.b32.xlu0 %v596, 32
  %v599 = vpop.permute.xlu0 %598
  %v601 = vadd.f32 %v591, %v599
  %v602 = vtanh.pop %v601
  %604 = vrot.lane.b32.xlu0 %v602, 64
  %v605 = vpop.permute.xlu0 %604
  %v607 = vmul.f32 %v586, %v605
  %v609 = vrot.slane %v607, 4
  %610 = vrot.lane.b32.xlu0 %v609, 32
  %v611 = vpop.permute.xlu0 %610
  %v612 = vsel %vm131, %v611, 0
  %614 = vmatpush.msra.mxu0 0.0
  %615 = vmatpush.msra.mxu0 0.0
  %616 = vmatpush.msra.mxu0 0.0
  %617 = vmatpush.msra.mxu0 0.0
  %618 = vmatpush.msra.mxu0 0.0
  %619 = vmatpush.msra.mxu0 0.0
  %620 = vmatpush.msra.mxu0 0.0
  %621 = vmatpush.msra.mxu0 0.0
  %622 = vmatpush.msra.mxu0 0.0
  %623 = vmatpush.msra.mxu0 0.0
  %624 = vmatpush.msra.mxu0 0.0
  %625 = vmatpush.msra.mxu0 0.0
  %626 = vmatpush.msra.mxu0 %v130
  %627 = vmatpush.msra.mxu0 %v129
  %628 = vmatpush.msra.mxu0 %v128
  %629 = vmatpush.msra.mxu0 %v127
  %630 = vmatmul.f32.gmra.mxu0 %v612
  %v631 = vpop.f32.mrf.mxu0
  %v632 = vadd.f32 0.0, %v631
  %633 = vdwg.mxu0
  %v635 = vrot.slane %v632, 2
  %v637 = vadd.f32 %v79, %v635
  %v638 = vxor.u32 %v637, 2147483648
  %v639 = vmul.f32 %v638, 1.442695
  %v640 = vpow.pop %v639
  %v641 = vadd.f32 %v640, 1.0
  %v642 = vrcp.pop %v641
  %v643 = vmul.f32 %v641, %v642
  %v644 = vsub.f32 1.0, %v643
  %v645 = vmul.f32 %v642, %v644
  %v646 = vadd.f32 %v642, %v645
  %vm647 = vweird.f32 %v641
  %vm648 = vweird.f32 %v642
  %vm649 = vmor %vm647, %vm648
  %v650 = vsel %vm649, %v642, %v646
  %v651 = vand.u32 2147483647, %v641
  %vm652 = vcmp.eq.f32.partialorder %v651, 8.507059e+37
  %v653 = vand.u32 %v641, 2147483648
  %v654 = vor.u32 1.1754944e-38, %v653
  %v655 = vsel %vm652, %v654, %v650
  %v656 = vmul.f32 1.0, %v655
  %v657 = vtanh.pop %v637
  %v659 = vrot.slane %v601, 6
  %v661 = vmul.f32 %v656, %v659
  %663 = vrot.lane.b32.xlu0 %v657, 64
  %v664 = vpop.permute.xlu0 %663
  %v666 = vmul.f32 %v656, %v664
  %668 = vrot.lane.b32.xlu0 %v666, 32
  %v669 = vpop.permute.xlu0 %668
  %v671 = vadd.f32 %v661, %v669
  %v672 = vtanh.pop %v671
  %674 = vrot.lane.b32.xlu0 %v672, 64
  %v675 = vpop.permute.xlu0 %674
  %v677 = vmul.f32 %v656, %v675
  %v680 = vrot.slane %v677, 6
  %681 = vrot.lane.b32.xlu0 %v680, 32
  %v682 = vpop.permute.xlu0 %681
  %vm684 = vcmask 130048
  %v685 = vsel %vm684, %v195, %v682
  %vm686 = vcmask 254976
  %687 = vst.msk [vmem:[%s8] sm:$0x3] %vm686, %v685
  %688 = vrot.lane.b32.xlu0 %v261, 32
  %v689 = vpop.permute.xlu0 %688
  %v691 = vrot.slane %v607, 2
  %692 = vrot.lane.b32.xlu0 %v691, 32
  %v693 = vpop.permute.xlu0 %692
  %v695 = vsel %vm684, %v689, %v693
  %s696 = scalar_lea.vmem %s8, 2
  %vm697 = vcmask 257026
  %698 = vst.msk [vmem:[%s696 - $0x2] sm:$0xc] %vm697, %v695
  %699 = vrot.lane.b32.xlu0 %v331, 32
  %v700 = vpop.permute.xlu0 %699
  %v702 = vrot.slane %v537, 6
  %703 = vrot.lane.b32.xlu0 %v702, 32
  %v704 = vpop.permute.xlu0 %703
  %v706 = vsel %vm684, %v700, %v704
  %s707 = scalar_lea.vmem %s8, 4
  %vm708 = vcmask 259076
  %709 = vst.msk [vmem:[%s707 - $0x4] sm:$0x30] %vm708, %v706
  %710 = vrot.lane.b32.xlu0 %v401, 32
  %v711 = vpop.permute.xlu0 %710
  %v713 = vrot.slane %v468, 2
  %714 = vrot.lane.b32.xlu0 %v713, 32
  %v715 = vpop.permute.xlu0 %714
  %v717 = vsel %vm684, %v711, %v715
  %s718 = scalar_lea.vmem %s8, 6
  %vm719 = vcmask 261126
  %720 = vst.msk [vmem:[%s718 - $0x6] sm:$0xc0] %vm719, %v717
  %v723 = vsel %vm684, %v471, %v405
  %s724 = scalar_lea.vmem %s8, 8
  %725 = vst.msk [vmem:[%s724] sm:$0x3] %vm686, %v723
  %726 = vrot.lane.b32.xlu0 %v537, 32
  %v727 = vpop.permute.xlu0 %726
  %v729 = vrot.slane %v331, 2
  %730 = vrot.lane.b32.xlu0 %v729, 32
  %v731 = vpop.permute.xlu0 %730
  %v733 = vsel %vm684, %v727, %v731
  %s734 = scalar_lea.vmem %s8, 10
  %735 = vst.msk [vmem:[%s734 - $0x2] sm:$0xc] %vm697, %v733
  %736 = vrot.lane.b32.xlu0 %v607, 32
  %v737 = vpop.permute.xlu0 %736
  %v739 = vrot.slane %v261, 6
  %740 = vrot.lane.b32.xlu0 %v739, 32
  %v741 = vpop.permute.xlu0 %740
  %v743 = vsel %vm684, %v737, %v741
  %s744 = scalar_lea.vmem %s8, 12
  %745 = vst.msk [vmem:[%s744 - $0x4] sm:$0x30] %vm708, %v743
  %746 = vrot.lane.b32.xlu0 %v677, 32
  %v747 = vpop.permute.xlu0 %746
  %v749 = vrot.slane %v192, 2
  %750 = vrot.lane.b32.xlu0 %v749, 32
  %v751 = vpop.permute.xlu0 %750
  %v753 = vsel %vm684, %v747, %v751
  %s754 = scalar_lea.vmem %s8, 14
  %755 = vst.msk [vmem:[%s754 - $0x6] sm:$0xc0] %vm719, %v753
  %v756 = vld [vmem:[%s6] sm:$0xff]
  %v757 = vld [vmem:[%s6 + $0x8] sm:$0xff]
  %v758 = vld [vmem:[%s6 + $0x10] sm:$0xff]
  %v759 = vld [vmem:[%s6 + $0x18] sm:$0xff]
  %760 = vmatpush.msra.mxu0 0.0
  %761 = vmatpush.msra.mxu0 0.0
  %762 = vmatpush.msra.mxu0 0.0
  %763 = vmatpush.msra.mxu0 0.0
  %764 = vmatpush.msra.mxu0 0.0
  %765 = vmatpush.msra.mxu0 0.0
  %766 = vmatpush.msra.mxu0 0.0
  %767 = vmatpush.msra.mxu0 0.0
  %768 = vmatpush.msra.mxu0 0.0
  %769 = vmatpush.msra.mxu0 0.0
  %770 = vmatpush.msra.mxu0 0.0
  %771 = vmatpush.msra.mxu0 0.0
  %772 = vmatpush.msra.mxu0 %v759
  %773 = vmatpush.msra.mxu0 %v758
  %774 = vmatpush.msra.mxu0 %v757
  %775 = vmatpush.msra.mxu0 %v756
  %776 = vmatmul.f32.gmra.mxu0 %v133
  %v777 = vpop.f32.mrf.mxu0
  %v778 = vadd.f32 0.0, %v777
  %779 = vdwg.mxu0
  %v780 = vadd.f32 %v122, %v778
  %v781 = vxor.u32 %v780, 2147483648
  %v782 = vmul.f32 %v781, 1.442695
  %v783 = vpow.pop %v782
  %v784 = vadd.f32 %v783, 1.0
  %v785 = vrcp.pop %v784
  %v786 = vmul.f32 %v784, %v785
  %v787 = vsub.f32 1.0, %v786
  %v788 = vmul.f32 %v785, %v787
  %v789 = vadd.f32 %v785, %v788
  %vm790 = vweird.f32 %v784
  %vm791 = vweird.f32 %v785
  %vm792 = vmor %vm790, %vm791
  %v793 = vsel %vm792, %v785, %v789
  %v794 = vand.u32 2147483647, %v784
  %vm795 = vcmp.eq.f32.partialorder %v794, 8.507059e+37
  %v796 = vand.u32 %v784, 2147483648
  %v797 = vor.u32 1.1754944e-38, %v796
  %v798 = vsel %vm795, %v797, %v793
  %v799 = vmul.f32 1.0, %v798
  %v800 = vtanh.pop %v780
  %v801 = vmul.f32 %v799, 0.0
  %803 = vrot.lane.b32.xlu0 %v800, 64
  %v804 = vpop.permute.xlu0 %803
  %v806 = vmul.f32 %v799, %v804
  %808 = vrot.lane.b32.xlu0 %v806, 32
  %v809 = vpop.permute.xlu0 %808
  %v811 = vadd.f32 %v801, %v809
  %v812 = vtanh.pop %v811
  %814 = vrot.lane.b32.xlu0 %v812, 64
  %v815 = vpop.permute.xlu0 %814
  %v817 = vmul.f32 %v799, %v815
  %819 = vrot.lane.b32.xlu0 %v817, 32
  %v820 = vpop.permute.xlu0 %819
  %v821 = vsel %vm131, %v820, 0
  %823 = vmatpush.msra.mxu0 0.0
  %824 = vmatpush.msra.mxu0 0.0
  %825 = vmatpush.msra.mxu0 0.0
  %826 = vmatpush.msra.mxu0 0.0
  %827 = vmatpush.msra.mxu0 0.0
  %828 = vmatpush.msra.mxu0 0.0
  %829 = vmatpush.msra.mxu0 0.0
  %830 = vmatpush.msra.mxu0 0.0
  %831 = vmatpush.msra.mxu0 0.0
  %832 = vmatpush.msra.mxu0 0.0
  %833 = vmatpush.msra.mxu0 0.0
  %834 = vmatpush.msra.mxu0 0.0
  %835 = vmatpush.msra.mxu0 %v759
  %836 = vmatpush.msra.mxu0 %v758
  %837 = vmatpush.msra.mxu0 %v757
  %838 = vmatpush.msra.mxu0 %v756
  %839 = vmatmul.f32.gmra.mxu0 %v821
  %v840 = vpop.f32.mrf.mxu0
  %v841 = vadd.f32 0.0, %v840
  %842 = vdwg.mxu0
  %v844 = vrot.slane %v841, 6
  %v846 = vadd.f32 %v122, %v844
  %v847 = vxor.u32 %v846, 2147483648
  %v848 = vmul.f32 %v847, 1.442695
  %v849 = vpow.pop %v848
  %v850 = vadd.f32 %v849, 1.0
  %v851 = vrcp.pop %v850
  %v852 = vmul.f32 %v850, %v851
  %v853 = vsub.f32 1.0, %v852
  %v854 = vmul.f32 %v851, %v853
  %v855 = vadd.f32 %v851, %v854
  %vm856 = vweird.f32 %v850
  %vm857 = vweird.f32 %v851
  %vm858 = vmor %vm856, %vm857
  %v859 = vsel %vm858, %v851, %v855
  %v860 = vand.u32 2147483647, %v850
  %vm861 = vcmp.eq.f32.partialorder %v860, 8.507059e+37
  %v862 = vand.u32 %v850, 2147483648
  %v863 = vor.u32 1.1754944e-38, %v862
  %v864 = vsel %vm861, %v863, %v859
  %v865 = vmul.f32 1.0, %v864
  %v866 = vtanh.pop %v846
  %v868 = vrot.slane %v811, 6
  %v870 = vmul.f32 %v865, %v868
  %872 = vrot.lane.b32.xlu0 %v866, 64
  %v873 = vpop.permute.xlu0 %872
  %v875 = vmul.f32 %v865, %v873
  %877 = vrot.lane.b32.xlu0 %v875, 32
  %v878 = vpop.permute.xlu0 %877
  %v880 = vadd.f32 %v870, %v878
  %v881 = vtanh.pop %v880
  %883 = vrot.lane.b32.xlu0 %v881, 64
  %v884 = vpop.permute.xlu0 %883
  %v886 = vmul.f32 %v865, %v884
  %v888 = vrot.slane %v886, 2
  %889 = vrot.lane.b32.xlu0 %v888, 32
  %v890 = vpop.permute.xlu0 %889
  %v891 = vsel %vm131, %v890, 0
  %893 = vmatpush.msra.mxu0 0.0
  %894 = vmatpush.msra.mxu0 0.0
  %895 = vmatpush.msra.mxu0 0.0
  %896 = vmatpush.msra.mxu0 0.0
  %897 = vmatpush.msra.mxu0 0.0
  %898 = vmatpush.msra.mxu0 0.0
  %899 = vmatpush.msra.mxu0 0.0
  %900 = vmatpush.msra.mxu0 0.0
  %901 = vmatpush.msra.mxu0 0.0
  %902 = vmatpush.msra.mxu0 0.0
  %903 = vmatpush.msra.mxu0 0.0
  %904 = vmatpush.msra.mxu0 0.0
  %905 = vmatpush.msra.mxu0 %v759
  %906 = vmatpush.msra.mxu0 %v758
  %907 = vmatpush.msra.mxu0 %v757
  %908 = vmatpush.msra.mxu0 %v756
  %909 = vmatmul.f32.gmra.mxu0 %v891
  %v910 = vpop.f32.mrf.mxu0
  %v911 = vadd.f32 0.0, %v910
  %912 = vdwg.mxu0
  %v914 = vrot.slane %v911, 4
  %v916 = vadd.f32 %v122, %v914
  %v917 = vxor.u32 %v916, 2147483648
  %v918 = vmul.f32 %v917, 1.442695
  %v919 = vpow.pop %v918
  %v920 = vadd.f32 %v919, 1.0
  %v921 = vrcp.pop %v920
  %v922 = vmul.f32 %v920, %v921
  %v923 = vsub.f32 1.0, %v922
  %v924 = vmul.f32 %v921, %v923
  %v925 = vadd.f32 %v921, %v924
  %vm926 = vweird.f32 %v920
  %vm927 = vweird.f32 %v921
  %vm928 = vmor %vm926, %vm927
  %v929 = vsel %vm928, %v921, %v925
  %v930 = vand.u32 2147483647, %v920
  %vm931 = vcmp.eq.f32.partialorder %v930, 8.507059e+37
  %v932 = vand.u32 %v920, 2147483648
  %v933 = vor.u32 1.1754944e-38, %v932
  %v934 = vsel %vm931, %v933, %v929
  %v935 = vmul.f32 1.0, %v934
  %v936 = vtanh.pop %v916
  %v938 = vrot.slane %v880, 6
  %v940 = vmul.f32 %v935, %v938
  %942 = vrot.lane.b32.xlu0 %v936, 64
  %v943 = vpop.permute.xlu0 %942
  %v945 = vmul.f32 %v935, %v943
  %947 = vrot.lane.b32.xlu0 %v945, 32
  %v948 = vpop.permute.xlu0 %947
  %v950 = vadd.f32 %v940, %v948
  %v951 = vtanh.pop %v950
  %953 = vrot.lane.b32.xlu0 %v951, 64
  %v954 = vpop.permute.xlu0 %953
  %v956 = vmul.f32 %v935, %v954
  %v958 = vrot.slane %v956, 4
  %959 = vrot.lane.b32.xlu0 %v958, 32
  %v960 = vpop.permute.xlu0 %959
  %v961 = vsel %vm131, %v960, 0
  %963 = vmatpush.msra.mxu0 0.0
  %964 = vmatpush.msra.mxu0 0.0
  %965 = vmatpush.msra.mxu0 0.0
  %966 = vmatpush.msra.mxu0 0.0
  %967 = vmatpush.msra.mxu0 0.0
  %968 = vmatpush.msra.mxu0 0.0
  %969 = vmatpush.msra.mxu0 0.0
  %970 = vmatpush.msra.mxu0 0.0
  %971 = vmatpush.msra.mxu0 0.0
  %972 = vmatpush.msra.mxu0 0.0
  %973 = vmatpush.msra.mxu0 0.0
  %974 = vmatpush.msra.mxu0 0.0
  %975 = vmatpush.msra.mxu0 %v759
  %976 = vmatpush.msra.mxu0 %v758
  %977 = vmatpush.msra.mxu0 %v757
  %978 = vmatpush.msra.mxu0 %v756
  %979 = vmatmul.f32.gmra.mxu0 %v961
  %v980 = vpop.f32.mrf.mxu0
  %v981 = vadd.f32 0.0, %v980
  %982 = vdwg.mxu0
  %v984 = vrot.slane %v981, 2
  %v986 = vadd.f32 %v122, %v984
  %v987 = vxor.u32 %v986, 2147483648
  %v988 = vmul.f32 %v987, 1.442695
  %v989 = vpow.pop %v988
  %v990 = vadd.f32 %v989, 1.0
  %v991 = vrcp.pop %v990
  %v992 = vmul.f32 %v990, %v991
  %v993 = vsub.f32 1.0, %v992
  %v994 = vmul.f32 %v991, %v993
  %v995 = vadd.f32 %v991, %v994
  %vm996 = vweird.f32 %v990
  %vm997 = vweird.f32 %v991
  %vm998 = vmor %vm996, %vm997
  %v999 = vsel %vm998, %v991, %v995
  %v1000 = vand.u32 2147483647, %v990
  %vm1001 = vcmp.eq.f32.partialorder %v1000, 8.507059e+37
  %v1002 = vand.u32 %v990, 2147483648
  %v1003 = vor.u32 1.1754944e-38, %v1002
  %v1004 = vsel %vm1001, %v1003, %v999
  %v1005 = vmul.f32 1.0, %v1004
  %v1006 = vtanh.pop %v986
  %v1008 = vrot.slane %v950, 6
  %v1010 = vmul.f32 %v1005, %v1008
  %1012 = vrot.lane.b32.xlu0 %v1006, 64
  %v1013 = vpop.permute.xlu0 %1012
  %v1015 = vmul.f32 %v1005, %v1013
  %1017 = vrot.lane.b32.xlu0 %v1015, 32
  %v1018 = vpop.permute.xlu0 %1017
  %v1020 = vadd.f32 %v1010, %v1018
  %v1021 = vtanh.pop %v1020
  %1023 = vrot.lane.b32.xlu0 %v1021, 64
  %v1024 = vpop.permute.xlu0 %1023
  %v1026 = vmul.f32 %v1005, %v1024
  %v1028 = vrot.slane %v1026, 6
  %1029 = vrot.lane.b32.xlu0 %v1028, 32
  %v1030 = vpop.permute.xlu0 %1029
  %v1031 = vsel %vm131, %v1030, 0
  %1033 = vmatpush.msra.mxu0 0.0
  %1034 = vmatpush.msra.mxu0 0.0
  %1035 = vmatpush.msra.mxu0 0.0
  %1036 = vmatpush.msra.mxu0 0.0
  %1037 = vmatpush.msra.mxu0 0.0
  %1038 = vmatpush.msra.mxu0 0.0
  %1039 = vmatpush.msra.mxu0 0.0
  %1040 = vmatpush.msra.mxu0 0.0
  %1041 = vmatpush.msra.mxu0 0.0
  %1042 = vmatpush.msra.mxu0 0.0
  %1043 = vmatpush.msra.mxu0 0.0
  %1044 = vmatpush.msra.mxu0 0.0
  %1045 = vmatpush.msra.mxu0 %v759
  %1046 = vmatpush.msra.mxu0 %v758
  %1047 = vmatpush.msra.mxu0 %v757
  %1048 = vmatpush.msra.mxu0 %v756
  %1049 = vmatmul.f32.gmra.mxu0 %v1031
  %v1050 = vpop.f32.mrf.mxu0
  %v1051 = vadd.f32 0.0, %v1050
  %1052 = vdwg.mxu0
  %v1053 = vadd.f32 %v125, %v1051
  %v1054 = vxor.u32 %v1053, 2147483648
  %v1055 = vmul.f32 %v1054, 1.442695
  %v1056 = vpow.pop %v1055
  %v1057 = vadd.f32 %v1056, 1.0
  %v1058 = vrcp.pop %v1057
  %v1059 = vmul.f32 %v1057, %v1058
  %v1060 = vsub.f32 1.0, %v1059
  %v1061 = vmul.f32 %v1058, %v1060
  %v1062 = vadd.f32 %v1058, %v1061
  %vm1063 = vweird.f32 %v1057
  %vm1064 = vweird.f32 %v1058
  %vm1065 = vmor %vm1063, %vm1064
  %v1066 = vsel %vm1065, %v1058, %v1062
  %v1067 = vand.u32 2147483647, %v1057
  %vm1068 = vcmp.eq.f32.partialorder %v1067, 8.507059e+37
  %v1069 = vand.u32 %v1057, 2147483648
  %v1070 = vor.u32 1.1754944e-38, %v1069
  %v1071 = vsel %vm1068, %v1070, %v1066
  %v1072 = vmul.f32 1.0, %v1071
  %v1073 = vtanh.pop %v1053
  %v1075 = vrot.slane %v1020, 6
  %v1077 = vmul.f32 %v1072, %v1075
  %1079 = vrot.lane.b32.xlu0 %v1073, 64
  %v1080 = vpop.permute.xlu0 %1079
  %v1082 = vmul.f32 %v1072, %v1080
  %1084 = vrot.lane.b32.xlu0 %v1082, 32
  %v1085 = vpop.permute.xlu0 %1084
  %v1087 = vadd.f32 %v1077, %v1085
  %v1088 = vtanh.pop %v1087
  %1090 = vrot.lane.b32.xlu0 %v1088, 64
  %v1091 = vpop.permute.xlu0 %1090
  %v1093 = vmul.f32 %v1072, %v1091
  %1095 = vrot.lane.b32.xlu0 %v1093, 32
  %v1096 = vpop.permute.xlu0 %1095
  %v1097 = vsel %vm131, %v1096, 0
  %1099 = vmatpush.msra.mxu0 0.0
  %1100 = vmatpush.msra.mxu0 0.0
  %1101 = vmatpush.msra.mxu0 0.0
  %1102 = vmatpush.msra.mxu0 0.0
  %1103 = vmatpush.msra.mxu0 0.0
  %1104 = vmatpush.msra.mxu0 0.0
  %1105 = vmatpush.msra.mxu0 0.0
  %1106 = vmatpush.msra.mxu0 0.0
  %1107 = vmatpush.msra.mxu0 0.0
  %1108 = vmatpush.msra.mxu0 0.0
  %1109 = vmatpush.msra.mxu0 0.0
  %1110 = vmatpush.msra.mxu0 0.0
  %1111 = vmatpush.msra.mxu0 %v759
  %1112 = vmatpush.msra.mxu0 %v758
  %1113 = vmatpush.msra.mxu0 %v757
  %1114 = vmatpush.msra.mxu0 %v756
  %1115 = vmatmul.f32.gmra.mxu0 %v1097
  %v1116 = vpop.f32.mrf.mxu0
  %v1117 = vadd.f32 0.0, %v1116
  %1118 = vdwg.mxu0
  %v1120 = vrot.slane %v1117, 6
  %v1122 = vadd.f32 %v125, %v1120
  %v1123 = vxor.u32 %v1122, 2147483648
  %v1124 = vmul.f32 %v1123, 1.442695
  %v1125 = vpow.pop %v1124
  %v1126 = vadd.f32 %v1125, 1.0
  %v1127 = vrcp.pop %v1126
  %v1128 = vmul.f32 %v1126, %v1127
  %v1129 = vsub.f32 1.0, %v1128
  %v1130 = vmul.f32 %v1127, %v1129
  %v1131 = vadd.f32 %v1127, %v1130
  %vm1132 = vweird.f32 %v1126
  %vm1133 = vweird.f32 %v1127
  %vm1134 = vmor %vm1132, %vm1133
  %v1135 = vsel %vm1134, %v1127, %v1131
  %v1136 = vand.u32 2147483647, %v1126
  %vm1137 = vcmp.eq.f32.partialorder %v1136, 8.507059e+37
  %v1138 = vand.u32 %v1126, 2147483648
  %v1139 = vor.u32 1.1754944e-38, %v1138
  %v1140 = vsel %vm1137, %v1139, %v1135
  %v1141 = vmul.f32 1.0, %v1140
  %v1142 = vtanh.pop %v1122
  %v1144 = vrot.slane %v1087, 6
  %v1146 = vmul.f32 %v1141, %v1144
  %1148 = vrot.lane.b32.xlu0 %v1142, 64
  %v1149 = vpop.permute.xlu0 %1148
  %v1151 = vmul.f32 %v1141, %v1149
  %1153 = vrot.lane.b32.xlu0 %v1151, 32
  %v1154 = vpop.permute.xlu0 %1153
  %v1156 = vadd.f32 %v1146, %v1154
  %v1157 = vtanh.pop %v1156
  %1159 = vrot.lane.b32.xlu0 %v1157, 64
  %v1160 = vpop.permute.xlu0 %1159
  %v1162 = vmul.f32 %v1141, %v1160
  %v1165 = vrot.slane %v1162, 2
  %1166 = vrot.lane.b32.xlu0 %v1165, 32
  %v1167 = vpop.permute.xlu0 %1166
  %v1169 = vsel %vm684, %v820, %v1167
  %1170 = vst.msk [vmem:[%s9] sm:$0x3] %vm686, %v1169
  %1171 = vrot.lane.b32.xlu0 %v886, 32
  %v1172 = vpop.permute.xlu0 %1171
  %v1174 = vrot.slane %v1093, 6
  %1175 = vrot.lane.b32.xlu0 %v1174, 32
  %v1176 = vpop.permute.xlu0 %1175
  %v1178 = vsel %vm684, %v1172, %v1176
  %s1179 = scalar_lea.vmem %s9, 2
  %1180 = vst.msk [vmem:[%s1179 - $0x2] sm:$0xc] %vm697, %v1178
  %1181 = vrot.lane.b32.xlu0 %v956, 32
  %v1182 = vpop.permute.xlu0 %1181
  %v1184 = vrot.slane %v1026, 2
  %1185 = vrot.lane.b32.xlu0 %v1184, 32
  %v1186 = vpop.permute.xlu0 %1185
  %v1188 = vsel %vm684, %v1182, %v1186
  %s1189 = scalar_lea.vmem %s9, 4
  %1190 = vst.msk [vmem:[%s1189 - $0x4] sm:$0x30] %vm708, %v1188
  %1191 = vrot.lane.b32.xlu0 %v1026, 32
  %v1192 = vpop.permute.xlu0 %1191
  %v1194 = vrot.slane %v956, 6
  %1195 = vrot.lane.b32.xlu0 %v1194, 32
  %v1196 = vpop.permute.xlu0 %1195
  %v1198 = vsel %vm684, %v1192, %v1196
  %s1199 = scalar_lea.vmem %s9, 6
  %1200 = vst.msk [vmem:[%s1199 - $0x6] sm:$0xc0] %vm719, %v1198
  %v1203 = vsel %vm684, %v1096, %v890
  %s1204 = scalar_lea.vmem %s9, 8
  %1205 = vst.msk [vmem:[%s1204] sm:$0x3] %vm686, %v1203
  %1206 = vrot.lane.b32.xlu0 %v1162, 32
  %v1207 = vpop.permute.xlu0 %1206
  %v1209 = vrot.slane %v817, 6
  %1210 = vrot.lane.b32.xlu0 %v1209, 32
  %v1211 = vpop.permute.xlu0 %1210
  %v1213 = vsel %vm684, %v1207, %v1211
  %s1214 = scalar_lea.vmem %s9, 10
  %1215 = vst.msk [vmem:[%s1214 - $0x2] sm:$0xc] %vm697, %v1213
  // Predicated region
  $region34: #{nl2sql_forward.4} parent=0 // pred_check
    _
  $region35: #{nl2sql_forward.4} parent=0 // pred_check_branch
    %1217 = sbr.rel (0) target = $region37
  $region36: #{nl2sql_forward.4} parent=0 // pred_region
    _
  $region37: #{nl2sql_forward.4} parent=0 // pred_fallthru
    _
  // Predicated region
  $region38: #{nl2sql_forward.4} parent=0 // pred_check
    _
  $region39: #{nl2sql_forward.4} parent=0 // pred_check_branch
    %1219 = sbr.rel (0) target = $region41
  $region40: #{nl2sql_forward.4} parent=0 // pred_region
    _
  $region41: #{nl2sql_forward.4} parent=0 // pred_fallthru
    _
  // Predicated region
  $region42: #{nl2sql_forward.4} parent=0 // pred_check
    _
  $region43: #{nl2sql_forward.4} parent=0 // pred_check_branch
    %1221 = sbr.rel (0) target = $region45
  $region44: #{nl2sql_forward.4} parent=0 // pred_region
    _
  $region45: #{nl2sql_forward.4} parent=0 // pred_fallthru
    _
  // Predicated region
  $region46: #{nl2sql_forward.4} parent=0 // pred_check
    _
  $region47: #{nl2sql_forward.4} parent=0 // pred_check_branch
    %1223 = sbr.rel (0) target = $region49
  $region48: #{nl2sql_forward.4} parent=0 // pred_region
    _
  $region49: #{nl2sql_forward.4} parent=0 // pred_fallthru
    _

// kernel: nl2sql_forward.5
$region0: #{nl2sql_forward.5}
  #allocation0 [shape = 'u32[]', space=smem, size = 0x4, offset = 0x4, fixed_abs, tag = 'smem constant byte address 0x4 - core index']
  #allocation1 [shape = 'u32[72,128]{1,0:T(1,128)}', space=vmem, size = 0x9000, scoped, tag = 'internal scratch']
  #allocation2 [shape = 'f32[1,1]{1,0:T(1,128)S(1)}', space=vmem, size = 0x200, scoped, tag = 'scoped memory for nl2sql_forward.5']
  %s0 = inlined_call_operand.vmem [shape: f32[2,32], index: 0, kind: input, shape index: {}]
  %s1 = inlined_call_operand.vmem [shape: f32[2,30,40], index: 1, kind: input, shape index: {}]
  %s2 = inlined_call_operand.vmem [shape: f32[1,8], index: 2, kind: input, shape index: {}]
  %s3 = inlined_call_operand.vmem [shape: f32[8,128], index: 3, kind: input, shape index: {}]
  %s4 = inlined_call_operand.vmem [shape: f32[32,128], index: 4, kind: input, shape index: {}]
  %s5 = inlined_call_operand.vmem [shape: f32[32,128], index: 5, kind: input, shape index: {}]
  %s6 = inlined_call_operand.vmem [shape: f32[1,128], index: 6, kind: input, shape index: {}]
  %s7 = inlined_call_operand.vmem [shape: f32[32,40], index: 7, kind: input, shape index: {}]
  %s8 = inlined_call_operand.<no memory space> [shape: f32[1,1], index: 8, kind: input, shape index: {}]
  %s9 = inlined_call_operand.vmem [shape: f32[2,150], index: 9, kind: output, shape index: {}]
  %s10 = sld [smem:[#allocation0]]
  $region46: #{nl2sql_forward.5} parent=0
    _
  %s12 = ssub.s32 1, %s10
  %s13 = scalar_select 0, %s12, %s10
  %v14 = vstv %s8
  %15 = vst [vmem:[#allocation2] sm:$0x1] %v14
  // Predicated region
  $region2: #{nl2sql_forward.5} parent=0 // pred_check
    _
  $region3: #{nl2sql_forward.5} parent=0 // pred_check_branch
    %17 = sbr.rel (0) target = $region5
  $region4: #{nl2sql_forward.5} parent=0 // pred_region
    _
  $region5: #{nl2sql_forward.5} parent=0 // pred_fallthru
    _
  // Predicated region
  $region6: #{nl2sql_forward.5} parent=0 // pred_check
    _
  $region7: #{nl2sql_forward.5} parent=0 // pred_check_branch
    %19 = sbr.rel (0) target = $region9
  $region8: #{nl2sql_forward.5} parent=0 // pred_region
    _
  $region9: #{nl2sql_forward.5} parent=0 // pred_fallthru
    _
  // Predicated region
  $region10: #{nl2sql_forward.5} parent=0 // pred_check
    _
  $region11: #{nl2sql_forward.5} parent=0 // pred_check_branch
    %21 = sbr.rel (0) target = $region13
  $region12: #{nl2sql_forward.5} parent=0 // pred_region
    _
  $region13: #{nl2sql_forward.5} parent=0 // pred_fallthru
    _
  // Predicated region
  $region14: #{nl2sql_forward.5} parent=0 // pred_check
    _
  $region15: #{nl2sql_forward.5} parent=0 // pred_check_branch
    %23 = sbr.rel (0) target = $region17
  $region16: #{nl2sql_forward.5} parent=0 // pred_region
    _
  $region17: #{nl2sql_forward.5} parent=0 // pred_fallthru
    _
  // Predicated region
  $region18: #{nl2sql_forward.5} parent=0 // pred_check
    _
  $region19: #{nl2sql_forward.5} parent=0 // pred_check_branch
    %25 = sbr.rel (0) target = $region21
  $region20: #{nl2sql_forward.5} parent=0 // pred_region
    _
  $region21: #{nl2sql_forward.5} parent=0 // pred_fallthru
    _
  // Predicated region
  $region22: #{nl2sql_forward.5} parent=0 // pred_check
    _
  $region23: #{nl2sql_forward.5} parent=0 // pred_check_branch
    %27 = sbr.rel (0) target = $region25
  $region24: #{nl2sql_forward.5} parent=0 // pred_region
    _
  $region25: #{nl2sql_forward.5} parent=0 // pred_fallthru
    _
  // Predicated region
  $region26: #{nl2sql_forward.5} parent=0 // pred_check
    _
  $region27: #{nl2sql_forward.5} parent=0 // pred_check_branch
    %29 = sbr.rel (0) target = $region29
  $region28: #{nl2sql_forward.5} parent=0 // pred_region
    _
  $region29: #{nl2sql_forward.5} parent=0 // pred_fallthru
    _
  // Predicated region
  $region30: #{nl2sql_forward.5} parent=0 // pred_check
    _
  $region31: #{nl2sql_forward.5} parent=0 // pred_check_branch
    %31 = sbr.rel (0) target = $region33
  $region32: #{nl2sql_forward.5} parent=0 // pred_region
    _
  $region33: #{nl2sql_forward.5} parent=0 // pred_fallthru
    _
  // Predicated region
  $region34: #{nl2sql_forward.5} parent=0 // pred_check
    _
  $region35: #{nl2sql_forward.5} parent=0 // pred_check_branch
    %33 = sbr.rel (0) target = $region37
  $region36: #{nl2sql_forward.5} parent=0 // pred_region
    _
  $region37: #{nl2sql_forward.5} parent=0 // pred_fallthru
    _
  %v34 = vld [vmem:[%s1] sm:$0xff]
  %v35 = vld [vmem:[%s1 + $0x8] sm:$0xff]
  %v36 = vld [vmem:[%s1 + $0x10] sm:$0xff]
  %v37 = vld [vmem:[%s1 + $0x18] sm:$0x3f]
  %v38 = vld [vmem:[%s1 + $0x20] sm:$0xff]
  %v39 = vld [vmem:[%s1 + $0x28] sm:$0xff]
  %v40 = vld [vmem:[%s1 + $0x30] sm:$0xff]
  %v41 = vld [vmem:[%s1 + $0x38] sm:$0x3f]
  %v42 = vld [vmem:[%s3] sm:$0xff]
  %v43 = vld [vmem:[%s5] sm:$0xff]
  %v44 = vld [vmem:[%s5 + $0x8] sm:$0xff]
  %v45 = vld [vmem:[%s5 + $0x10] sm:$0xff]
  %v46 = vld [vmem:[%s5 + $0x18] sm:$0xff]
  %v47 = vld [vmem:[%s7] sm:$0xff]
  %v48 = vld [vmem:[%s7 + $0x8] sm:$0xff]
  %v49 = vld [vmem:[%s7 + $0x10] sm:$0xff]
  %v50 = vld [vmem:[%s7 + $0x18] sm:$0xff]
  %v51 = vld [vmem:[#allocation2] sm:$0x1]
  %s52 = vtos %v51
  %v53 = vld [vmem:[%s0] sm:$0x3]
  %v54 = vld [vmem:[%s4] sm:$0xff]
  %v55 = vld [vmem:[%s4 + $0x8] sm:$0xff]
  %v56 = vld [vmem:[%s4 + $0x10] sm:$0xff]
  %v57 = vld [vmem:[%s4 + $0x18] sm:$0xff]
  %v58 = vld [vmem:[%s6] sm:$0x1]
  %v60 = vperm.slane %v58, 0
  %vm62 = vcmask 261120
  %v64 = vsel %vm62, %v53, 0
  %66 = vmatpush.msra.mxu0 0.0
  %67 = vmatpush.msra.mxu0 0.0
  %68 = vmatpush.msra.mxu0 0.0
  %69 = vmatpush.msra.mxu0 0.0
  %70 = vmatpush.msra.mxu0 0.0
  %71 = vmatpush.msra.mxu0 0.0
  %72 = vmatpush.msra.mxu0 0.0
  %73 = vmatpush.msra.mxu0 0.0
  %74 = vmatpush.msra.mxu0 0.0
  %75 = vmatpush.msra.mxu0 0.0
  %76 = vmatpush.msra.mxu0 0.0
  %77 = vmatpush.msra.mxu0 0.0
  %78 = vmatpush.msra.mxu0 %v57
  %79 = vmatpush.msra.mxu0 %v56
  %80 = vmatpush.msra.mxu0 %v55
  %81 = vmatpush.msra.mxu0 %v54
  %82 = vmatmul.f32.gmra.mxu0 %v64
  %v83 = vpop.f32.mrf.mxu0
  %v84 = vadd.f32 %v60, %v83
  %85 = vdwg.mxu0
  %v86 = vld [vmem:[%s2] sm:$0x1]
  %v88 = vperm.slane %v86, 0
  %v89 = vlaneseq
  %v90 = vand.u32 %v89, 127
  %vm91 = vcmp.eq.s32.totalorder %v90, 0
  %v92 = vsel %vm91, 1, 0
  %v93 = vcvt.s32.f32 %v92
  %vm94 = vcmask 64512
  %v95 = vsel %vm94, %v88, 0
  %97 = vmatpush.msra.mxu0 0.0
  %98 = vmatpush.msra.mxu0 0.0
  %99 = vmatpush.msra.mxu0 0.0
  %100 = vmatpush.msra.mxu0 0.0
  %101 = vmatpush.msra.mxu0 0.0
  %102 = vmatpush.msra.mxu0 0.0
  %103 = vmatpush.msra.mxu0 0.0
  %104 = vmatpush.msra.mxu0 0.0
  %105 = vmatpush.msra.mxu0 0.0
  %106 = vmatpush.msra.mxu0 0.0
  %107 = vmatpush.msra.mxu0 0.0
  %108 = vmatpush.msra.mxu0 0.0
  %109 = vmatpush.msra.mxu0 0.0
  %110 = vmatpush.msra.mxu0 0.0
  %111 = vmatpush.msra.mxu0 0.0
  %112 = vmatpush.msra.mxu0 %v42
  %113 = vmatmul.f32.gmra.mxu0 %v95
  %v114 = vpop.f32.mrf.mxu0
  %v115 = vadd.f32 0.0, %v114
  %116 = vdwg.mxu0
  %v117 = vadd.f32 %v84, %v115
  %v119 = vsel %vm62, 0.0, 0
  %121 = vmatpush.msra.mxu0 0.0
  %122 = vmatpush.msra.mxu0 0.0
  %123 = vmatpush.msra.mxu0 0.0
  %124 = vmatpush.msra.mxu0 0.0
  %125 = vmatpush.msra.mxu0 0.0
  %126 = vmatpush.msra.mxu0 0.0
  %127 = vmatpush.msra.mxu0 0.0
  %128 = vmatpush.msra.mxu0 0.0
  %129 = vmatpush.msra.mxu0 0.0
  %130 = vmatpush.msra.mxu0 0.0
  %131 = vmatpush.msra.mxu0 0.0
  %132 = vmatpush.msra.mxu0 0.0
  %133 = vmatpush.msra.mxu0 %v46
  %134 = vmatpush.msra.mxu0 %v45
  %135 = vmatpush.msra.mxu0 %v44
  %136 = vmatpush.msra.mxu0 %v43
  %137 = vmatmul.f32.gmra.mxu0 %v119
  %v138 = vpop.f32.mrf.mxu0
  %v139 = vadd.f32 0.0, %v138
  %140 = vdwg.mxu0
  %v141 = vadd.f32 %v117, %v139
  %v142 = vxor.u32 %v141, 2147483648
  %v143 = vmul.f32 %v142, 1.442695
  %v144 = vpow.pop %v143
  %v145 = vadd.f32 %v144, 1.0
  %v146 = vrcp.pop %v145
  %v147 = vmul.f32 %v145, %v146
  %v148 = vsub.f32 1.0, %v147
  %v149 = vmul.f32 %v146, %v148
  %v150 = vadd.f32 %v146, %v149
  %vm151 = vweird.f32 %v145
  %vm152 = vweird.f32 %v146
  %vm153 = vmor %vm151, %vm152
  %v154 = vsel %vm153, %v146, %v150
  %v155 = vand.u32 2147483647, %v145
  %vm156 = vcmp.eq.f32.partialorder %v155, 8.507059e+37
  %v157 = vand.u32 %v145, 2147483648
  %v158 = vor.u32 1.1754944e-38, %v157
  %v159 = vsel %vm156, %v158, %v154
  %v160 = vmul.f32 1.0, %v159
  %v161 = vtanh.pop %v141
  %v162 = vmul.f32 %v160, 0.0
  %164 = vrot.lane.b32.xlu0 %v161, 64
  %v165 = vpop.permute.xlu0 %164
  %v167 = vmul.f32 %v160, %v165
  %169 = vrot.lane.b32.xlu0 %v167, 32
  %v170 = vpop.permute.xlu0 %169
  %v172 = vadd.f32 %v162, %v170
  %v173 = vtanh.pop %v172
  %175 = vrot.lane.b32.xlu0 %v173, 64
  %v176 = vpop.permute.xlu0 %175
  %v178 = vmul.f32 %v160, %v176
  %180 = vrot.lane.b32.xlu0 %v178, 32
  %v181 = vpop.permute.xlu0 %180
  %v182 = vsel %vm62, %v181, 0
  %184 = vmatpush.msra.mxu0 0.0
  %185 = vmatpush.msra.mxu0 0.0
  %186 = vmatpush.msra.mxu0 0.0
  %187 = vmatpush.msra.mxu0 0.0
  %188 = vmatpush.msra.mxu0 0.0
  %189 = vmatpush.msra.mxu0 0.0
  %190 = vmatpush.msra.mxu0 0.0
  %191 = vmatpush.msra.mxu0 0.0
  %192 = vmatpush.msra.mxu0 0.0
  %193 = vmatpush.msra.mxu0 0.0
  %194 = vmatpush.msra.mxu0 0.0
  %195 = vmatpush.msra.mxu0 0.0
  %196 = vmatpush.msra.mxu0 %v50
  %197 = vmatpush.msra.mxu0 %v49
  %198 = vmatpush.msra.mxu0 %v48
  %199 = vmatpush.msra.mxu0 %v47
  %200 = vmatmul.f32.gmra.mxu0 %v182
  %v201 = vpop.f32.mrf.mxu0
  %v202 = vadd.f32 0.0, %v201
  %203 = vdwg.mxu0
  %v205 = vrot.slane %v202, 1
  %vm206 = vcmask 326656
  %v207 = vsel %vm206, %v202, 0
  %v210 = vsel %vm206, %v34, 0
  %v213 = vsel %vm206, %v35, 0
  %v216 = vsel %vm206, %v36, 0
  %v219 = vsel %vm206, %v37, 0
  %221 = vmatpush.xpose.msra.mxu0 0.0
  %222 = vmatpush.xpose.msra.mxu0 0.0
  %223 = vmatpush.xpose.msra.mxu0 0.0
  %224 = vmatpush.xpose.msra.mxu0 0.0
  %225 = vmatpush.xpose.msra.mxu0 0.0
  %226 = vmatpush.xpose.msra.mxu0 0.0
  %227 = vmatpush.xpose.msra.mxu0 0.0
  %228 = vmatpush.xpose.msra.mxu0 0.0
  %229 = vmatpush.xpose.msra.mxu0 0.0
  %230 = vmatpush.xpose.msra.mxu0 0.0
  %231 = vmatpush.xpose.msra.mxu0 0.0
  %232 = vmatpush.xpose.msra.mxu0 0.0
  %233 = vmatpush.xpose.msra.mxu0 %v219
  %234 = vmatpush.xpose.msra.mxu0 %v216
  %235 = vmatpush.xpose.msra.mxu0 %v213
  %236 = vmatpush.xpose.msra.mxu0 %v210
  %237 = vmatmul.f32.gmra.mxu0 %v207
  %v238 = vpop.f32.mrf.mxu0
  %v239 = vadd.f32 0.0, %v238
  %240 = vdwg.mxu0
  %v241 = vsel %vm206, %v205, 0
  %v244 = vsel %vm206, %v38, 0
  %v247 = vsel %vm206, %v39, 0
  %v250 = vsel %vm206, %v40, 0
  %v253 = vsel %vm206, %v41, 0
  %255 = vmatpush.xpose.msra.mxu0 0.0
  %256 = vmatpush.xpose.msra.mxu0 0.0
  %257 = vmatpush.xpose.msra.mxu0 0.0
  %258 = vmatpush.xpose.msra.mxu0 0.0
  %259 = vmatpush.xpose.msra.mxu0 0.0
  %260 = vmatpush.xpose.msra.mxu0 0.0
  %261 = vmatpush.xpose.msra.mxu0 0.0
  %262 = vmatpush.xpose.msra.mxu0 0.0
  %263 = vmatpush.xpose.msra.mxu0 0.0
  %264 = vmatpush.xpose.msra.mxu0 0.0
  %265 = vmatpush.xpose.msra.mxu0 0.0
  %266 = vmatpush.xpose.msra.mxu0 0.0
  %267 = vmatpush.xpose.msra.mxu0 %v253
  %268 = vmatpush.xpose.msra.mxu0 %v250
  %269 = vmatpush.xpose.msra.mxu0 %v247
  %270 = vmatpush.xpose.msra.mxu0 %v244
  %271 = vmatmul.f32.gmra.mxu0 %v241
  %v272 = vpop.f32.mrf.mxu0
  %v273 = vadd.f32 0.0, %v272
  %274 = vdwg.mxu0
  %v275 = vstv %s52
  %v276 = vadd.f32 %v239, %v275
  %v277 = vadd.f32 %v273, %v275
  %v280 = vrot.slane %v277, 7
  %vm281 = vcmask 1041409
  %v282 = vsel %vm281, %v280, %v276
  %vm284 = vcmask 238592
  %v285 = vsel %vm284, %v282, -inf
  %286 = vmax.xlane.f32.xlu0 %v285
  %v287 = vpop.xlane.xlu0 %286
  %v289 = vrot.slane %v287, 1
  %vm292 = vcmp.ge.f32.partialorder %v276, %v287
  %vm293 = vcmp.ge.f32.partialorder %v277, %v289
  %v294 = vsel %vm292, %v90, 30
  %v295 = vsel %vm293, %v90, 30
  %v296 = vrot.slane %v295, 7
  %v297 = vsel %vm281, %v296, %v294
  %v298 = vsel %vm284, %v297, 2147483647
  %v299 = vand.u32 %v298, 65535
  %v300 = vshra.s32 %v298, 16
  %v301 = vcvt.s32.f32 %v299
  %v302 = vcvt.s32.f32 %v300
  %303 = vmin.xlane.f32.xlu0 %v302
  %v304 = vpop.xlane.xlu0 %303
  %vm305 = vcmp.eq.f32.partialorder %v302, %v304
  %v306 = vsel %vm305, %v301, inf
  %307 = vmin.xlane.f32.xlu0 %v306
  %v308 = vpop.xlane.xlu0 %307
  %v309 = vcvt.f32.s32 %v308
  %v310 = vcvt.f32.s32 %v304
  %v311 = vshll.u32 %v310, 16
  %v312 = vadd.s32 %v311, %v309
  %vm313 = vcmp.eq.s32.totalorder %v90, %v312
  %v314 = vsel %vm313, 1, 0
  %v315 = vcvt.s32.f32 %v314
  %v317 = vrot.slane %v315, 1
  %vm318 = vcmask 244736
  %v319 = vsel %vm318, %v315, 0
  %vm321 = vcmask 1045504
  %v322 = vsel %vm321, %v37, 0
  %324 = vmatpush.msra.mxu0 0.0
  %325 = vmatpush.msra.mxu0 0.0
  %326 = vmatpush.msra.mxu0 0.0
  %327 = vmatpush.msra.mxu0 0.0
  %328 = vmatpush.msra.mxu0 0.0
  %329 = vmatpush.msra.mxu0 0.0
  %330 = vmatpush.msra.mxu0 0.0
  %331 = vmatpush.msra.mxu0 0.0
  %332 = vmatpush.msra.mxu0 0.0
  %333 = vmatpush.msra.mxu0 0.0
  %334 = vmatpush.msra.mxu0 0.0
  %335 = vmatpush.msra.mxu0 0.0
  %336 = vmatpush.msra.mxu0 %v322
  %337 = vmatpush.msra.mxu0 %v36
  %338 = vmatpush.msra.mxu0 %v35
  %339 = vmatpush.msra.mxu0 %v34
  %340 = vmatmul.f32.gmra.mxu0 %v319
  %v341 = vpop.f32.mrf.mxu0
  %v342 = vadd.f32 0.0, %v341
  %343 = vdwg.mxu0
  %v344 = vsel %vm318, %v317, 0
  %v346 = vsel %vm321, %v41, 0
  %348 = vmatpush.msra.mxu0 0.0
  %349 = vmatpush.msra.mxu0 0.0
  %350 = vmatpush.msra.mxu0 0.0
  %351 = vmatpush.msra.mxu0 0.0
  %352 = vmatpush.msra.mxu0 0.0
  %353 = vmatpush.msra.mxu0 0.0
  %354 = vmatpush.msra.mxu0 0.0
  %355 = vmatpush.msra.mxu0 0.0
  %356 = vmatpush.msra.mxu0 0.0
  %357 = vmatpush.msra.mxu0 0.0
  %358 = vmatpush.msra.mxu0 0.0
  %359 = vmatpush.msra.mxu0 0.0
  %360 = vmatpush.msra.mxu0 %v346
  %361 = vmatpush.msra.mxu0 %v40
  %362 = vmatpush.msra.mxu0 %v39
  %363 = vmatpush.msra.mxu0 %v38
  %364 = vmatmul.f32.gmra.mxu0 %v344
  %v365 = vpop.f32.mrf.mxu0
  %v366 = vadd.f32 0.0, %v365
  %367 = vdwg.mxu0
  %v370 = vrot.slane %v366, 7
  %v371 = vsel %vm281, %v370, %v342
  %v372 = vsel %vm94, %v371, 0
  %374 = vmatpush.msra.mxu0 0.0
  %375 = vmatpush.msra.mxu0 0.0
  %376 = vmatpush.msra.mxu0 0.0
  %377 = vmatpush.msra.mxu0 0.0
  %378 = vmatpush.msra.mxu0 0.0
  %379 = vmatpush.msra.mxu0 0.0
  %380 = vmatpush.msra.mxu0 0.0
  %381 = vmatpush.msra.mxu0 0.0
  %382 = vmatpush.msra.mxu0 0.0
  %383 = vmatpush.msra.mxu0 0.0
  %384 = vmatpush.msra.mxu0 0.0
  %385 = vmatpush.msra.mxu0 0.0
  %386 = vmatpush.msra.mxu0 0.0
  %387 = vmatpush.msra.mxu0 0.0
  %388 = vmatpush.msra.mxu0 0.0
  %389 = vmatpush.msra.mxu0 %v42
  %390 = vmatmul.f32.gmra.mxu0 %v372
  %v391 = vpop.f32.mrf.mxu0
  %v392 = vadd.f32 0.0, %v391
  %393 = vdwg.mxu0
  %v394 = vadd.f32 %v84, %v392
  %395 = vmatpush.msra.mxu0 0.0
  %396 = vmatpush.msra.mxu0 0.0
  %397 = vmatpush.msra.mxu0 0.0
  %398 = vmatpush.msra.mxu0 0.0
  %399 = vmatpush.msra.mxu0 0.0
  %400 = vmatpush.msra.mxu0 0.0
  %401 = vmatpush.msra.mxu0 0.0
  %402 = vmatpush.msra.mxu0 0.0
  %403 = vmatpush.msra.mxu0 0.0
  %404 = vmatpush.msra.mxu0 0.0
  %405 = vmatpush.msra.mxu0 0.0
  %406 = vmatpush.msra.mxu0 0.0
  %407 = vmatpush.msra.mxu0 %v46
  %408 = vmatpush.msra.mxu0 %v45
  %409 = vmatpush.msra.mxu0 %v44
  %410 = vmatpush.msra.mxu0 %v43
  %411 = vmatmul.f32.gmra.mxu0 %v182
  %v412 = vpop.f32.mrf.mxu0
  %v413 = vadd.f32 0.0, %v412
  %414 = vdwg.mxu0
  %v415 = vadd.f32 %v394, %v413
  %v416 = vxor.u32 %v415, 2147483648
  %v417 = vmul.f32 %v416, 1.442695
  %v418 = vpow.pop %v417
  %v419 = vadd.f32 %v418, 1.0
  %v420 = vrcp.pop %v419
  %v421 = vmul.f32 %v419, %v420
  %v422 = vsub.f32 1.0, %v421
  %v423 = vmul.f32 %v420, %v422
  %v424 = vadd.f32 %v420, %v423
  %vm425 = vweird.f32 %v419
  %vm426 = vweird.f32 %v420
  %vm427 = vmor %vm425, %vm426
  %v428 = vsel %vm427, %v420, %v424
  %v429 = vand.u32 2147483647, %v419
  %vm430 = vcmp.eq.f32.partialorder %v429, 8.507059e+37
  %v431 = vand.u32 %v419, 2147483648
  %v432 = vor.u32 1.1754944e-38, %v431
  %v433 = vsel %vm430, %v432, %v428
  %v434 = vmul.f32 1.0, %v433
  %v435 = vtanh.pop %v415
  %v436 = vmul.f32 %v434, %v172
  %438 = vrot.lane.b32.xlu0 %v435, 64
  %v439 = vpop.permute.xlu0 %438
  %v441 = vmul.f32 %v434, %v439
  %443 = vrot.lane.b32.xlu0 %v441, 32
  %v444 = vpop.permute.xlu0 %443
  %v446 = vadd.f32 %v436, %v444
  %v447 = vtanh.pop %v446
  %449 = vrot.lane.b32.xlu0 %v447, 64
  %v450 = vpop.permute.xlu0 %449
  %v452 = vmul.f32 %v434, %v450
  %454 = vrot.lane.b32.xlu0 %v452, 32
  %v455 = vpop.permute.xlu0 %454
  %v456 = vsel %vm62, %v455, 0
  %458 = vmatpush.msra.mxu0 0.0
  %459 = vmatpush.msra.mxu0 0.0
  %460 = vmatpush.msra.mxu0 0.0
  %461 = vmatpush.msra.mxu0 0.0
  %462 = vmatpush.msra.mxu0 0.0
  %463 = vmatpush.msra.mxu0 0.0
  %464 = vmatpush.msra.mxu0 0.0
  %465 = vmatpush.msra.mxu0 0.0
  %466 = vmatpush.msra.mxu0 0.0
  %467 = vmatpush.msra.mxu0 0.0
  %468 = vmatpush.msra.mxu0 0.0
  %469 = vmatpush.msra.mxu0 0.0
  %470 = vmatpush.msra.mxu0 %v50
  %471 = vmatpush.msra.mxu0 %v49
  %472 = vmatpush.msra.mxu0 %v48
  %473 = vmatpush.msra.mxu0 %v47
  %474 = vmatmul.f32.gmra.mxu0 %v456
  %v475 = vpop.f32.mrf.mxu0
  %v476 = vadd.f32 0.0, %v475
  %477 = vdwg.mxu0
  %v479 = vrot.slane %v476, 1
  %v480 = vsel %vm206, %v476, 0
  %482 = vmatpush.xpose.msra.mxu0 0.0
  %483 = vmatpush.xpose.msra.mxu0 0.0
  %484 = vmatpush.xpose.msra.mxu0 0.0
  %485 = vmatpush.xpose.msra.mxu0 0.0
  %486 = vmatpush.xpose.msra.mxu0 0.0
  %487 = vmatpush.xpose.msra.mxu0 0.0
  %488 = vmatpush.xpose.msra.mxu0 0.0
  %489 = vmatpush.xpose.msra.mxu0 0.0
  %490 = vmatpush.xpose.msra.mxu0 0.0
  %491 = vmatpush.xpose.msra.mxu0 0.0
  %492 = vmatpush.xpose.msra.mxu0 0.0
  %493 = vmatpush.xpose.msra.mxu0 0.0
  %494 = vmatpush.xpose.msra.mxu0 %v219
  %495 = vmatpush.xpose.msra.mxu0 %v216
  %496 = vmatpush.xpose.msra.mxu0 %v213
  %497 = vmatpush.xpose.msra.mxu0 %v210
  %498 = vmatmul.f32.gmra.mxu0 %v480
  %v499 = vpop.f32.mrf.mxu0
  %v500 = vadd.f32 0.0, %v499
  %501 = vdwg.mxu0
  %v502 = vsel %vm206, %v479, 0
  %504 = vmatpush.xpose.msra.mxu0 0.0
  %505 = vmatpush.xpose.msra.mxu0 0.0
  %506 = vmatpush.xpose.msra.mxu0 0.0
  %507 = vmatpush.xpose.msra.mxu0 0.0
  %508 = vmatpush.xpose.msra.mxu0 0.0
  %509 = vmatpush.xpose.msra.mxu0 0.0
  %510 = vmatpush.xpose.msra.mxu0 0.0
  %511 = vmatpush.xpose.msra.mxu0 0.0
  %512 = vmatpush.xpose.msra.mxu0 0.0
  %513 = vmatpush.xpose.msra.mxu0 0.0
  %514 = vmatpush.xpose.msra.mxu0 0.0
  %515 = vmatpush.xpose.msra.mxu0 0.0
  %516 = vmatpush.xpose.msra.mxu0 %v253
  %517 = vmatpush.xpose.msra.mxu0 %v250
  %518 = vmatpush.xpose.msra.mxu0 %v247
  %519 = vmatpush.xpose.msra.mxu0 %v244
  %520 = vmatmul.f32.gmra.mxu0 %v502
  %v521 = vpop.f32.mrf.mxu0
  %v522 = vadd.f32 0.0, %v521
  %523 = vdwg.mxu0
  %v524 = vadd.f32 %v500, %v275
  %v525 = vadd.f32 %v522, %v275
  %v528 = vrot.slane %v525, 7
  %v529 = vsel %vm281, %v528, %v524
  %v531 = vsel %vm284, %v529, -inf
  %532 = vmax.xlane.f32.xlu0 %v531
  %v533 = vpop.xlane.xlu0 %532
  %v535 = vrot.slane %v533, 1
  %vm538 = vcmp.ge.f32.partialorder %v524, %v533
  %vm539 = vcmp.ge.f32.partialorder %v525, %v535
  %v540 = vsel %vm538, %v90, 30
  %v541 = vsel %vm539, %v90, 30
  %v542 = vrot.slane %v541, 7
  %v543 = vsel %vm281, %v542, %v540
  %v544 = vsel %vm284, %v543, 2147483647
  %v545 = vand.u32 %v544, 65535
  %v546 = vshra.s32 %v544, 16
  %v547 = vcvt.s32.f32 %v545
  %v548 = vcvt.s32.f32 %v546
  %549 = vmin.xlane.f32.xlu0 %v548
  %v550 = vpop.xlane.xlu0 %549
  %vm551 = vcmp.eq.f32.partialorder %v548, %v550
  %v552 = vsel %vm551, %v547, inf
  %553 = vmin.xlane.f32.xlu0 %v552
  %v554 = vpop.xlane.xlu0 %553
  %v555 = vcvt.f32.s32 %v554
  %v556 = vcvt.f32.s32 %v550
  %v557 = vshll.u32 %v556, 16
  %v558 = vadd.s32 %v557, %v555
  %vm559 = vcmp.eq.s32.totalorder %v90, %v558
  %v560 = vsel %vm559, 1, 0
  %v561 = vcvt.s32.f32 %v560
  %v563 = vrot.slane %v561, 1
  %v564 = vsel %vm318, %v561, 0
  %566 = vmatpush.msra.mxu0 0.0
  %567 = vmatpush.msra.mxu0 0.0
  %568 = vmatpush.msra.mxu0 0.0
  %569 = vmatpush.msra.mxu0 0.0
  %570 = vmatpush.msra.mxu0 0.0
  %571 = vmatpush.msra.mxu0 0.0
  %572 = vmatpush.msra.mxu0 0.0
  %573 = vmatpush.msra.mxu0 0.0
  %574 = vmatpush.msra.mxu0 0.0
  %575 = vmatpush.msra.mxu0 0.0
  %576 = vmatpush.msra.mxu0 0.0
  %577 = vmatpush.msra.mxu0 0.0
  %578 = vmatpush.msra.mxu0 %v322
  %579 = vmatpush.msra.mxu0 %v36
  %580 = vmatpush.msra.mxu0 %v35
  %581 = vmatpush.msra.mxu0 %v34
  %582 = vmatmul.f32.gmra.mxu0 %v564
  %v583 = vpop.f32.mrf.mxu0
  %v584 = vadd.f32 0.0, %v583
  %585 = vdwg.mxu0
  %v586 = vsel %vm318, %v563, 0
  %588 = vmatpush.msra.mxu0 0.0
  %589 = vmatpush.msra.mxu0 0.0
  %590 = vmatpush.msra.mxu0 0.0
  %591 = vmatpush.msra.mxu0 0.0
  %592 = vmatpush.msra.mxu0 0.0
  %593 = vmatpush.msra.mxu0 0.0
  %594 = vmatpush.msra.mxu0 0.0
  %595 = vmatpush.msra.mxu0 0.0
  %596 = vmatpush.msra.mxu0 0.0
  %597 = vmatpush.msra.mxu0 0.0
  %598 = vmatpush.msra.mxu0 0.0
  %599 = vmatpush.msra.mxu0 0.0
  %600 = vmatpush.msra.mxu0 %v346
  %601 = vmatpush.msra.mxu0 %v40
  %602 = vmatpush.msra.mxu0 %v39
  %603 = vmatpush.msra.mxu0 %v38
  %604 = vmatmul.f32.gmra.mxu0 %v586
  %v605 = vpop.f32.mrf.mxu0
  %v606 = vadd.f32 0.0, %v605
  %607 = vdwg.mxu0
  %v610 = vrot.slane %v606, 7
  %v611 = vsel %vm281, %v610, %v584
  %v612 = vsel %vm94, %v611, 0
  %614 = vmatpush.msra.mxu0 0.0
  %615 = vmatpush.msra.mxu0 0.0
  %616 = vmatpush.msra.mxu0 0.0
  %617 = vmatpush.msra.mxu0 0.0
  %618 = vmatpush.msra.mxu0 0.0
  %619 = vmatpush.msra.mxu0 0.0
  %620 = vmatpush.msra.mxu0 0.0
  %621 = vmatpush.msra.mxu0 0.0
  %622 = vmatpush.msra.mxu0 0.0
  %623 = vmatpush.msra.mxu0 0.0
  %624 = vmatpush.msra.mxu0 0.0
  %625 = vmatpush.msra.mxu0 0.0
  %626 = vmatpush.msra.mxu0 0.0
  %627 = vmatpush.msra.mxu0 0.0
  %628 = vmatpush.msra.mxu0 0.0
  %629 = vmatpush.msra.mxu0 %v42
  %630 = vmatmul.f32.gmra.mxu0 %v612
  %v631 = vpop.f32.mrf.mxu0
  %v632 = vadd.f32 0.0, %v631
  %633 = vdwg.mxu0
  %v634 = vadd.f32 %v84, %v632
  %635 = vmatpush.msra.mxu0 0.0
  %636 = vmatpush.msra.mxu0 0.0
  %637 = vmatpush.msra.mxu0 0.0
  %638 = vmatpush.msra.mxu0 0.0
  %639 = vmatpush.msra.mxu0 0.0
  %640 = vmatpush.msra.mxu0 0.0
  %641 = vmatpush.msra.mxu0 0.0
  %642 = vmatpush.msra.mxu0 0.0
  %643 = vmatpush.msra.mxu0 0.0
  %644 = vmatpush.msra.mxu0 0.0
  %645 = vmatpush.msra.mxu0 0.0
  %646 = vmatpush.msra.mxu0 0.0
  %647 = vmatpush.msra.mxu0 %v46
  %648 = vmatpush.msra.mxu0 %v45
  %649 = vmatpush.msra.mxu0 %v44
  %650 = vmatpush.msra.mxu0 %v43
  %651 = vmatmul.f32.gmra.mxu0 %v456
  %v652 = vpop.f32.mrf.mxu0
  %v653 = vadd.f32 0.0, %v652
  %654 = vdwg.mxu0
  %v655 = vadd.f32 %v634, %v653
  %v656 = vxor.u32 %v655, 2147483648
  %v657 = vmul.f32 %v656, 1.442695
  %v658 = vpow.pop %v657
  %v659 = vadd.f32 %v658, 1.0
  %v660 = vrcp.pop %v659
  %v661 = vmul.f32 %v659, %v660
  %v662 = vsub.f32 1.0, %v661
  %v663 = vmul.f32 %v660, %v662
  %v664 = vadd.f32 %v660, %v663
  %vm665 = vweird.f32 %v659
  %vm666 = vweird.f32 %v660
  %vm667 = vmor %vm665, %vm666
  %v668 = vsel %vm667, %v660, %v664
  %v669 = vand.u32 2147483647, %v659
  %vm670 = vcmp.eq.f32.partialorder %v669, 8.507059e+37
  %v671 = vand.u32 %v659, 2147483648
  %v672 = vor.u32 1.1754944e-38, %v671
  %v673 = vsel %vm670, %v672, %v668
  %v674 = vmul.f32 1.0, %v673
  %v675 = vtanh.pop %v655
  %v676 = vmul.f32 %v674, %v446
  %678 = vrot.lane.b32.xlu0 %v675, 64
  %v679 = vpop.permute.xlu0 %678
  %v681 = vmul.f32 %v674, %v679
  %683 = vrot.lane.b32.xlu0 %v681, 32
  %v684 = vpop.permute.xlu0 %683
  %v686 = vadd.f32 %v676, %v684
  %v687 = vtanh.pop %v686
  %689 = vrot.lane.b32.xlu0 %v687, 64
  %v690 = vpop.permute.xlu0 %689
  %v692 = vmul.f32 %v674, %v690
  %694 = vrot.lane.b32.xlu0 %v692, 32
  %v695 = vpop.permute.xlu0 %694
  %v696 = vsel %vm62, %v695, 0
  %698 = vmatpush.msra.mxu0 0.0
  %699 = vmatpush.msra.mxu0 0.0
  %700 = vmatpush.msra.mxu0 0.0
  %701 = vmatpush.msra.mxu0 0.0
  %702 = vmatpush.msra.mxu0 0.0
  %703 = vmatpush.msra.mxu0 0.0
  %704 = vmatpush.msra.mxu0 0.0
  %705 = vmatpush.msra.mxu0 0.0
  %706 = vmatpush.msra.mxu0 0.0
  %707 = vmatpush.msra.mxu0 0.0
  %708 = vmatpush.msra.mxu0 0.0
  %709 = vmatpush.msra.mxu0 0.0
  %710 = vmatpush.msra.mxu0 %v50
  %711 = vmatpush.msra.mxu0 %v49
  %712 = vmatpush.msra.mxu0 %v48
  %713 = vmatpush.msra.mxu0 %v47
  %714 = vmatmul.f32.gmra.mxu0 %v696
  %v715 = vpop.f32.mrf.mxu0
  %v716 = vadd.f32 0.0, %v715
  %717 = vdwg.mxu0
  %v719 = vrot.slane %v716, 1
  %v720 = vsel %vm206, %v716, 0
  %722 = vmatpush.xpose.msra.mxu0 0.0
  %723 = vmatpush.xpose.msra.mxu0 0.0
  %724 = vmatpush.xpose.msra.mxu0 0.0
  %725 = vmatpush.xpose.msra.mxu0 0.0
  %726 = vmatpush.xpose.msra.mxu0 0.0
  %727 = vmatpush.xpose.msra.mxu0 0.0
  %728 = vmatpush.xpose.msra.mxu0 0.0
  %729 = vmatpush.xpose.msra.mxu0 0.0
  %730 = vmatpush.xpose.msra.mxu0 0.0
  %731 = vmatpush.xpose.msra.mxu0 0.0
  %732 = vmatpush.xpose.msra.mxu0 0.0
  %733 = vmatpush.xpose.msra.mxu0 0.0
  %734 = vmatpush.xpose.msra.mxu0 %v219
  %735 = vmatpush.xpose.msra.mxu0 %v216
  %736 = vmatpush.xpose.msra.mxu0 %v213
  %737 = vmatpush.xpose.msra.mxu0 %v210
  %738 = vmatmul.f32.gmra.mxu0 %v720
  %v739 = vpop.f32.mrf.mxu0
  %v740 = vadd.f32 0.0, %v739
  %741 = vdwg.mxu0
  %v742 = vsel %vm206, %v719, 0
  %744 = vmatpush.xpose.msra.mxu0 0.0
  %745 = vmatpush.xpose.msra.mxu0 0.0
  %746 = vmatpush.xpose.msra.mxu0 0.0
  %747 = vmatpush.xpose.msra.mxu0 0.0
  %748 = vmatpush.xpose.msra.mxu0 0.0
  %749 = vmatpush.xpose.msra.mxu0 0.0
  %750 = vmatpush.xpose.msra.mxu0 0.0
  %751 = vmatpush.xpose.msra.mxu0 0.0
  %752 = vmatpush.xpose.msra.mxu0 0.0
  %753 = vmatpush.xpose.msra.mxu0 0.0
  %754 = vmatpush.xpose.msra.mxu0 0.0
  %755 = vmatpush.xpose.msra.mxu0 0.0
  %756 = vmatpush.xpose.msra.mxu0 %v253
  %757 = vmatpush.xpose.msra.mxu0 %v250
  %758 = vmatpush.xpose.msra.mxu0 %v247
  %759 = vmatpush.xpose.msra.mxu0 %v244
  %760 = vmatmul.f32.gmra.mxu0 %v742
  %v761 = vpop.f32.mrf.mxu0
  %v762 = vadd.f32 0.0, %v761
  %763 = vdwg.mxu0
  %v764 = vadd.f32 %v740, %v275
  %v765 = vadd.f32 %v762, %v275
  %v768 = vrot.slane %v765, 7
  %v769 = vsel %vm281, %v768, %v764
  %v771 = vsel %vm284, %v769, -inf
  %772 = vmax.xlane.f32.xlu0 %v771
  %v773 = vpop.xlane.xlu0 %772
  %v775 = vrot.slane %v773, 1
  %vm778 = vcmp.ge.f32.partialorder %v764, %v773
  %vm779 = vcmp.ge.f32.partialorder %v765, %v775
  %v780 = vsel %vm778, %v90, 30
  %v781 = vsel %vm779, %v90, 30
  %v782 = vrot.slane %v781, 7
  %v783 = vsel %vm281, %v782, %v780
  %v784 = vsel %vm284, %v783, 2147483647
  %v785 = vand.u32 %v784, 65535
  %v786 = vshra.s32 %v784, 16
  %v787 = vcvt.s32.f32 %v785
  %v788 = vcvt.s32.f32 %v786
  %789 = vmin.xlane.f32.xlu0 %v788
  %v790 = vpop.xlane.xlu0 %789
  %vm791 = vcmp.eq.f32.partialorder %v788, %v790
  %v792 = vsel %vm791, %v787, inf
  %793 = vmin.xlane.f32.xlu0 %v792
  %v794 = vpop.xlane.xlu0 %793
  %v795 = vcvt.f32.s32 %v794
  %v796 = vcvt.f32.s32 %v790
  %v797 = vshll.u32 %v796, 16
  %v798 = vadd.s32 %v797, %v795
  %vm799 = vcmp.eq.s32.totalorder %v90, %v798
  %v800 = vsel %vm799, 1, 0
  %v801 = vcvt.s32.f32 %v800
  %v803 = vrot.slane %v801, 1
  %v804 = vsel %vm318, %v801, 0
  %806 = vmatpush.msra.mxu0 0.0
  %807 = vmatpush.msra.mxu0 0.0
  %808 = vmatpush.msra.mxu0 0.0
  %809 = vmatpush.msra.mxu0 0.0
  %810 = vmatpush.msra.mxu0 0.0
  %811 = vmatpush.msra.mxu0 0.0
  %812 = vmatpush.msra.mxu0 0.0
  %813 = vmatpush.msra.mxu0 0.0
  %814 = vmatpush.msra.mxu0 0.0
  %815 = vmatpush.msra.mxu0 0.0
  %816 = vmatpush.msra.mxu0 0.0
  %817 = vmatpush.msra.mxu0 0.0
  %818 = vmatpush.msra.mxu0 %v322
  %819 = vmatpush.msra.mxu0 %v36
  %820 = vmatpush.msra.mxu0 %v35
  %821 = vmatpush.msra.mxu0 %v34
  %822 = vmatmul.f32.gmra.mxu0 %v804
  %v823 = vpop.f32.mrf.mxu0
  %v824 = vadd.f32 0.0, %v823
  %825 = vdwg.mxu0
  %v826 = vsel %vm318, %v803, 0
  %828 = vmatpush.msra.mxu0 0.0
  %829 = vmatpush.msra.mxu0 0.0
  %830 = vmatpush.msra.mxu0 0.0
  %831 = vmatpush.msra.mxu0 0.0
  %832 = vmatpush.msra.mxu0 0.0
  %833 = vmatpush.msra.mxu0 0.0
  %834 = vmatpush.msra.mxu0 0.0
  %835 = vmatpush.msra.mxu0 0.0
  %836 = vmatpush.msra.mxu0 0.0
  %837 = vmatpush.msra.mxu0 0.0
  %838 = vmatpush.msra.mxu0 0.0
  %839 = vmatpush.msra.mxu0 0.0
  %840 = vmatpush.msra.mxu0 %v346
  %841 = vmatpush.msra.mxu0 %v40
  %842 = vmatpush.msra.mxu0 %v39
  %843 = vmatpush.msra.mxu0 %v38
  %844 = vmatmul.f32.gmra.mxu0 %v826
  %v845 = vpop.f32.mrf.mxu0
  %v846 = vadd.f32 0.0, %v845
  %847 = vdwg.mxu0
  %v850 = vrot.slane %v846, 7
  %v851 = vsel %vm281, %v850, %v824
  %v852 = vsel %vm94, %v851, 0
  %854 = vmatpush.msra.mxu0 0.0
  %855 = vmatpush.msra.mxu0 0.0
  %856 = vmatpush.msra.mxu0 0.0
  %857 = vmatpush.msra.mxu0 0.0
  %858 = vmatpush.msra.mxu0 0.0
  %859 = vmatpush.msra.mxu0 0.0
  %860 = vmatpush.msra.mxu0 0.0
  %861 = vmatpush.msra.mxu0 0.0
  %862 = vmatpush.msra.mxu0 0.0
  %863 = vmatpush.msra.mxu0 0.0
  %864 = vmatpush.msra.mxu0 0.0
  %865 = vmatpush.msra.mxu0 0.0
  %866 = vmatpush.msra.mxu0 0.0
  %867 = vmatpush.msra.mxu0 0.0
  %868 = vmatpush.msra.mxu0 0.0
  %869 = vmatpush.msra.mxu0 %v42
  %870 = vmatmul.f32.gmra.mxu0 %v852
  %v871 = vpop.f32.mrf.mxu0
  %v872 = vadd.f32 0.0, %v871
  %873 = vdwg.mxu0
  %v874 = vadd.f32 %v84, %v872
  %875 = vmatpush.msra.mxu0 0.0
  %876 = vmatpush.msra.mxu0 0.0
  %877 = vmatpush.msra.mxu0 0.0
  %878 = vmatpush.msra.mxu0 0.0
  %879 = vmatpush.msra.mxu0 0.0
  %880 = vmatpush.msra.mxu0 0.0
  %881 = vmatpush.msra.mxu0 0.0
  %882 = vmatpush.msra.mxu0 0.0
  %883 = vmatpush.msra.mxu0 0.0
  %884 = vmatpush.msra.mxu0 0.0
  %885 = vmatpush.msra.mxu0 0.0
  %886 = vmatpush.msra.mxu0 0.0
  %887 = vmatpush.msra.mxu0 %v46
  %888 = vmatpush.msra.mxu0 %v45
  %889 = vmatpush.msra.mxu0 %v44
  %890 = vmatpush.msra.mxu0 %v43
  %891 = vmatmul.f32.gmra.mxu0 %v696
  %v892 = vpop.f32.mrf.mxu0
  %v893 = vadd.f32 0.0, %v892
  %894 = vdwg.mxu0
  %v895 = vadd.f32 %v874, %v893
  %v896 = vxor.u32 %v895, 2147483648
  %v897 = vmul.f32 %v896, 1.442695
  %v898 = vpow.pop %v897
  %v899 = vadd.f32 %v898, 1.0
  %v900 = vrcp.pop %v899
  %v901 = vmul.f32 %v899, %v900
  %v902 = vsub.f32 1.0, %v901
  %v903 = vmul.f32 %v900, %v902
  %v904 = vadd.f32 %v900, %v903
  %vm905 = vweird.f32 %v899
  %vm906 = vweird.f32 %v900
  %vm907 = vmor %vm905, %vm906
  %v908 = vsel %vm907, %v900, %v904
  %v909 = vand.u32 2147483647, %v899
  %vm910 = vcmp.eq.f32.partialorder %v909, 8.507059e+37
  %v911 = vand.u32 %v899, 2147483648
  %v912 = vor.u32 1.1754944e-38, %v911
  %v913 = vsel %vm910, %v912, %v908
  %v914 = vmul.f32 1.0, %v913
  %v915 = vtanh.pop %v895
  %v916 = vmul.f32 %v914, %v686
  %918 = vrot.lane.b32.xlu0 %v915, 64
  %v919 = vpop.permute.xlu0 %918
  %v921 = vmul.f32 %v914, %v919
  %923 = vrot.lane.b32.xlu0 %v921, 32
  %v924 = vpop.permute.xlu0 %923
  %v926 = vadd.f32 %v916, %v924
  %v927 = vtanh.pop %v926
  %929 = vrot.lane.b32.xlu0 %v927, 64
  %v930 = vpop.permute.xlu0 %929
  %v932 = vmul.f32 %v914, %v930
  %934 = vrot.lane.b32.xlu0 %v932, 32
  %v935 = vpop.permute.xlu0 %934
  %v936 = vsel %vm62, %v935, 0
  %938 = vmatpush.msra.mxu0 0.0
  %939 = vmatpush.msra.mxu0 0.0
  %940 = vmatpush.msra.mxu0 0.0
  %941 = vmatpush.msra.mxu0 0.0
  %942 = vmatpush.msra.mxu0 0.0
  %943 = vmatpush.msra.mxu0 0.0
  %944 = vmatpush.msra.mxu0 0.0
  %945 = vmatpush.msra.mxu0 0.0
  %946 = vmatpush.msra.mxu0 0.0
  %947 = vmatpush.msra.mxu0 0.0
  %948 = vmatpush.msra.mxu0 0.0
  %949 = vmatpush.msra.mxu0 0.0
  %950 = vmatpush.msra.mxu0 %v50
  %951 = vmatpush.msra.mxu0 %v49
  %952 = vmatpush.msra.mxu0 %v48
  %953 = vmatpush.msra.mxu0 %v47
  %954 = vmatmul.f32.gmra.mxu0 %v936
  %v955 = vpop.f32.mrf.mxu0
  %v956 = vadd.f32 0.0, %v955
  %957 = vdwg.mxu0
  %v959 = vrot.slane %v956, 1
  %v960 = vsel %vm206, %v956, 0
  %962 = vmatpush.xpose.msra.mxu0 0.0
  %963 = vmatpush.xpose.msra.mxu0 0.0
  %964 = vmatpush.xpose.msra.mxu0 0.0
  %965 = vmatpush.xpose.msra.mxu0 0.0
  %966 = vmatpush.xpose.msra.mxu0 0.0
  %967 = vmatpush.xpose.msra.mxu0 0.0
  %968 = vmatpush.xpose.msra.mxu0 0.0
  %969 = vmatpush.xpose.msra.mxu0 0.0
  %970 = vmatpush.xpose.msra.mxu0 0.0
  %971 = vmatpush.xpose.msra.mxu0 0.0
  %972 = vmatpush.xpose.msra.mxu0 0.0
  %973 = vmatpush.xpose.msra.mxu0 0.0
  %974 = vmatpush.xpose.msra.mxu0 %v219
  %975 = vmatpush.xpose.msra.mxu0 %v216
  %976 = vmatpush.xpose.msra.mxu0 %v213
  %977 = vmatpush.xpose.msra.mxu0 %v210
  %978 = vmatmul.f32.gmra.mxu0 %v960
  %v979 = vpop.f32.mrf.mxu0
  %v980 = vadd.f32 0.0, %v979
  %981 = vdwg.mxu0
  %v982 = vsel %vm206, %v959, 0
  %984 = vmatpush.xpose.msra.mxu0 0.0
  %985 = vmatpush.xpose.msra.mxu0 0.0
  %986 = vmatpush.xpose.msra.mxu0 0.0
  %987 = vmatpush.xpose.msra.mxu0 0.0
  %988 = vmatpush.xpose.msra.mxu0 0.0
  %989 = vmatpush.xpose.msra.mxu0 0.0
  %990 = vmatpush.xpose.msra.mxu0 0.0
  %991 = vmatpush.xpose.msra.mxu0 0.0
  %992 = vmatpush.xpose.msra.mxu0 0.0
  %993 = vmatpush.xpose.msra.mxu0 0.0
  %994 = vmatpush.xpose.msra.mxu0 0.0
  %995 = vmatpush.xpose.msra.mxu0 0.0
  %996 = vmatpush.xpose.msra.mxu0 %v253
  %997 = vmatpush.xpose.msra.mxu0 %v250
  %998 = vmatpush.xpose.msra.mxu0 %v247
  %999 = vmatpush.xpose.msra.mxu0 %v244
  %1000 = vmatmul.f32.gmra.mxu0 %v982
  %v1001 = vpop.f32.mrf.mxu0
  %v1002 = vadd.f32 0.0, %v1001
  %1003 = vdwg.mxu0
  %v1004 = vadd.f32 %v980, %v275
  %v1005 = vadd.f32 %v1002, %v275
  %1006 = vrot.lane.b32.xlu0 %v282, 30
  %v1007 = vpop.permute.xlu0 %1006
  %1009 = vrot.lane.b32.xlu0 %v529, 60
  %v1010 = vpop.permute.xlu0 %1009
  %1012 = vrot.lane.b32.xlu0 %v769, 90
  %v1013 = vpop.permute.xlu0 %1012
  %v1017 = vrot.slane %v1005, 7
  %v1018 = vsel %vm281, %v1017, %v1004
  %1019 = vrot.lane.b32.xlu0 %v1018, 120
  %v1020 = vpop.permute.xlu0 %1019
  %v1022 = vsel %vm318, %v93, %v1007
  %vm1023 = vcmask 490496
  %v1024 = vsel %vm1023, %v1022, %v1010
  %vm1025 = vcmask 736256
  %v1026 = vsel %vm1025, %v1024, %v1013
  %vm1027 = vcmask 982016
  %v1028 = vsel %vm1027, %v1026, %v1020
  %v1030 = vrot.slane %v1020, 6
  %vm1031 = vcmask 1041408
  %v1032 = vsel %vm1031, %v1028, %v1030
  %vm1034 = vcmask 175106
  %vm1035 = vmor %vm1034, %vm1031
  %1036 = vst.msk [vmem:[%s9] sm:$0xf] %vm1035, %v1032
  // Predicated region
  $region38: #{nl2sql_forward.5} parent=0 // pred_check
    _
  $region39: #{nl2sql_forward.5} parent=0 // pred_check_branch
    %1038 = sbr.rel (0) target = $region41
  $region40: #{nl2sql_forward.5} parent=0 // pred_region
    _
  $region41: #{nl2sql_forward.5} parent=0 // pred_fallthru
    _
  // Predicated region
  $region42: #{nl2sql_forward.5} parent=0 // pred_check
    _
  $region43: #{nl2sql_forward.5} parent=0 // pred_check_branch
    %1040 = sbr.rel (0) target = $region45
  $region44: #{nl2sql_forward.5} parent=0 // pred_region
    _
  $region45: #{nl2sql_forward.5} parent=0 // pred_fallthru
    _

</llo_original>
